<compile_context>
chip_gen: v7x
topology: tpu7x:2x2x1
jax: 0.10.0
libtpu: 0.0.40
codegen_flags: <defaults>
</compile_context>

<pallas_src>
import jax
import jax.numpy as jnp
from jax.experimental import pallas as pl
from jax.experimental.pallas import tpu as pltpu

LEAKY_SLOPE = 0.01   # F.leaky_relu default negative_slope
BN_EPS = 1e-5        # nn.BatchNorm2d default eps
NEG_BIG = -1e30      # bias for padded FC logits -> exp() == 0


# ----------------------------------------------------------------------------
# Kernel 1: fused (conv-as-matmul) + folded (bias+BN) affine + leaky_relu
#           + 2x2 max-pool over the 4 window taps (leading axis of x).
# ----------------------------------------------------------------------------
def _conv_bn_lrelu_pool_kernel(x_ref, w_ref, scale_ref, shift_ref, o_ref):
    w = w_ref[...]
    scale = scale_ref[...]
    shift = shift_ref[...]

    def tap(t):
        y = jnp.dot(x_ref[t], w, preferred_element_type=jnp.float32)  # bf16 MXU, f32 acc
        y = y * scale + shift                                          # conv bias + BN folded
        return jnp.where(y > 0, y, LEAKY_SLOPE * y)                    # leaky_relu (f32 VPU)

    m = jnp.maximum(jnp.maximum(tap(0), tap(1)), jnp.maximum(tap(2), tap(3)))
    o_ref[...] = m.astype(o_ref.dtype)


def conv_bn_lrelu_pool(x_taps, w, scale, shift, tm=512):
    """x_taps: (4, M, K) bf16 (4 = pool-window taps), w: (K, C) bf16 -> (M, C) bf16."""
    _, M, K = x_taps.shape
    C = w.shape[1]
    tile = M if M < tm else tm           # ragged-safe: full-M block for small layers
    return pl.pallas_call(
        _conv_bn_lrelu_pool_kernel,
        out_shape=jax.ShapeDtypeStruct((M, C), jnp.bfloat16),
        grid=(pl.cdiv(M, tile),),
        in_specs=[
            pl.BlockSpec((4, tile, K), lambda i: (0, i, 0)),
            pl.BlockSpec((K, C), lambda i: (0, 0)),
            pl.BlockSpec((1, C), lambda i: (0, 0)),
            pl.BlockSpec((1, C), lambda i: (0, 0)),
        ],
        out_specs=pl.BlockSpec((tile, C), lambda i: (i, 0)),
        compiler_params=pltpu.CompilerParams(dimension_semantics=("parallel",)),
    )(x_taps, w, scale, shift)


# ----------------------------------------------------------------------------
# Kernel 2: Linear + softmax(dim=1) over a lane-dense (128-padded) class axis
# ----------------------------------------------------------------------------
def _fc_softmax_kernel(x_ref, w_ref, b_ref, o_ref):
    y = jnp.dot(x_ref[...], w_ref[...], preferred_element_type=jnp.float32)
    y = y + b_ref[...]                                  # padded logits get -1e30 bias
    m = jnp.max(y, axis=-1, keepdims=True)
    e = jnp.exp(y - m)                                  # padded lanes -> exactly 0
    o_ref[...] = e / jnp.sum(e, axis=-1, keepdims=True)


def fc_softmax(x2d, w, b, classes_num, tm=512):
    M, K = x2d.shape
    Cp = w.shape[1]                       # lane-padded class dim (multiple of 128)
    tile = M if M < tm else tm
    out = pl.pallas_call(
        _fc_softmax_kernel,
        out_shape=jax.ShapeDtypeStruct((M, Cp), jnp.float32),
        grid=(pl.cdiv(M, tile),),
        in_specs=[
            pl.BlockSpec((tile, K), lambda i: (i, 0)),
            pl.BlockSpec((K, Cp), lambda i: (0, 0)),
            pl.BlockSpec((1, Cp), lambda i: (0, 0)),
        ],
        out_specs=pl.BlockSpec((tile, Cp), lambda i: (i, 0)),
        compiler_params=pltpu.CompilerParams(dimension_semantics=("parallel",)),
    )(x2d, w, b)
    return out[:, :classes_num]


# ----------------------------------------------------------------------------
# Layout glue (plain JAX, tiny tensors): pool-tap gathers
# ----------------------------------------------------------------------------
def conv1_pool_taps(x):
    """x: (N, 28, 28) -> (4, N*13*13, 9): im2col patches per 2x2-pool tap.

    Tap (di, dj) row (r, c) holds the 3x3 patch at conv position (2r+di, 2c+dj);
    patch channel order is ki*3+kj, matching the reshaped conv weight rows.
    """
    N = x.shape[0]
    taps = []
    for di in (0, 1):
        for dj in (0, 1):
            cols = [x[:, di + ki:di + ki + 26:2, dj + kj:dj + kj + 26:2]
                    for ki in range(3) for kj in range(3)]
            taps.append(jnp.stack(cols, axis=-1).reshape(N * 13 * 13, 9))
    return jnp.stack(taps, axis=0)


def pool_taps_1x1(h):
    """h: (N, H, W, C) -> (4, N*(H//2)*(W//2), C) taps for a 1x1-conv + 2x2-pool layer."""
    N, H, W, C = h.shape
    Ho, Wo = H // 2, W // 2
    taps = [h[:, di:2 * Ho:2, dj:2 * Wo:2, :].reshape(N * Ho * Wo, C)
            for di in (0, 1) for dj in (0, 1)]
    return jnp.stack(taps, axis=0)


# ----------------------------------------------------------------------------
# Parameter init (deterministic, PyTorch-default-style fan_in uniform ranges)
# ----------------------------------------------------------------------------
def _conv_bn_params(key, cin, cout, ksz, cout_pad=None):
    kw, kb, kg, kbeta, km, kv = jax.random.split(key, 6)
    fan_in = cin * ksz * ksz
    bound = float(fan_in) ** -0.5
    w = jax.random.uniform(kw, (cout, cin, ksz, ksz), jnp.float32, -bound, bound)
    b = jax.random.uniform(kb, (cout,), jnp.float32, -bound, bound)
    gamma = 1.0 + 0.1 * jax.random.normal(kg, (cout,), jnp.float32)
    beta = 0.1 * jax.random.normal(kbeta, (cout,), jnp.float32)
    mean = 0.1 * jax.random.normal(km, (cout,), jnp.float32)
    var = 1.0 + 0.1 * jax.random.uniform(kv, (cout,), jnp.float32)
    # Fold conv bias + BatchNorm into a per-channel affine: y = (x@W) * scale + shift
    scale = gamma / jnp.sqrt(var + BN_EPS)
    shift = (b - mean) * scale + beta
    # (cout, cin, kh, kw) -> (cin*kh*kw, cout); row order matches im2col patch order
    w_mat = w.reshape(cout, fan_in).T
    if cout_pad is not None and cout_pad > cout:          # lane-dense output channels
        w_mat = jnp.pad(w_mat, ((0, 0), (0, cout_pad - cout)))
        scale = jnp.pad(scale, (0, cout_pad - cout))
        shift = jnp.pad(shift, (0, cout_pad - cout))
    cfull = w_mat.shape[1]
    return (w_mat.astype(jnp.bfloat16),
            scale.reshape(1, cfull).astype(jnp.float32),
            shift.reshape(1, cfull).astype(jnp.float32))


def _fc_params(key, in_f, out_f):
    kw, kb = jax.random.split(key)
    bound = float(in_f) ** -0.5
    w = jax.random.uniform(kw, (out_f, in_f), jnp.float32, -bound, bound)
    b = jax.random.uniform(kb, (out_f,), jnp.float32, -bound, bound)
    out_pad = ((out_f + 127) // 128) * 128
    w_mat = jnp.pad(w.T, ((0, 0), (0, out_pad - out_f)))            # (in_f, out_pad)
    b_pad = jnp.concatenate(
        [b, jnp.full((out_pad - out_f,), NEG_BIG, jnp.float32)]).reshape(1, out_pad)
    return w_mat.astype(jnp.bfloat16), b_pad


def init_params(key, classes_num):
    k1, k2, k3, k4 = jax.random.split(key, 4)
    p = {}
    p["w1"], p["s1"], p["t1"] = _conv_bn_params(k1, 1, 256, 3)                  # Conv2d(1,256,3)+BN
    p["w2"], p["s2"], p["t2"] = _conv_bn_params(k2, 256, 128, 1)                # Conv2d(256,128,1)+BN
    p["w3"], p["s3"], p["t3"] = _conv_bn_params(k3, 128, 70, 1, cout_pad=128)   # Conv2d(128,70,1)+BN
    p["wf"], p["bf"] = _fc_params(k4, 70 * 3 * 3, classes_num)                  # Linear(630, classes)
    return p


# ----------------------------------------------------------------------------
# Forward pass (matches CNNNeuralNetwork.forward, eval mode)
# ----------------------------------------------------------------------------
def cnn_forward(x, params, classes_num):
    # x: (N, 28, 28) — PyTorch forward does x.unsqueeze(1) -> NCHW with C=1
    N = x.shape[0]
    xb = x.astype(jnp.bfloat16)

    # conv1(3x3) + bn1 + leaky_relu + pool  -> (N, 13, 13, 256); dropout1 = identity
    h = conv_bn_lrelu_pool(conv1_pool_taps(xb), params["w1"], params["s1"], params["t1"])
    h = h.reshape(N, 13, 13, 256)

    # conv2(1x1) + bn2 + leaky_relu + pool  -> (N, 6, 6, 128); dropout2 = identity
    h = conv_bn_lrelu_pool(pool_taps_1x1(h), params["w2"], params["s2"], params["t2"])
    h = h.reshape(N, 6, 6, 128)

    # conv3(1x1, 70 ch padded to 128) + bn3 + leaky_relu + pool -> (N, 3, 3, 128)
    h = conv_bn_lrelu_pool(pool_taps_1x1(h), params["w3"], params["s3"], params["t3"])
    h = h.reshape(N, 3, 3, 128)

    # flatten in PyTorch NCHW order (C, H, W), keeping only the 70 real channels
    flat = jnp.transpose(h, (0, 3, 1, 2))[:, :70].reshape(N, 70 * 3 * 3)
    return fc_softmax(flat, params["wf"], params["bf"], classes_num)  # (N, classes)


if __name__ == "__main__":
    key = jax.random.PRNGKey(0)
    kx, kp = jax.random.split(key)
    classes_num = 10
    # Input must be 28x28 so that the post-conv spatial size matches fc1 (70*3*3).
    x = jax.random.normal(kx, (2, 28, 28), dtype=jnp.float32)
    params = init_params(kp, classes_num)

    fwd = jax.jit(cnn_forward, static_argnums=2)
    out = fwd(x, params, classes_num)
    out = jax.block_until_ready(out)

    assert out.shape == (2, classes_num), out.shape
    assert bool(jnp.all(jnp.isfinite(out)))
    assert bool(jnp.allclose(jnp.sum(out, axis=1), 1.0, atol=1e-5))
    print("KERNEL_OK")
</pallas_src>

<mosaic_0001>
module attributes {stable_mosaic.version = 11 : i64} {
  func.func @_conv_bn_lrelu_pool_kernel(%arg0: i32, %arg1: memref<4x338x9xbf16, #tpu.memory_space<vmem>>, %arg2: memref<9x256xbf16, #tpu.memory_space<vmem>>, %arg3: memref<1x256xf32, #tpu.memory_space<vmem>>, %arg4: memref<1x256xf32, #tpu.memory_space<vmem>>, %arg5: memref<338x256xbf16, #tpu.memory_space<vmem>>) attributes {dimension_semantics = [#tpu.dimension_semantics<parallel>], iteration_bounds = array<i64: 1>, scalar_prefetch = 0 : i64, scratch_operands = 0 : i64, tpu.core_type = #tpu.core_type<tc>, window_params = [{transform_indices = @transform_0, window_bounds = array<i64: 4, 338, 9>}, {pipeline_mode = #tpu.pipeline_mode<synchronous>, transform_indices = @transform_1, window_bounds = array<i64: 9, 256>}, {pipeline_mode = #tpu.pipeline_mode<synchronous>, transform_indices = @transform_2, window_bounds = array<i64: 1, 256>}, {pipeline_mode = #tpu.pipeline_mode<synchronous>, transform_indices = @transform_3, window_bounds = array<i64: 1, 256>}, {transform_indices = @transform_4, window_bounds = array<i64: 338, 256>}]} {
    %c0 = arith.constant 0 : index
    %c0_0 = arith.constant 0 : index
    %0 = vector.load %arg2[%c0, %c0_0] : memref<9x256xbf16, #tpu.memory_space<vmem>>, vector<9x256xbf16>
    %c0_1 = arith.constant 0 : index
    %c0_2 = arith.constant 0 : index
    %1 = vector.load %arg3[%c0_1, %c0_2] : memref<1x256xf32, #tpu.memory_space<vmem>>, vector<1x256xf32>
    %c0_3 = arith.constant 0 : index
    %c0_4 = arith.constant 0 : index
    %2 = vector.load %arg4[%c0_3, %c0_4] : memref<1x256xf32, #tpu.memory_space<vmem>>, vector<1x256xf32>
    %c0_5 = arith.constant 0 : index
    %c0_6 = arith.constant 0 : index
    %c0_7 = arith.constant 0 : index
    %3 = vector.load %arg1[%c0_5, %c0_6, %c0_7] : memref<4x338x9xbf16, #tpu.memory_space<vmem>>, vector<1x338x9xbf16>
    %4 = vector.shape_cast %3 : vector<1x338x9xbf16> to vector<338x9xbf16>
    %cst = arith.constant dense<0.000000e+00> : vector<338x256xf32>
    %5 = tpu.matmul %4, %0, %cst {dimension_numbers = #tpu.dot_dimension_numbers<[1], [0], [0], [1], [0, 0, 1, 1], [], []>} : vector<338x9xbf16>, vector<9x256xbf16>, vector<338x256xf32> -> vector<338x256xf32>
    %6 = vector.broadcast %1 : vector<1x256xf32> to vector<338x256xf32>
    %7 = arith.mulf %5, %6 : vector<338x256xf32>
    %8 = vector.broadcast %2 : vector<1x256xf32> to vector<338x256xf32>
    %9 = arith.addf %7, %8 : vector<338x256xf32>
    %cst_8 = arith.constant 0.000000e+00 : f32
    %10 = vector.broadcast %cst_8 : f32 to vector<338x256xf32>
    %11 = arith.cmpf ogt, %9, %10 : vector<338x256xf32>
    %cst_9 = arith.constant 0.00999999977 : f32
    %12 = vector.broadcast %cst_9 : f32 to vector<338x256xf32>
    %13 = arith.mulf %12, %9 : vector<338x256xf32>
    %14 = arith.select %11, %9, %13 : vector<338x256xi1>, vector<338x256xf32>
    %c1 = arith.constant 1 : index
    %c0_10 = arith.constant 0 : index
    %c0_11 = arith.constant 0 : index
    %15 = vector.load %arg1[%c1, %c0_10, %c0_11] : memref<4x338x9xbf16, #tpu.memory_space<vmem>>, vector<1x338x9xbf16>
    %16 = vector.shape_cast %15 : vector<1x338x9xbf16> to vector<338x9xbf16>
    %cst_12 = arith.constant dense<0.000000e+00> : vector<338x256xf32>
    %17 = tpu.matmul %16, %0, %cst_12 {dimension_numbers = #tpu.dot_dimension_numbers<[1], [0], [0], [1], [0, 0, 1, 1], [], []>} : vector<338x9xbf16>, vector<9x256xbf16>, vector<338x256xf32> -> vector<338x256xf32>
    %18 = vector.broadcast %1 : vector<1x256xf32> to vector<338x256xf32>
    %19 = arith.mulf %17, %18 : vector<338x256xf32>
    %20 = vector.broadcast %2 : vector<1x256xf32> to vector<338x256xf32>
    %21 = arith.addf %19, %20 : vector<338x256xf32>
    %cst_13 = arith.constant 0.000000e+00 : f32
    %22 = vector.broadcast %cst_13 : f32 to vector<338x256xf32>
    %23 = arith.cmpf ogt, %21, %22 : vector<338x256xf32>
    %cst_14 = arith.constant 0.00999999977 : f32
    %24 = vector.broadcast %cst_14 : f32 to vector<338x256xf32>
    %25 = arith.mulf %24, %21 : vector<338x256xf32>
    %26 = arith.select %23, %21, %25 : vector<338x256xi1>, vector<338x256xf32>
    %27 = arith.maximumf %14, %26 : vector<338x256xf32>
    %c2 = arith.constant 2 : index
    %c0_15 = arith.constant 0 : index
    %c0_16 = arith.constant 0 : index
    %28 = vector.load %arg1[%c2, %c0_15, %c0_16] : memref<4x338x9xbf16, #tpu.memory_space<vmem>>, vector<1x338x9xbf16>
    %29 = vector.shape_cast %28 : vector<1x338x9xbf16> to vector<338x9xbf16>
    %cst_17 = arith.constant dense<0.000000e+00> : vector<338x256xf32>
    %30 = tpu.matmul %29, %0, %cst_17 {dimension_numbers = #tpu.dot_dimension_numbers<[1], [0], [0], [1], [0, 0, 1, 1], [], []>} : vector<338x9xbf16>, vector<9x256xbf16>, vector<338x256xf32> -> vector<338x256xf32>
    %31 = vector.broadcast %1 : vector<1x256xf32> to vector<338x256xf32>
    %32 = arith.mulf %30, %31 : vector<338x256xf32>
    %33 = vector.broadcast %2 : vector<1x256xf32> to vector<338x256xf32>
    %34 = arith.addf %32, %33 : vector<338x256xf32>
    %cst_18 = arith.constant 0.000000e+00 : f32
    %35 = vector.broadcast %cst_18 : f32 to vector<338x256xf32>
    %36 = arith.cmpf ogt, %34, %35 : vector<338x256xf32>
    %cst_19 = arith.constant 0.00999999977 : f32
    %37 = vector.broadcast %cst_19 : f32 to vector<338x256xf32>
    %38 = arith.mulf %37, %34 : vector<338x256xf32>
    %39 = arith.select %36, %34, %38 : vector<338x256xi1>, vector<338x256xf32>
    %c3 = arith.constant 3 : index
    %c0_20 = arith.constant 0 : index
    %c0_21 = arith.constant 0 : index
    %40 = vector.load %arg1[%c3, %c0_20, %c0_21] : memref<4x338x9xbf16, #tpu.memory_space<vmem>>, vector<1x338x9xbf16>
    %41 = vector.shape_cast %40 : vector<1x338x9xbf16> to vector<338x9xbf16>
    %cst_22 = arith.constant dense<0.000000e+00> : vector<338x256xf32>
    %42 = tpu.matmul %41, %0, %cst_22 {dimension_numbers = #tpu.dot_dimension_numbers<[1], [0], [0], [1], [0, 0, 1, 1], [], []>} : vector<338x9xbf16>, vector<9x256xbf16>, vector<338x256xf32> -> vector<338x256xf32>
    %43 = vector.broadcast %1 : vector<1x256xf32> to vector<338x256xf32>
    %44 = arith.mulf %42, %43 : vector<338x256xf32>
    %45 = vector.broadcast %2 : vector<1x256xf32> to vector<338x256xf32>
    %46 = arith.addf %44, %45 : vector<338x256xf32>
    %cst_23 = arith.constant 0.000000e+00 : f32
    %47 = vector.broadcast %cst_23 : f32 to vector<338x256xf32>
    %48 = arith.cmpf ogt, %46, %47 : vector<338x256xf32>
    %cst_24 = arith.constant 0.00999999977 : f32
    %49 = vector.broadcast %cst_24 : f32 to vector<338x256xf32>
    %50 = arith.mulf %49, %46 : vector<338x256xf32>
    %51 = arith.select %48, %46, %50 : vector<338x256xi1>, vector<338x256xf32>
    %52 = arith.maximumf %39, %51 : vector<338x256xf32>
    %53 = arith.maximumf %27, %52 : vector<338x256xf32>
    %54 = arith.truncf %53 : vector<338x256xf32> to vector<338x256xbf16>
    %c0_25 = arith.constant 0 : index
    %c0_26 = arith.constant 0 : index
    %55 = vector.load %arg5[%c0_25, %c0_26] : memref<338x256xbf16, #tpu.memory_space<vmem>>, vector<338x256xbf16>
    tpu.vector_store %arg5[%c0_25, %c0_26], %54 {strides = array<i32>} : memref<338x256xbf16, #tpu.memory_space<vmem>>, vector<338x256xbf16>,
    return
  }
  func.func @transform_0(%arg0: i32) -> (i32, i32, i32) {
    %c0_i32 = arith.constant 0 : i32
    %c0_i32_0 = arith.constant 0 : i32
    %c0_i32_1 = arith.constant 0 : i32
    return %c0_i32, %arg0, %c0_i32_0 : i32, i32, i32
  }
  func.func @transform_1(%arg0: i32) -> (i32, i32) {
    %c0_i32 = arith.constant 0 : i32
    %c0_i32_0 = arith.constant 0 : i32
    %c0_i32_1 = arith.constant 0 : i32
    return %c0_i32, %c0_i32_0 : i32, i32
  }
  func.func @transform_2(%arg0: i32) -> (i32, i32) {
    %c0_i32 = arith.constant 0 : i32
    %c0_i32_0 = arith.constant 0 : i32
    %c0_i32_1 = arith.constant 0 : i32
    return %c0_i32, %c0_i32_0 : i32, i32
  }
  func.func @transform_3(%arg0: i32) -> (i32, i32) {
    %c0_i32 = arith.constant 0 : i32
    %c0_i32_0 = arith.constant 0 : i32
    %c0_i32_1 = arith.constant 0 : i32
    return %c0_i32, %c0_i32_0 : i32, i32
  }
  func.func @transform_4(%arg0: i32) -> (i32, i32) {
    %c0_i32 = arith.constant 0 : i32
    %c0_i32_0 = arith.constant 0 : i32
    return %arg0, %c0_i32 : i32, i32
  }
}

module attributes {stable_mosaic.version = 11 : i64} {
  func.func @_conv_bn_lrelu_pool_kernel(%arg0: i32, %arg1: memref<4x72x256xbf16, #tpu.memory_space<vmem>>, %arg2: memref<256x128xbf16, #tpu.memory_space<vmem>>, %arg3: memref<1x128xf32, #tpu.memory_space<vmem>>, %arg4: memref<1x128xf32, #tpu.memory_space<vmem>>, %arg5: memref<72x128xbf16, #tpu.memory_space<vmem>>) attributes {dimension_semantics = [#tpu.dimension_semantics<parallel>], iteration_bounds = array<i64: 1>, scalar_prefetch = 0 : i64, scratch_operands = 0 : i64, tpu.core_type = #tpu.core_type<tc>, window_params = [{transform_indices = @transform_0, window_bounds = array<i64: 4, 72, 256>}, {pipeline_mode = #tpu.pipeline_mode<synchronous>, transform_indices = @transform_1, window_bounds = array<i64: 256, 128>}, {pipeline_mode = #tpu.pipeline_mode<synchronous>, transform_indices = @transform_2, window_bounds = array<i64: 1, 128>}, {pipeline_mode = #tpu.pipeline_mode<synchronous>, transform_indices = @transform_3, window_bounds = array<i64: 1, 128>}, {transform_indices = @transform_4, window_bounds = array<i64: 72, 128>}]} {
    %c0 = arith.constant 0 : index
    %c0_0 = arith.constant 0 : index
    %0 = vector.load %arg2[%c0, %c0_0] : memref<256x128xbf16, #tpu.memory_space<vmem>>, vector<256x128xbf16>
    %c0_1 = arith.constant 0 : index
    %c0_2 = arith.constant 0 : index
    %1 = vector.load %arg3[%c0_1, %c0_2] : memref<1x128xf32, #tpu.memory_space<vmem>>, vector<1x128xf32>
    %c0_3 = arith.constant 0 : index
    %c0_4 = arith.constant 0 : index
    %2 = vector.load %arg4[%c0_3, %c0_4] : memref<1x128xf32, #tpu.memory_space<vmem>>, vector<1x128xf32>
    %c0_5 = arith.constant 0 : index
    %c0_6 = arith.constant 0 : index
    %c0_7 = arith.constant 0 : index
    %3 = vector.load %arg1[%c0_5, %c0_6, %c0_7] : memref<4x72x256xbf16, #tpu.memory_space<vmem>>, vector<1x72x256xbf16>
    %4 = vector.shape_cast %3 : vector<1x72x256xbf16> to vector<72x256xbf16>
    %cst = arith.constant dense<0.000000e+00> : vector<72x128xf32>
    %5 = tpu.matmul %4, %0, %cst {dimension_numbers = #tpu.dot_dimension_numbers<[1], [0], [0], [1], [0, 0, 1, 1], [], []>} : vector<72x256xbf16>, vector<256x128xbf16>, vector<72x128xf32> -> vector<72x128xf32>
    %6 = vector.broadcast %1 : vector<1x128xf32> to vector<72x128xf32>
    %7 = arith.mulf %5, %6 : vector<72x128xf32>
    %8 = vector.broadcast %2 : vector<1x128xf32> to vector<72x128xf32>
    %9 = arith.addf %7, %8 : vector<72x128xf32>
    %cst_8 = arith.constant 0.000000e+00 : f32
    %10 = vector.broadcast %cst_8 : f32 to vector<72x128xf32>
    %11 = arith.cmpf ogt, %9, %10 : vector<72x128xf32>
    %cst_9 = arith.constant 0.00999999977 : f32
    %12 = vector.broadcast %cst_9 : f32 to vector<72x128xf32>
    %13 = arith.mulf %12, %9 : vector<72x128xf32>
    %14 = arith.select %11, %9, %13 : vector<72x128xi1>, vector<72x128xf32>
    %c1 = arith.constant 1 : index
    %c0_10 = arith.constant 0 : index
    %c0_11 = arith.constant 0 : index
    %15 = vector.load %arg1[%c1, %c0_10, %c0_11] : memref<4x72x256xbf16, #tpu.memory_space<vmem>>, vector<1x72x256xbf16>
    %16 = vector.shape_cast %15 : vector<1x72x256xbf16> to vector<72x256xbf16>
    %cst_12 = arith.constant dense<0.000000e+00> : vector<72x128xf32>
    %17 = tpu.matmul %16, %0, %cst_12 {dimension_numbers = #tpu.dot_dimension_numbers<[1], [0], [0], [1], [0, 0, 1, 1], [], []>} : vector<72x256xbf16>, vector<256x128xbf16>, vector<72x128xf32> -> vector<72x128xf32>
    %18 = vector.broadcast %1 : vector<1x128xf32> to vector<72x128xf32>
    %19 = arith.mulf %17, %18 : vector<72x128xf32>
    %20 = vector.broadcast %2 : vector<1x128xf32> to vector<72x128xf32>
    %21 = arith.addf %19, %20 : vector<72x128xf32>
    %cst_13 = arith.constant 0.000000e+00 : f32
    %22 = vector.broadcast %cst_13 : f32 to vector<72x128xf32>
    %23 = arith.cmpf ogt, %21, %22 : vector<72x128xf32>
    %cst_14 = arith.constant 0.00999999977 : f32
    %24 = vector.broadcast %cst_14 : f32 to vector<72x128xf32>
    %25 = arith.mulf %24, %21 : vector<72x128xf32>
    %26 = arith.select %23, %21, %25 : vector<72x128xi1>, vector<72x128xf32>
    %27 = arith.maximumf %14, %26 : vector<72x128xf32>
    %c2 = arith.constant 2 : index
    %c0_15 = arith.constant 0 : index
    %c0_16 = arith.constant 0 : index
    %28 = vector.load %arg1[%c2, %c0_15, %c0_16] : memref<4x72x256xbf16, #tpu.memory_space<vmem>>, vector<1x72x256xbf16>
    %29 = vector.shape_cast %28 : vector<1x72x256xbf16> to vector<72x256xbf16>
    %cst_17 = arith.constant dense<0.000000e+00> : vector<72x128xf32>
    %30 = tpu.matmul %29, %0, %cst_17 {dimension_numbers = #tpu.dot_dimension_numbers<[1], [0], [0], [1], [0, 0, 1, 1], [], []>} : vector<72x256xbf16>, vector<256x128xbf16>, vector<72x128xf32> -> vector<72x128xf32>
    %31 = vector.broadcast %1 : vector<1x128xf32> to vector<72x128xf32>
    %32 = arith.mulf %30, %31 : vector<72x128xf32>
    %33 = vector.broadcast %2 : vector<1x128xf32> to vector<72x128xf32>
    %34 = arith.addf %32, %33 : vector<72x128xf32>
    %cst_18 = arith.constant 0.000000e+00 : f32
    %35 = vector.broadcast %cst_18 : f32 to vector<72x128xf32>
    %36 = arith.cmpf ogt, %34, %35 : vector<72x128xf32>
    %cst_19 = arith.constant 0.00999999977 : f32
    %37 = vector.broadcast %cst_19 : f32 to vector<72x128xf32>
    %38 = arith.mulf %37, %34 : vector<72x128xf32>
    %39 = arith.select %36, %34, %38 : vector<72x128xi1>, vector<72x128xf32>
    %c3 = arith.constant 3 : index
    %c0_20 = arith.constant 0 : index
    %c0_21 = arith.constant 0 : index
    %40 = vector.load %arg1[%c3, %c0_20, %c0_21] : memref<4x72x256xbf16, #tpu.memory_space<vmem>>, vector<1x72x256xbf16>
    %41 = vector.shape_cast %40 : vector<1x72x256xbf16> to vector<72x256xbf16>
    %cst_22 = arith.constant dense<0.000000e+00> : vector<72x128xf32>
    %42 = tpu.matmul %41, %0, %cst_22 {dimension_numbers = #tpu.dot_dimension_numbers<[1], [0], [0], [1], [0, 0, 1, 1], [], []>} : vector<72x256xbf16>, vector<256x128xbf16>, vector<72x128xf32> -> vector<72x128xf32>
    %43 = vector.broadcast %1 : vector<1x128xf32> to vector<72x128xf32>
    %44 = arith.mulf %42, %43 : vector<72x128xf32>
    %45 = vector.broadcast %2 : vector<1x128xf32> to vector<72x128xf32>
    %46 = arith.addf %44, %45 : vector<72x128xf32>
    %cst_23 = arith.constant 0.000000e+00 : f32
    %47 = vector.broadcast %cst_23 : f32 to vector<72x128xf32>
    %48 = arith.cmpf ogt, %46, %47 : vector<72x128xf32>
    %cst_24 = arith.constant 0.00999999977 : f32
    %49 = vector.broadcast %cst_24 : f32 to vector<72x128xf32>
    %50 = arith.mulf %49, %46 : vector<72x128xf32>
    %51 = arith.select %48, %46, %50 : vector<72x128xi1>, vector<72x128xf32>
    %52 = arith.maximumf %39, %51 : vector<72x128xf32>
    %53 = arith.maximumf %27, %52 : vector<72x128xf32>
    %54 = arith.truncf %53 : vector<72x128xf32> to vector<72x128xbf16>
    %c0_25 = arith.constant 0 : index
    %c0_26 = arith.constant 0 : index
    %55 = vector.load %arg5[%c0_25, %c0_26] : memref<72x128xbf16, #tpu.memory_space<vmem>>, vector<72x128xbf16>
    tpu.vector_store %arg5[%c0_25, %c0_26], %54 {strides = array<i32>} : memref<72x128xbf16, #tpu.memory_space<vmem>>, vector<72x128xbf16>,
    return
  }
  func.func @transform_0(%arg0: i32) -> (i32, i32, i32) {
    %c0_i32 = arith.constant 0 : i32
    %c0_i32_0 = arith.constant 0 : i32
    %c0_i32_1 = arith.constant 0 : i32
    return %c0_i32, %arg0, %c0_i32_0 : i32, i32, i32
  }
  func.func @transform_1(%arg0: i32) -> (i32, i32) {
    %c0_i32 = arith.constant 0 : i32
    %c0_i32_0 = arith.constant 0 : i32
    %c0_i32_1 = arith.constant 0 : i32
    return %c0_i32, %c0_i32_0 : i32, i32
  }
  func.func @transform_2(%arg0: i32) -> (i32, i32) {
    %c0_i32 = arith.constant 0 : i32
    %c0_i32_0 = arith.constant 0 : i32
    %c0_i32_1 = arith.constant 0 : i32
    return %c0_i32, %c0_i32_0 : i32, i32
  }
  func.func @transform_3(%arg0: i32) -> (i32, i32) {
    %c0_i32 = arith.constant 0 : i32
    %c0_i32_0 = arith.constant 0 : i32
    %c0_i32_1 = arith.constant 0 : i32
    return %c0_i32, %c0_i32_0 : i32, i32
  }
  func.func @transform_4(%arg0: i32) -> (i32, i32) {
    %c0_i32 = arith.constant 0 : i32
    %c0_i32_0 = arith.constant 0 : i32
    return %arg0, %c0_i32 : i32, i32
  }
}

module attributes {stable_mosaic.version = 11 : i64} {
  func.func @_conv_bn_lrelu_pool_kernel(%arg0: i32, %arg1: memref<4x18x128xbf16, #tpu.memory_space<vmem>>, %arg2: memref<128x128xbf16, #tpu.memory_space<vmem>>, %arg3: memref<1x128xf32, #tpu.memory_space<vmem>>, %arg4: memref<1x128xf32, #tpu.memory_space<vmem>>, %arg5: memref<18x128xbf16, #tpu.memory_space<vmem>>) attributes {dimension_semantics = [#tpu.dimension_semantics<parallel>], iteration_bounds = array<i64: 1>, scalar_prefetch = 0 : i64, scratch_operands = 0 : i64, tpu.core_type = #tpu.core_type<tc>, window_params = [{transform_indices = @transform_0, window_bounds = array<i64: 4, 18, 128>}, {pipeline_mode = #tpu.pipeline_mode<synchronous>, transform_indices = @transform_1, window_bounds = array<i64: 128, 128>}, {pipeline_mode = #tpu.pipeline_mode<synchronous>, transform_indices = @transform_2, window_bounds = array<i64: 1, 128>}, {pipeline_mode = #tpu.pipeline_mode<synchronous>, transform_indices = @transform_3, window_bounds = array<i64: 1, 128>}, {transform_indices = @transform_4, window_bounds = array<i64: 18, 128>}]} {
    %c0 = arith.constant 0 : index
    %c0_0 = arith.constant 0 : index
    %0 = vector.load %arg2[%c0, %c0_0] : memref<128x128xbf16, #tpu.memory_space<vmem>>, vector<128x128xbf16>
    %c0_1 = arith.constant 0 : index
    %c0_2 = arith.constant 0 : index
    %1 = vector.load %arg3[%c0_1, %c0_2] : memref<1x128xf32, #tpu.memory_space<vmem>>, vector<1x128xf32>
    %c0_3 = arith.constant 0 : index
    %c0_4 = arith.constant 0 : index
    %2 = vector.load %arg4[%c0_3, %c0_4] : memref<1x128xf32, #tpu.memory_space<vmem>>, vector<1x128xf32>
    %c0_5 = arith.constant 0 : index
    %c0_6 = arith.constant 0 : index
    %c0_7 = arith.constant 0 : index
    %3 = vector.load %arg1[%c0_5, %c0_6, %c0_7] : memref<4x18x128xbf16, #tpu.memory_space<vmem>>, vector<1x18x128xbf16>
    %4 = vector.shape_cast %3 : vector<1x18x128xbf16> to vector<18x128xbf16>
    %cst = arith.constant dense<0.000000e+00> : vector<18x128xf32>
    %5 = tpu.matmul %4, %0, %cst {dimension_numbers = #tpu.dot_dimension_numbers<[1], [0], [0], [1], [0, 0, 1, 1], [], []>} : vector<18x128xbf16>, vector<128x128xbf16>, vector<18x128xf32> -> vector<18x128xf32>
    %6 = vector.broadcast %1 : vector<1x128xf32> to vector<18x128xf32>
    %7 = arith.mulf %5, %6 : vector<18x128xf32>
    %8 = vector.broadcast %2 : vector<1x128xf32> to vector<18x128xf32>
    %9 = arith.addf %7, %8 : vector<18x128xf32>
    %cst_8 = arith.constant 0.000000e+00 : f32
    %10 = vector.broadcast %cst_8 : f32 to vector<18x128xf32>
    %11 = arith.cmpf ogt, %9, %10 : vector<18x128xf32>
    %cst_9 = arith.constant 0.00999999977 : f32
    %12 = vector.broadcast %cst_9 : f32 to vector<18x128xf32>
    %13 = arith.mulf %12, %9 : vector<18x128xf32>
    %14 = arith.select %11, %9, %13 : vector<18x128xi1>, vector<18x128xf32>
    %c1 = arith.constant 1 : index
    %c0_10 = arith.constant 0 : index
    %c0_11 = arith.constant 0 : index
    %15 = vector.load %arg1[%c1, %c0_10, %c0_11] : memref<4x18x128xbf16, #tpu.memory_space<vmem>>, vector<1x18x128xbf16>
    %16 = vector.shape_cast %15 : vector<1x18x128xbf16> to vector<18x128xbf16>
    %cst_12 = arith.constant dense<0.000000e+00> : vector<18x128xf32>
    %17 = tpu.matmul %16, %0, %cst_12 {dimension_numbers = #tpu.dot_dimension_numbers<[1], [0], [0], [1], [0, 0, 1, 1], [], []>} : vector<18x128xbf16>, vector<128x128xbf16>, vector<18x128xf32> -> vector<18x128xf32>
    %18 = vector.broadcast %1 : vector<1x128xf32> to vector<18x128xf32>
    %19 = arith.mulf %17, %18 : vector<18x128xf32>
    %20 = vector.broadcast %2 : vector<1x128xf32> to vector<18x128xf32>
    %21 = arith.addf %19, %20 : vector<18x128xf32>
    %cst_13 = arith.constant 0.000000e+00 : f32
    %22 = vector.broadcast %cst_13 : f32 to vector<18x128xf32>
    %23 = arith.cmpf ogt, %21, %22 : vector<18x128xf32>
    %cst_14 = arith.constant 0.00999999977 : f32
    %24 = vector.broadcast %cst_14 : f32 to vector<18x128xf32>
    %25 = arith.mulf %24, %21 : vector<18x128xf32>
    %26 = arith.select %23, %21, %25 : vector<18x128xi1>, vector<18x128xf32>
    %27 = arith.maximumf %14, %26 : vector<18x128xf32>
    %c2 = arith.constant 2 : index
    %c0_15 = arith.constant 0 : index
    %c0_16 = arith.constant 0 : index
    %28 = vector.load %arg1[%c2, %c0_15, %c0_16] : memref<4x18x128xbf16, #tpu.memory_space<vmem>>, vector<1x18x128xbf16>
    %29 = vector.shape_cast %28 : vector<1x18x128xbf16> to vector<18x128xbf16>
    %cst_17 = arith.constant dense<0.000000e+00> : vector<18x128xf32>
    %30 = tpu.matmul %29, %0, %cst_17 {dimension_numbers = #tpu.dot_dimension_numbers<[1], [0], [0], [1], [0, 0, 1, 1], [], []>} : vector<18x128xbf16>, vector<128x128xbf16>, vector<18x128xf32> -> vector<18x128xf32>
    %31 = vector.broadcast %1 : vector<1x128xf32> to vector<18x128xf32>
    %32 = arith.mulf %30, %31 : vector<18x128xf32>
    %33 = vector.broadcast %2 : vector<1x128xf32> to vector<18x128xf32>
    %34 = arith.addf %32, %33 : vector<18x128xf32>
    %cst_18 = arith.constant 0.000000e+00 : f32
    %35 = vector.broadcast %cst_18 : f32 to vector<18x128xf32>
    %36 = arith.cmpf ogt, %34, %35 : vector<18x128xf32>
    %cst_19 = arith.constant 0.00999999977 : f32
    %37 = vector.broadcast %cst_19 : f32 to vector<18x128xf32>
    %38 = arith.mulf %37, %34 : vector<18x128xf32>
    %39 = arith.select %36, %34, %38 : vector<18x128xi1>, vector<18x128xf32>
    %c3 = arith.constant 3 : index
    %c0_20 = arith.constant 0 : index
    %c0_21 = arith.constant 0 : index
    %40 = vector.load %arg1[%c3, %c0_20, %c0_21] : memref<4x18x128xbf16, #tpu.memory_space<vmem>>, vector<1x18x128xbf16>
    %41 = vector.shape_cast %40 : vector<1x18x128xbf16> to vector<18x128xbf16>
    %cst_22 = arith.constant dense<0.000000e+00> : vector<18x128xf32>
    %42 = tpu.matmul %41, %0, %cst_22 {dimension_numbers = #tpu.dot_dimension_numbers<[1], [0], [0], [1], [0, 0, 1, 1], [], []>} : vector<18x128xbf16>, vector<128x128xbf16>, vector<18x128xf32> -> vector<18x128xf32>
    %43 = vector.broadcast %1 : vector<1x128xf32> to vector<18x128xf32>
    %44 = arith.mulf %42, %43 : vector<18x128xf32>
    %45 = vector.broadcast %2 : vector<1x128xf32> to vector<18x128xf32>
    %46 = arith.addf %44, %45 : vector<18x128xf32>
    %cst_23 = arith.constant 0.000000e+00 : f32
    %47 = vector.broadcast %cst_23 : f32 to vector<18x128xf32>
    %48 = arith.cmpf ogt, %46, %47 : vector<18x128xf32>
    %cst_24 = arith.constant 0.00999999977 : f32
    %49 = vector.broadcast %cst_24 : f32 to vector<18x128xf32>
    %50 = arith.mulf %49, %46 : vector<18x128xf32>
    %51 = arith.select %48, %46, %50 : vector<18x128xi1>, vector<18x128xf32>
    %52 = arith.maximumf %39, %51 : vector<18x128xf32>
    %53 = arith.maximumf %27, %52 : vector<18x128xf32>
    %54 = arith.truncf %53 : vector<18x128xf32> to vector<18x128xbf16>
    %c0_25 = arith.constant 0 : index
    %c0_26 = arith.constant 0 : index
    %55 = vector.load %arg5[%c0_25, %c0_26] : memref<18x128xbf16, #tpu.memory_space<vmem>>, vector<18x128xbf16>
    tpu.vector_store %arg5[%c0_25, %c0_26], %54 {strides = array<i32>} : memref<18x128xbf16, #tpu.memory_space<vmem>>, vector<18x128xbf16>,
    return
  }
  func.func @transform_0(%arg0: i32) -> (i32, i32, i32) {
    %c0_i32 = arith.constant 0 : i32
    %c0_i32_0 = arith.constant 0 : i32
    %c0_i32_1 = arith.constant 0 : i32
    return %c0_i32, %arg0, %c0_i32_0 : i32, i32, i32
  }
  func.func @transform_1(%arg0: i32) -> (i32, i32) {
    %c0_i32 = arith.constant 0 : i32
    %c0_i32_0 = arith.constant 0 : i32
    %c0_i32_1 = arith.constant 0 : i32
    return %c0_i32, %c0_i32_0 : i32, i32
  }
  func.func @transform_2(%arg0: i32) -> (i32, i32) {
    %c0_i32 = arith.constant 0 : i32
    %c0_i32_0 = arith.constant 0 : i32
    %c0_i32_1 = arith.constant 0 : i32
    return %c0_i32, %c0_i32_0 : i32, i32
  }
  func.func @transform_3(%arg0: i32) -> (i32, i32) {
    %c0_i32 = arith.constant 0 : i32
    %c0_i32_0 = arith.constant 0 : i32
    %c0_i32_1 = arith.constant 0 : i32
    return %c0_i32, %c0_i32_0 : i32, i32
  }
  func.func @transform_4(%arg0: i32) -> (i32, i32) {
    %c0_i32 = arith.constant 0 : i32
    %c0_i32_0 = arith.constant 0 : i32
    return %arg0, %c0_i32 : i32, i32
  }
}

module attributes {stable_mosaic.version = 11 : i64} {
  func.func @_fc_softmax_kernel(%arg0: i32, %arg1: memref<2x630xbf16, #tpu.memory_space<vmem>>, %arg2: memref<630x128xbf16, #tpu.memory_space<vmem>>, %arg3: memref<1x128xf32, #tpu.memory_space<vmem>>, %arg4: memref<2x128xf32, #tpu.memory_space<vmem>>) attributes {dimension_semantics = [#tpu.dimension_semantics<parallel>], iteration_bounds = array<i64: 1>, scalar_prefetch = 0 : i64, scratch_operands = 0 : i64, tpu.core_type = #tpu.core_type<tc>, window_params = [{transform_indices = @transform_0, window_bounds = array<i64: 2, 630>}, {pipeline_mode = #tpu.pipeline_mode<synchronous>, transform_indices = @transform_1, window_bounds = array<i64: 630, 128>}, {pipeline_mode = #tpu.pipeline_mode<synchronous>, transform_indices = @transform_2, window_bounds = array<i64: 1, 128>}, {transform_indices = @transform_3, window_bounds = array<i64: 2, 128>}]} {
    %c0 = arith.constant 0 : index
    %c0_0 = arith.constant 0 : index
    %0 = vector.load %arg1[%c0, %c0_0] : memref<2x630xbf16, #tpu.memory_space<vmem>>, vector<2x630xbf16>
    %c0_1 = arith.constant 0 : index
    %c0_2 = arith.constant 0 : index
    %1 = vector.load %arg2[%c0_1, %c0_2] : memref<630x128xbf16, #tpu.memory_space<vmem>>, vector<630x128xbf16>
    %cst = arith.constant dense<0.000000e+00> : vector<2x128xf32>
    %2 = tpu.matmul %0, %1, %cst {dimension_numbers = #tpu.dot_dimension_numbers<[1], [0], [0], [1], [0, 0, 1, 1], [], []>} : vector<2x630xbf16>, vector<630x128xbf16>, vector<2x128xf32> -> vector<2x128xf32>
    %c0_3 = arith.constant 0 : index
    %c0_4 = arith.constant 0 : index
    %3 = vector.load %arg3[%c0_3, %c0_4] : memref<1x128xf32, #tpu.memory_space<vmem>>, vector<1x128xf32>
    %4 = vector.broadcast %3 : vector<1x128xf32> to vector<2x128xf32>
    %5 = arith.addf %2, %4 : vector<2x128xf32>
    %cst_5 = arith.constant dense<0xFF800000> : vector<2xf32>
    %6 = vector.multi_reduction <maximumf>, %5, %cst_5 [1] : vector<2x128xf32> to vector<2xf32>
    %7 = vector.shape_cast %6 : vector<2xf32> to vector<2x1xf32>
    %8 = vector.broadcast %7 : vector<2x1xf32> to vector<2x128xf32>
    %9 = arith.subf %5, %8 : vector<2x128xf32>
    %10 = math.exp %9 : vector<2x128xf32>
    %cst_6 = arith.constant dense<0.000000e+00> : vector<2xf32>
    %11 = vector.multi_reduction <add>, %10, %cst_6 [1] : vector<2x128xf32> to vector<2xf32>
    %12 = vector.shape_cast %11 : vector<2xf32> to vector<2x1xf32>
    %13 = vector.broadcast %12 : vector<2x1xf32> to vector<2x128xf32>
    %14 = arith.divf %10, %13 : vector<2x128xf32>
    %c0_7 = arith.constant 0 : index
    %c0_8 = arith.constant 0 : index
    %15 = vector.load %arg4[%c0_7, %c0_8] : memref<2x128xf32, #tpu.memory_space<vmem>>, vector<2x128xf32>
    tpu.vector_store %arg4[%c0_7, %c0_8], %14 {strides = array<i32>} : memref<2x128xf32, #tpu.memory_space<vmem>>, vector<2x128xf32>,
    return
  }
  func.func @transform_0(%arg0: i32) -> (i32, i32) {
    %c0_i32 = arith.constant 0 : i32
    %c0_i32_0 = arith.constant 0 : i32
    return %arg0, %c0_i32 : i32, i32
  }
  func.func @transform_1(%arg0: i32) -> (i32, i32) {
    %c0_i32 = arith.constant 0 : i32
    %c0_i32_0 = arith.constant 0 : i32
    %c0_i32_1 = arith.constant 0 : i32
    return %c0_i32, %c0_i32_0 : i32, i32
  }
  func.func @transform_2(%arg0: i32) -> (i32, i32) {
    %c0_i32 = arith.constant 0 : i32
    %c0_i32_0 = arith.constant 0 : i32
    %c0_i32_1 = arith.constant 0 : i32
    return %c0_i32, %c0_i32_0 : i32, i32
  }
  func.func @transform_3(%arg0: i32) -> (i32, i32) {
    %c0_i32 = arith.constant 0 : i32
    %c0_i32_0 = arith.constant 0 : i32
    return %arg0, %c0_i32 : i32, i32
  }
}

</mosaic_0001>

<llo_original>
// kernel: cnn_forward.6
$region0: #{cnn_forward.6}
  #allocation0 [shape = 'u32[]', space=smem, size = 0x4, offset = 0x4, fixed_abs, tag = 'smem constant byte address 0x4 - core index']
  #allocation1 [shape = 'u32[144,128]{1,0:T(1,128)}', space=vmem, size = 0x12000, scoped, tag = 'internal scratch']
  %s0 = inlined_call_operand.vmem [shape: bf16[4,18,128], index: 0, kind: input, shape index: {}]
  %s1 = inlined_call_operand.vmem [shape: bf16[128,128], index: 1, kind: input, shape index: {}]
  %s2 = inlined_call_operand.vmem [shape: f32[1,128], index: 2, kind: input, shape index: {}]
  %s3 = inlined_call_operand.vmem [shape: f32[1,128], index: 3, kind: input, shape index: {}]
  %s4 = inlined_call_operand.vmem [shape: bf16[18,128], index: 4, kind: output, shape index: {}]
  %s5 = sld [smem:[#allocation0]]
  $region26: #{cnn_forward.6} parent=0
    _
  %s7 = ssub.s32 1, %s5
  %s8 = scalar_select 0, %s7, %s5
  // Predicated region
  $region2: #{cnn_forward.6} parent=0 // pred_check
    _
  $region3: #{cnn_forward.6} parent=0 // pred_check_branch
    %10 = sbr.rel (0) target = $region5
  $region4: #{cnn_forward.6} parent=0 // pred_region
    _
  $region5: #{cnn_forward.6} parent=0 // pred_fallthru
    _
  // Predicated region
  $region6: #{cnn_forward.6} parent=0 // pred_check
    _
  $region7: #{cnn_forward.6} parent=0 // pred_check_branch
    %12 = sbr.rel (0) target = $region9
  $region8: #{cnn_forward.6} parent=0 // pred_region
    _
  $region9: #{cnn_forward.6} parent=0 // pred_fallthru
    _
  // Predicated region
  $region10: #{cnn_forward.6} parent=0 // pred_check
    _
  $region11: #{cnn_forward.6} parent=0 // pred_check_branch
    %14 = sbr.rel (0) target = $region13
  $region12: #{cnn_forward.6} parent=0 // pred_region
    _
  $region13: #{cnn_forward.6} parent=0 // pred_fallthru
    _
  // Predicated region
  $region14: #{cnn_forward.6} parent=0 // pred_check
    _
  $region15: #{cnn_forward.6} parent=0 // pred_check_branch
    %16 = sbr.rel (0) target = $region17
  $region16: #{cnn_forward.6} parent=0 // pred_region
    _
  $region17: #{cnn_forward.6} parent=0 // pred_fallthru
    _
  %v18 = vld [vmem:[%s1] sm:$0xf]
  %v19 = vld [vmem:[%s1 + $0x4] sm:$0xf]
  %v20 = vld [vmem:[%s1 + $0x8] sm:$0xf]
  %v21 = vld [vmem:[%s1 + $0xc] sm:$0xf]
  %v22 = vld [vmem:[%s1 + $0x10] sm:$0xf]
  %v23 = vld [vmem:[%s1 + $0x14] sm:$0xf]
  %v24 = vld [vmem:[%s1 + $0x18] sm:$0xf]
  %v25 = vld [vmem:[%s1 + $0x1c] sm:$0xf]
  %v26 = vld [vmem:[%s1 + $0x20] sm:$0xf]
  %v27 = vld [vmem:[%s1 + $0x24] sm:$0xf]
  %v28 = vld [vmem:[%s1 + $0x28] sm:$0xf]
  %v29 = vld [vmem:[%s1 + $0x2c] sm:$0xf]
  %v30 = vld [vmem:[%s1 + $0x30] sm:$0xf]
  %v31 = vld [vmem:[%s1 + $0x34] sm:$0xf]
  %v32 = vld [vmem:[%s1 + $0x38] sm:$0xf]
  %v33 = vld [vmem:[%s1 + $0x3c] sm:$0xf]
  %v34 = vld [vmem:[%s2] sm:$0x1]
  %v35 = vld [vmem:[%s3] sm:$0x1]
  %v36 = vld [vmem:[%s0] sm:$0xf]
  %v37 = vld [vmem:[%s0 + $0x4] sm:$0xf]
  %v38 = vld [vmem:[%s0 + $0x8] sm:$0x1]
  %v42 = vunpack.c.l.b16 %v36
  %v43 = vunpack.c.l.b16 %v37
  %v44 = vunpack.c.l.b16 %v38
  %v45 = vpack.c.b16 %v43, %v42
  %v46 = vpack.c.b16 %v44, %v44
  %v65 = vunpack.c.l.b16 %v18
  %v66 = vunpack.c.l.b16 %v19
  %v67 = vunpack.c.l.b16 %v20
  %v68 = vunpack.c.l.b16 %v21
  %v69 = vunpack.c.l.b16 %v22
  %v70 = vunpack.c.l.b16 %v23
  %v71 = vunpack.c.l.b16 %v24
  %v72 = vunpack.c.l.b16 %v25
  %v73 = vunpack.c.l.b16 %v26
  %v74 = vunpack.c.l.b16 %v27
  %v75 = vunpack.c.l.b16 %v28
  %v76 = vunpack.c.l.b16 %v29
  %v77 = vunpack.c.l.b16 %v30
  %v78 = vunpack.c.l.b16 %v31
  %v79 = vunpack.c.l.b16 %v32
  %v80 = vunpack.c.l.b16 %v33
  %v81 = vpack.c.b16 %v66, %v65
  %v82 = vpack.c.b16 %v68, %v67
  %v83 = vpack.c.b16 %v70, %v69
  %v84 = vpack.c.b16 %v72, %v71
  %v85 = vpack.c.b16 %v74, %v73
  %v86 = vpack.c.b16 %v76, %v75
  %v87 = vpack.c.b16 %v78, %v77
  %v88 = vpack.c.b16 %v80, %v79
  %97 = vmatprep.subr.bf16.mxu0 0
  %98 = vmatpush1.bf16.msra.mxu0 %v81
  %99 = vmatprep.subr.bf16.mxu0 0
  %100 = vmatpush1.bf16.msra.mxu0 %v82
  %101 = vmatprep.subr.bf16.mxu0 0
  %102 = vmatpush1.bf16.msra.mxu0 %v83
  %103 = vmatprep.subr.bf16.mxu0 0
  %104 = vmatpush1.bf16.msra.mxu0 %v84
  %105 = vmatprep.subr.bf16.mxu0 0
  %106 = vmatpush1.bf16.msra.mxu0 %v85
  %107 = vmatprep.subr.bf16.mxu0 0
  %108 = vmatpush1.bf16.msra.mxu0 %v86
  %109 = vmatprep.subr.bf16.mxu0 0
  %110 = vmatpush1.bf16.msra.mxu0 %v87
  %111 = vmatprep.subr.bf16.mxu0 0
  %112 = vmatpush1.bf16.msra.mxu0 %v88
  %113 = vmatprep.subr.bf16.mxu0 0
  %114 = vmatpush1.bf16.msra.mxu0 0
  %115 = vmatprep.subr.bf16.mxu0 0
  %116 = vmatpush1.bf16.msra.mxu0 0
  %117 = vmatprep.subr.bf16.mxu0 0
  %118 = vmatpush1.bf16.msra.mxu0 0
  %119 = vmatprep.subr.bf16.mxu0 0
  %120 = vmatpush1.bf16.msra.mxu0 0
  %121 = vmatprep.subr.bf16.mxu0 0
  %122 = vmatpush1.bf16.msra.mxu0 0
  %123 = vmatprep.subr.bf16.mxu0 0
  %124 = vmatpush1.bf16.msra.mxu0 0
  %125 = vmatprep.subr.bf16.mxu0 0
  %126 = vmatpush1.bf16.msra.mxu0 0
  %127 = vmatprep.subr.bf16.mxu0 0
  %128 = vmatpush1.bf16.msra.mxu0 0
  %129 = vmatprep.mubr.bf16.mxu0 0
  %130 = vmatmul.mubr.bf16.gmra.mrb[0].mxu0 %v45
  %v131 = vpop.f32.mrb[0].mxu0
  %v132 = vadd.f32 0.0, %v131
  %v133 = vpop.f32.mrb[0].mxu0
  %v134 = vpop.f32.mrb[0].mxu0
  %v135 = vadd.f32 0.0, %v134
  %v136 = vpop.f32.mrb[0].mxu0
  %137 = vmatprep.mubr.bf16.mxu0 0
  %138 = vmatmul.mubr.bf16.gmra.mrb[0].mxu0 %v46
  %v139 = vpop.f32.mrb[0].mxu0
  %v140 = vadd.f32 0.0, %v139
  %v141 = vpop.f32.mrb[0].mxu0
  %v142 = vpop.f32.mrb[0].mxu0
  %v143 = vpop.f32.mrb[0].mxu0
  %144 = vdwg.mxu0
  %v146 = vlaneseq
  %v147 = vshrl.u32 %v146, 7
  %v148 = vsub.s32 0, %v147
  %v149 = vrot.slane %v34, %v148
  %v151 = vmul.f32 %v132, %v149
  %v152 = vmul.f32 %v135, %v149
  %v153 = vmul.f32 %v140, %v149
  %v155 = vlaneseq
  %v156 = vshrl.u32 %v155, 7
  %v157 = vsub.s32 0, %v156
  %v158 = vrot.slane %v35, %v157
  %v160 = vadd.f32 %v151, %v158
  %v161 = vadd.f32 %v152, %v158
  %v162 = vadd.f32 %v153, %v158
  %vm163 = vcmp.gt.f32.partialorder %v160, 0.0
  %vm164 = vcmp.gt.f32.partialorder %v161, 0.0
  %vm165 = vcmp.gt.f32.partialorder %v162, 0.0
  %v166 = vmul.f32 %v160, 0.01
  %v167 = vmul.f32 %v161, 0.01
  %v168 = vmul.f32 %v162, 0.01
  %v169 = vsel %vm163, %v160, %v166
  %v170 = vsel %vm164, %v161, %v167
  %v171 = vsel %vm165, %v162, %v168
  %s172 = scalar_lea.vmem %s0, 12
  %v173 = vld [vmem:[%s172] sm:$0xf]
  %v174 = vld [vmem:[%s172 + $0x4] sm:$0xf]
  %v175 = vld [vmem:[%s172 + $0x8] sm:$0x1]
  %v179 = vunpack.c.l.b16 %v173
  %v180 = vunpack.c.l.b16 %v174
  %v181 = vunpack.c.l.b16 %v175
  %v182 = vpack.c.b16 %v180, %v179
  %v183 = vpack.c.b16 %v181, %v181
  %186 = vmatprep.subr.bf16.mxu0 0
  %187 = vmatpush1.bf16.msra.mxu0 %v81
  %188 = vmatprep.subr.bf16.mxu0 0
  %189 = vmatpush1.bf16.msra.mxu0 %v82
  %190 = vmatprep.subr.bf16.mxu0 0
  %191 = vmatpush1.bf16.msra.mxu0 %v83
  %192 = vmatprep.subr.bf16.mxu0 0
  %193 = vmatpush1.bf16.msra.mxu0 %v84
  %194 = vmatprep.subr.bf16.mxu0 0
  %195 = vmatpush1.bf16.msra.mxu0 %v85
  %196 = vmatprep.subr.bf16.mxu0 0
  %197 = vmatpush1.bf16.msra.mxu0 %v86
  %198 = vmatprep.subr.bf16.mxu0 0
  %199 = vmatpush1.bf16.msra.mxu0 %v87
  %200 = vmatprep.subr.bf16.mxu0 0
  %201 = vmatpush1.bf16.msra.mxu0 %v88
  %202 = vmatprep.subr.bf16.mxu0 0
  %203 = vmatpush1.bf16.msra.mxu0 0
  %204 = vmatprep.subr.bf16.mxu0 0
  %205 = vmatpush1.bf16.msra.mxu0 0
  %206 = vmatprep.subr.bf16.mxu0 0
  %207 = vmatpush1.bf16.msra.mxu0 0
  %208 = vmatprep.subr.bf16.mxu0 0
  %209 = vmatpush1.bf16.msra.mxu0 0
  %210 = vmatprep.subr.bf16.mxu0 0
  %211 = vmatpush1.bf16.msra.mxu0 0
  %212 = vmatprep.subr.bf16.mxu0 0
  %213 = vmatpush1.bf16.msra.mxu0 0
  %214 = vmatprep.subr.bf16.mxu0 0
  %215 = vmatpush1.bf16.msra.mxu0 0
  %216 = vmatprep.subr.bf16.mxu0 0
  %217 = vmatpush1.bf16.msra.mxu0 0
  %218 = vmatprep.mubr.bf16.mxu0 0
  %219 = vmatmul.mubr.bf16.gmra.mrb[0].mxu0 %v182
  %v220 = vpop.f32.mrb[0].mxu0
  %v221 = vadd.f32 0.0, %v220
  %v222 = vpop.f32.mrb[0].mxu0
  %v223 = vpop.f32.mrb[0].mxu0
  %v224 = vadd.f32 0.0, %v223
  %v225 = vpop.f32.mrb[0].mxu0
  %226 = vmatprep.mubr.bf16.mxu0 0
  %227 = vmatmul.mubr.bf16.gmra.mrb[0].mxu0 %v183
  %v228 = vpop.f32.mrb[0].mxu0
  %v229 = vadd.f32 0.0, %v228
  %v230 = vpop.f32.mrb[0].mxu0
  %v231 = vpop.f32.mrb[0].mxu0
  %v232 = vpop.f32.mrb[0].mxu0
  %233 = vdwg.mxu0
  %v234 = vmul.f32 %v221, %v149
  %v235 = vmul.f32 %v224, %v149
  %v236 = vmul.f32 %v229, %v149
  %v237 = vadd.f32 %v234, %v158
  %v238 = vadd.f32 %v235, %v158
  %v239 = vadd.f32 %v236, %v158
  %vm240 = vcmp.gt.f32.partialorder %v237, 0.0
  %vm241 = vcmp.gt.f32.partialorder %v238, 0.0
  %vm242 = vcmp.gt.f32.partialorder %v239, 0.0
  %v243 = vmul.f32 %v237, 0.01
  %v244 = vmul.f32 %v238, 0.01
  %v245 = vmul.f32 %v239, 0.01
  %v246 = vsel %vm240, %v237, %v243
  %v247 = vsel %vm241, %v238, %v244
  %v248 = vsel %vm242, %v239, %v245
  %v249 = vmax.f32 %v169, %v246
  %v250 = vmax.f32 %v170, %v247
  %v251 = vmax.f32 %v171, %v248
  %s252 = scalar_lea.vmem %s0, 24
  %v253 = vld [vmem:[%s252] sm:$0xf]
  %v254 = vld [vmem:[%s252 + $0x4] sm:$0xf]
  %v255 = vld [vmem:[%s252 + $0x8] sm:$0x1]
  %v259 = vunpack.c.l.b16 %v253
  %v260 = vunpack.c.l.b16 %v254
  %v261 = vunpack.c.l.b16 %v255
  %v262 = vpack.c.b16 %v260, %v259
  %v263 = vpack.c.b16 %v261, %v261
  %266 = vmatprep.subr.bf16.mxu0 0
  %267 = vmatpush1.bf16.msra.mxu0 %v81
  %268 = vmatprep.subr.bf16.mxu0 0
  %269 = vmatpush1.bf16.msra.mxu0 %v82
  %270 = vmatprep.subr.bf16.mxu0 0
  %271 = vmatpush1.bf16.msra.mxu0 %v83
  %272 = vmatprep.subr.bf16.mxu0 0
  %273 = vmatpush1.bf16.msra.mxu0 %v84
  %274 = vmatprep.subr.bf16.mxu0 0
  %275 = vmatpush1.bf16.msra.mxu0 %v85
  %276 = vmatprep.subr.bf16.mxu0 0
  %277 = vmatpush1.bf16.msra.mxu0 %v86
  %278 = vmatprep.subr.bf16.mxu0 0
  %279 = vmatpush1.bf16.msra.mxu0 %v87
  %280 = vmatprep.subr.bf16.mxu0 0
  %281 = vmatpush1.bf16.msra.mxu0 %v88
  %282 = vmatprep.subr.bf16.mxu0 0
  %283 = vmatpush1.bf16.msra.mxu0 0
  %284 = vmatprep.subr.bf16.mxu0 0
  %285 = vmatpush1.bf16.msra.mxu0 0
  %286 = vmatprep.subr.bf16.mxu0 0
  %287 = vmatpush1.bf16.msra.mxu0 0
  %288 = vmatprep.subr.bf16.mxu0 0
  %289 = vmatpush1.bf16.msra.mxu0 0
  %290 = vmatprep.subr.bf16.mxu0 0
  %291 = vmatpush1.bf16.msra.mxu0 0
  %292 = vmatprep.subr.bf16.mxu0 0
  %293 = vmatpush1.bf16.msra.mxu0 0
  %294 = vmatprep.subr.bf16.mxu0 0
  %295 = vmatpush1.bf16.msra.mxu0 0
  %296 = vmatprep.subr.bf16.mxu0 0
  %297 = vmatpush1.bf16.msra.mxu0 0
  %298 = vmatprep.mubr.bf16.mxu0 0
  %299 = vmatmul.mubr.bf16.gmra.mrb[0].mxu0 %v262
  %v300 = vpop.f32.mrb[0].mxu0
  %v301 = vadd.f32 0.0, %v300
  %v302 = vpop.f32.mrb[0].mxu0
  %v303 = vpop.f32.mrb[0].mxu0
  %v304 = vadd.f32 0.0, %v303
  %v305 = vpop.f32.mrb[0].mxu0
  %306 = vmatprep.mubr.bf16.mxu0 0
  %307 = vmatmul.mubr.bf16.gmra.mrb[0].mxu0 %v263
  %v308 = vpop.f32.mrb[0].mxu0
  %v309 = vadd.f32 0.0, %v308
  %v310 = vpop.f32.mrb[0].mxu0
  %v311 = vpop.f32.mrb[0].mxu0
  %v312 = vpop.f32.mrb[0].mxu0
  %313 = vdwg.mxu0
  %v314 = vmul.f32 %v301, %v149
  %v315 = vmul.f32 %v304, %v149
  %v316 = vmul.f32 %v309, %v149
  %v317 = vadd.f32 %v314, %v158
  %v318 = vadd.f32 %v315, %v158
  %v319 = vadd.f32 %v316, %v158
  %vm320 = vcmp.gt.f32.partialorder %v317, 0.0
  %vm321 = vcmp.gt.f32.partialorder %v318, 0.0
  %vm322 = vcmp.gt.f32.partialorder %v319, 0.0
  %v323 = vmul.f32 %v317, 0.01
  %v324 = vmul.f32 %v318, 0.01
  %v325 = vmul.f32 %v319, 0.01
  %v326 = vsel %vm320, %v317, %v323
  %v327 = vsel %vm321, %v318, %v324
  %v328 = vsel %vm322, %v319, %v325
  %s329 = scalar_lea.vmem %s0, 36
  %v330 = vld [vmem:[%s329] sm:$0xf]
  %v331 = vld [vmem:[%s329 + $0x4] sm:$0xf]
  %v332 = vld [vmem:[%s329 + $0x8] sm:$0x1]
  %v336 = vunpack.c.l.b16 %v330
  %v337 = vunpack.c.l.b16 %v331
  %v338 = vunpack.c.l.b16 %v332
  %v339 = vpack.c.b16 %v337, %v336
  %v340 = vpack.c.b16 %v338, %v338
  %343 = vmatprep.subr.bf16.mxu0 0
  %344 = vmatpush1.bf16.msra.mxu0 %v81
  %345 = vmatprep.subr.bf16.mxu0 0
  %346 = vmatpush1.bf16.msra.mxu0 %v82
  %347 = vmatprep.subr.bf16.mxu0 0
  %348 = vmatpush1.bf16.msra.mxu0 %v83
  %349 = vmatprep.subr.bf16.mxu0 0
  %350 = vmatpush1.bf16.msra.mxu0 %v84
  %351 = vmatprep.subr.bf16.mxu0 0
  %352 = vmatpush1.bf16.msra.mxu0 %v85
  %353 = vmatprep.subr.bf16.mxu0 0
  %354 = vmatpush1.bf16.msra.mxu0 %v86
  %355 = vmatprep.subr.bf16.mxu0 0
  %356 = vmatpush1.bf16.msra.mxu0 %v87
  %357 = vmatprep.subr.bf16.mxu0 0
  %358 = vmatpush1.bf16.msra.mxu0 %v88
  %359 = vmatprep.subr.bf16.mxu0 0
  %360 = vmatpush1.bf16.msra.mxu0 0
  %361 = vmatprep.subr.bf16.mxu0 0
  %362 = vmatpush1.bf16.msra.mxu0 0
  %363 = vmatprep.subr.bf16.mxu0 0
  %364 = vmatpush1.bf16.msra.mxu0 0
  %365 = vmatprep.subr.bf16.mxu0 0
  %366 = vmatpush1.bf16.msra.mxu0 0
  %367 = vmatprep.subr.bf16.mxu0 0
  %368 = vmatpush1.bf16.msra.mxu0 0
  %369 = vmatprep.subr.bf16.mxu0 0
  %370 = vmatpush1.bf16.msra.mxu0 0
  %371 = vmatprep.subr.bf16.mxu0 0
  %372 = vmatpush1.bf16.msra.mxu0 0
  %373 = vmatprep.subr.bf16.mxu0 0
  %374 = vmatpush1.bf16.msra.mxu0 0
  %375 = vmatprep.mubr.bf16.mxu0 0
  %376 = vmatmul.mubr.bf16.gmra.mrb[0].mxu0 %v339
  %v377 = vpop.f32.mrb[0].mxu0
  %v378 = vadd.f32 0.0, %v377
  %v379 = vpop.f32.mrb[0].mxu0
  %v380 = vpop.f32.mrb[0].mxu0
  %v381 = vadd.f32 0.0, %v380
  %v382 = vpop.f32.mrb[0].mxu0
  %383 = vmatprep.mubr.bf16.mxu0 0
  %384 = vmatmul.mubr.bf16.gmra.mrb[0].mxu0 %v340
  %v385 = vpop.f32.mrb[0].mxu0
  %v386 = vadd.f32 0.0, %v385
  %v387 = vpop.f32.mrb[0].mxu0
  %v388 = vpop.f32.mrb[0].mxu0
  %v389 = vpop.f32.mrb[0].mxu0
  %390 = vdwg.mxu0
  %v391 = vmul.f32 %v378, %v149
  %v392 = vmul.f32 %v381, %v149
  %v393 = vmul.f32 %v386, %v149
  %v394 = vadd.f32 %v391, %v158
  %v395 = vadd.f32 %v392, %v158
  %v396 = vadd.f32 %v393, %v158
  %vm397 = vcmp.gt.f32.partialorder %v394, 0.0
  %vm398 = vcmp.gt.f32.partialorder %v395, 0.0
  %vm399 = vcmp.gt.f32.partialorder %v396, 0.0
  %v400 = vmul.f32 %v394, 0.01
  %v401 = vmul.f32 %v395, 0.01
  %v402 = vmul.f32 %v396, 0.01
  %v403 = vsel %vm397, %v394, %v400
  %v404 = vsel %vm398, %v395, %v401
  %v405 = vsel %vm399, %v396, %v402
  %v406 = vmax.f32 %v326, %v403
  %v407 = vmax.f32 %v327, %v404
  %v408 = vmax.f32 %v328, %v405
  %v409 = vmax.f32 %v249, %v406
  %v410 = vmax.f32 %v250, %v407
  %v411 = vmax.f32 %v251, %v408
  %v412 = vpack.c.bf16 %v410, %v409
  %v413 = vpack.c.bf16 %v411, %v411
  %v416 = vunpack.c.l.b16 %v412
  %v417 = vunpack.c.h.b16 %v412
  %v418 = vunpack.c.l.b16 %v413
  %v419 = vpack.c.b16 %v416, %v416
  %v420 = vpack.c.b16 %v417, %v417
  %v421 = vpack.c.b16 %v418, %v418
  %425 = vst [vmem:[%s4] sm:$0xf] %v419
  %426 = vst [vmem:[%s4 + $0x4] sm:$0xf] %v420
  %427 = vst [vmem:[%s4 + $0x8] sm:$0x1] %v421
  // Predicated region
  $region18: #{cnn_forward.6} parent=0 // pred_check
    _
  $region19: #{cnn_forward.6} parent=0 // pred_check_branch
    %429 = sbr.rel (0) target = $region21
  $region20: #{cnn_forward.6} parent=0 // pred_region
    _
  $region21: #{cnn_forward.6} parent=0 // pred_fallthru
    _
  // Predicated region
  $region22: #{cnn_forward.6} parent=0 // pred_check
    _
  $region23: #{cnn_forward.6} parent=0 // pred_check_branch
    %431 = sbr.rel (0) target = $region25
  $region24: #{cnn_forward.6} parent=0 // pred_region
    _
  $region25: #{cnn_forward.6} parent=0 // pred_fallthru
    _

// kernel: cnn_forward.5
$region0: #{cnn_forward.5}
  #allocation0 [shape = 'u32[]', space=smem, size = 0x4, offset = 0x4, fixed_abs, tag = 'smem constant byte address 0x4 - core index']
  #allocation1 [shape = 'u32[144,128]{1,0:T(1,128)}', space=vmem, size = 0x12000, scoped, tag = 'internal scratch']
  %s0 = inlined_call_operand.vmem [shape: bf16[4,72,256], index: 0, kind: input, shape index: {}]
  %s1 = inlined_call_operand.vmem [shape: bf16[256,128], index: 1, kind: input, shape index: {}]
  %s2 = inlined_call_operand.vmem [shape: f32[1,128], index: 2, kind: input, shape index: {}]
  %s3 = inlined_call_operand.vmem [shape: f32[1,128], index: 3, kind: input, shape index: {}]
  %s4 = inlined_call_operand.vmem [shape: bf16[72,128], index: 4, kind: output, shape index: {}]
  %s5 = sld [smem:[#allocation0]]
  $region26: #{cnn_forward.5} parent=0
    _
  %s7 = ssub.s32 1, %s5
  %s8 = scalar_select 0, %s7, %s5
  // Predicated region
  $region2: #{cnn_forward.5} parent=0 // pred_check
    _
  $region3: #{cnn_forward.5} parent=0 // pred_check_branch
    %10 = sbr.rel (0) target = $region5
  $region4: #{cnn_forward.5} parent=0 // pred_region
    _
  $region5: #{cnn_forward.5} parent=0 // pred_fallthru
    _
  // Predicated region
  $region6: #{cnn_forward.5} parent=0 // pred_check
    _
  $region7: #{cnn_forward.5} parent=0 // pred_check_branch
    %12 = sbr.rel (0) target = $region9
  $region8: #{cnn_forward.5} parent=0 // pred_region
    _
  $region9: #{cnn_forward.5} parent=0 // pred_fallthru
    _
  // Predicated region
  $region10: #{cnn_forward.5} parent=0 // pred_check
    _
  $region11: #{cnn_forward.5} parent=0 // pred_check_branch
    %14 = sbr.rel (0) target = $region13
  $region12: #{cnn_forward.5} parent=0 // pred_region
    _
  $region13: #{cnn_forward.5} parent=0 // pred_fallthru
    _
  // Predicated region
  $region14: #{cnn_forward.5} parent=0 // pred_check
    _
  $region15: #{cnn_forward.5} parent=0 // pred_check_branch
    %16 = sbr.rel (0) target = $region17
  $region16: #{cnn_forward.5} parent=0 // pred_region
    _
  $region17: #{cnn_forward.5} parent=0 // pred_fallthru
    _
  %v18 = vld [vmem:[%s1] sm:$0xf]
  %v19 = vld [vmem:[%s1 + $0x4] sm:$0xf]
  %v20 = vld [vmem:[%s1 + $0x8] sm:$0xf]
  %v21 = vld [vmem:[%s1 + $0xc] sm:$0xf]
  %v22 = vld [vmem:[%s1 + $0x10] sm:$0xf]
  %v23 = vld [vmem:[%s1 + $0x14] sm:$0xf]
  %v24 = vld [vmem:[%s1 + $0x18] sm:$0xf]
  %v25 = vld [vmem:[%s1 + $0x1c] sm:$0xf]
  %v26 = vld [vmem:[%s1 + $0x20] sm:$0xf]
  %v27 = vld [vmem:[%s1 + $0x24] sm:$0xf]
  %v28 = vld [vmem:[%s1 + $0x28] sm:$0xf]
  %v29 = vld [vmem:[%s1 + $0x2c] sm:$0xf]
  %v30 = vld [vmem:[%s1 + $0x30] sm:$0xf]
  %v31 = vld [vmem:[%s1 + $0x34] sm:$0xf]
  %v32 = vld [vmem:[%s1 + $0x38] sm:$0xf]
  %v33 = vld [vmem:[%s1 + $0x3c] sm:$0xf]
  %v34 = vld [vmem:[%s1 + $0x40] sm:$0xf]
  %v35 = vld [vmem:[%s1 + $0x44] sm:$0xf]
  %v36 = vld [vmem:[%s1 + $0x48] sm:$0xf]
  %v37 = vld [vmem:[%s1 + $0x4c] sm:$0xf]
  %v38 = vld [vmem:[%s1 + $0x50] sm:$0xf]
  %v39 = vld [vmem:[%s1 + $0x54] sm:$0xf]
  %v40 = vld [vmem:[%s1 + $0x58] sm:$0xf]
  %v41 = vld [vmem:[%s1 + $0x5c] sm:$0xf]
  %v42 = vld [vmem:[%s1 + $0x60] sm:$0xf]
  %v43 = vld [vmem:[%s1 + $0x64] sm:$0xf]
  %v44 = vld [vmem:[%s1 + $0x68] sm:$0xf]
  %v45 = vld [vmem:[%s1 + $0x6c] sm:$0xf]
  %v46 = vld [vmem:[%s1 + $0x70] sm:$0xf]
  %v47 = vld [vmem:[%s1 + $0x74] sm:$0xf]
  %v48 = vld [vmem:[%s1 + $0x78] sm:$0xf]
  %v49 = vld [vmem:[%s1 + $0x7c] sm:$0xf]
  %v50 = vld [vmem:[%s2] sm:$0x1]
  %v51 = vld [vmem:[%s3] sm:$0x1]
  %v52 = vld [vmem:[%s0] sm:$0xff]
  %v53 = vld [vmem:[%s0 + $0x8] sm:$0xff]
  %v54 = vld [vmem:[%s0 + $0x10] sm:$0xff]
  %v55 = vld [vmem:[%s0 + $0x18] sm:$0xff]
  %v56 = vld [vmem:[%s0 + $0x20] sm:$0xff]
  %v57 = vld [vmem:[%s0 + $0x28] sm:$0xff]
  %v58 = vld [vmem:[%s0 + $0x30] sm:$0xff]
  %v59 = vld [vmem:[%s0 + $0x38] sm:$0xff]
  %v60 = vld [vmem:[%s0 + $0x40] sm:$0xff]
  %v70 = vunpack.c.l.b16 %v52
  %v71 = vunpack.c.h.b16 %v52
  %v72 = vunpack.c.l.b16 %v53
  %v73 = vunpack.c.h.b16 %v53
  %v74 = vunpack.c.l.b16 %v54
  %v75 = vunpack.c.h.b16 %v54
  %v76 = vunpack.c.l.b16 %v55
  %v77 = vunpack.c.h.b16 %v55
  %v78 = vunpack.c.l.b16 %v56
  %v79 = vunpack.c.h.b16 %v56
  %v80 = vunpack.c.l.b16 %v57
  %v81 = vunpack.c.h.b16 %v57
  %v82 = vunpack.c.l.b16 %v58
  %v83 = vunpack.c.h.b16 %v58
  %v84 = vunpack.c.l.b16 %v59
  %v85 = vunpack.c.h.b16 %v59
  %v86 = vunpack.c.l.b16 %v60
  %v87 = vunpack.c.h.b16 %v60
  %v88 = vpack.c.b16 %v72, %v70
  %v89 = vpack.c.b16 %v73, %v71
  %v90 = vpack.c.b16 %v76, %v74
  %v91 = vpack.c.b16 %v77, %v75
  %v92 = vpack.c.b16 %v80, %v78
  %v93 = vpack.c.b16 %v81, %v79
  %v94 = vpack.c.b16 %v84, %v82
  %v95 = vpack.c.b16 %v85, %v83
  %v96 = vpack.c.b16 %v86, %v86
  %v97 = vpack.c.b16 %v87, %v87
  %v140 = vunpack.c.l.b16 %v18
  %v141 = vunpack.c.l.b16 %v19
  %v142 = vunpack.c.l.b16 %v20
  %v143 = vunpack.c.l.b16 %v21
  %v144 = vunpack.c.l.b16 %v22
  %v145 = vunpack.c.l.b16 %v23
  %v146 = vunpack.c.l.b16 %v24
  %v147 = vunpack.c.l.b16 %v25
  %v148 = vunpack.c.l.b16 %v26
  %v149 = vunpack.c.l.b16 %v27
  %v150 = vunpack.c.l.b16 %v28
  %v151 = vunpack.c.l.b16 %v29
  %v152 = vunpack.c.l.b16 %v30
  %v153 = vunpack.c.l.b16 %v31
  %v154 = vunpack.c.l.b16 %v32
  %v155 = vunpack.c.l.b16 %v33
  %v156 = vunpack.c.l.b16 %v34
  %v157 = vunpack.c.l.b16 %v35
  %v158 = vunpack.c.l.b16 %v36
  %v159 = vunpack.c.l.b16 %v37
  %v160 = vunpack.c.l.b16 %v38
  %v161 = vunpack.c.l.b16 %v39
  %v162 = vunpack.c.l.b16 %v40
  %v163 = vunpack.c.l.b16 %v41
  %v164 = vunpack.c.l.b16 %v42
  %v165 = vunpack.c.l.b16 %v43
  %v166 = vunpack.c.l.b16 %v44
  %v167 = vunpack.c.l.b16 %v45
  %v168 = vunpack.c.l.b16 %v46
  %v169 = vunpack.c.l.b16 %v47
  %v170 = vunpack.c.l.b16 %v48
  %v171 = vunpack.c.l.b16 %v49
  %v172 = vpack.c.b16 %v141, %v140
  %v173 = vpack.c.b16 %v143, %v142
  %v174 = vpack.c.b16 %v145, %v144
  %v175 = vpack.c.b16 %v147, %v146
  %v176 = vpack.c.b16 %v149, %v148
  %v177 = vpack.c.b16 %v151, %v150
  %v178 = vpack.c.b16 %v153, %v152
  %v179 = vpack.c.b16 %v155, %v154
  %v180 = vpack.c.b16 %v157, %v156
  %v181 = vpack.c.b16 %v159, %v158
  %v182 = vpack.c.b16 %v161, %v160
  %v183 = vpack.c.b16 %v163, %v162
  %v184 = vpack.c.b16 %v165, %v164
  %v185 = vpack.c.b16 %v167, %v166
  %v186 = vpack.c.b16 %v169, %v168
  %v187 = vpack.c.b16 %v171, %v170
  %204 = vmatprep.subr.bf16.mxu0 0
  %205 = vmatpush1.bf16.msra.mxu0 %v172
  %206 = vmatprep.subr.bf16.mxu0 0
  %207 = vmatpush1.bf16.msra.mxu0 %v173
  %208 = vmatprep.subr.bf16.mxu0 0
  %209 = vmatpush1.bf16.msra.mxu0 %v174
  %210 = vmatprep.subr.bf16.mxu0 0
  %211 = vmatpush1.bf16.msra.mxu0 %v175
  %212 = vmatprep.subr.bf16.mxu0 0
  %213 = vmatpush1.bf16.msra.mxu0 %v176
  %214 = vmatprep.subr.bf16.mxu0 0
  %215 = vmatpush1.bf16.msra.mxu0 %v177
  %216 = vmatprep.subr.bf16.mxu0 0
  %217 = vmatpush1.bf16.msra.mxu0 %v178
  %218 = vmatprep.subr.bf16.mxu0 0
  %219 = vmatpush1.bf16.msra.mxu0 %v179
  %220 = vmatprep.subr.bf16.mxu0 0
  %221 = vmatpush1.bf16.msra.mxu0 %v180
  %222 = vmatprep.subr.bf16.mxu0 0
  %223 = vmatpush1.bf16.msra.mxu0 %v181
  %224 = vmatprep.subr.bf16.mxu0 0
  %225 = vmatpush1.bf16.msra.mxu0 %v182
  %226 = vmatprep.subr.bf16.mxu0 0
  %227 = vmatpush1.bf16.msra.mxu0 %v183
  %228 = vmatprep.subr.bf16.mxu0 0
  %229 = vmatpush1.bf16.msra.mxu0 %v184
  %230 = vmatprep.subr.bf16.mxu0 0
  %231 = vmatpush1.bf16.msra.mxu0 %v185
  %232 = vmatprep.subr.bf16.mxu0 0
  %233 = vmatpush1.bf16.msra.mxu0 %v186
  %234 = vmatprep.subr.bf16.mxu0 0
  %235 = vmatpush1.bf16.msra.mxu0 %v187
  %236 = vmatprep.mubr.bf16.mxu0 %v89
  %237 = vmatmul.mubr.bf16.gmra.mrb[0].mxu0 %v88
  %v238 = vpop.f32.mrb[0].mxu0
  %v239 = vadd.f32 0.0, %v238
  %v240 = vpop.f32.mrb[0].mxu0
  %v241 = vpop.f32.mrb[0].mxu0
  %v242 = vadd.f32 0.0, %v241
  %v243 = vpop.f32.mrb[0].mxu0
  %244 = vmatprep.mubr.bf16.mxu0 %v91
  %245 = vmatmul.mubr.bf16.gmra.mrb[0].mxu0 %v90
  %v246 = vpop.f32.mrb[0].mxu0
  %v247 = vadd.f32 0.0, %v246
  %v248 = vpop.f32.mrb[0].mxu0
  %v249 = vpop.f32.mrb[0].mxu0
  %v250 = vadd.f32 0.0, %v249
  %v251 = vpop.f32.mrb[0].mxu0
  %252 = vmatprep.mubr.bf16.mxu0 %v93
  %253 = vmatmul.mubr.bf16.gmra.mrb[0].mxu0 %v92
  %v254 = vpop.f32.mrb[0].mxu0
  %v255 = vadd.f32 0.0, %v254
  %v256 = vpop.f32.mrb[0].mxu0
  %v257 = vpop.f32.mrb[0].mxu0
  %v258 = vadd.f32 0.0, %v257
  %v259 = vpop.f32.mrb[0].mxu0
  %260 = vmatprep.mubr.bf16.mxu0 %v95
  %261 = vmatmul.mubr.bf16.gmra.mrb[0].mxu0 %v94
  %v262 = vpop.f32.mrb[0].mxu0
  %v263 = vadd.f32 0.0, %v262
  %v264 = vpop.f32.mrb[0].mxu0
  %v265 = vpop.f32.mrb[0].mxu0
  %v266 = vadd.f32 0.0, %v265
  %v267 = vpop.f32.mrb[0].mxu0
  %268 = vmatprep.mubr.bf16.mxu0 %v97
  %269 = vmatmul.mubr.bf16.gmra.mrb[0].mxu0 %v96
  %v270 = vpop.f32.mrb[0].mxu0
  %v271 = vadd.f32 0.0, %v270
  %v272 = vpop.f32.mrb[0].mxu0
  %v273 = vpop.f32.mrb[0].mxu0
  %v274 = vpop.f32.mrb[0].mxu0
  %275 = vdwg.mxu0
  %v277 = vlaneseq
  %v278 = vshrl.u32 %v277, 7
  %v279 = vsub.s32 0, %v278
  %v280 = vrot.slane %v50, %v279
  %v282 = vmul.f32 %v239, %v280
  %v283 = vmul.f32 %v242, %v280
  %v284 = vmul.f32 %v247, %v280
  %v285 = vmul.f32 %v250, %v280
  %v286 = vmul.f32 %v255, %v280
  %v287 = vmul.f32 %v258, %v280
  %v288 = vmul.f32 %v263, %v280
  %v289 = vmul.f32 %v266, %v280
  %v290 = vmul.f32 %v271, %v280
  %v292 = vlaneseq
  %v293 = vshrl.u32 %v292, 7
  %v294 = vsub.s32 0, %v293
  %v295 = vrot.slane %v51, %v294
  %v297 = vadd.f32 %v282, %v295
  %v298 = vadd.f32 %v283, %v295
  %v299 = vadd.f32 %v284, %v295
  %v300 = vadd.f32 %v285, %v295
  %v301 = vadd.f32 %v286, %v295
  %v302 = vadd.f32 %v287, %v295
  %v303 = vadd.f32 %v288, %v295
  %v304 = vadd.f32 %v289, %v295
  %v305 = vadd.f32 %v290, %v295
  %vm306 = vcmp.gt.f32.partialorder %v297, 0.0
  %vm307 = vcmp.gt.f32.partialorder %v298, 0.0
  %vm308 = vcmp.gt.f32.partialorder %v299, 0.0
  %vm309 = vcmp.gt.f32.partialorder %v300, 0.0
  %vm310 = vcmp.gt.f32.partialorder %v301, 0.0
  %vm311 = vcmp.gt.f32.partialorder %v302, 0.0
  %vm312 = vcmp.gt.f32.partialorder %v303, 0.0
  %vm313 = vcmp.gt.f32.partialorder %v304, 0.0
  %vm314 = vcmp.gt.f32.partialorder %v305, 0.0
  %v315 = vmul.f32 %v297, 0.01
  %v316 = vmul.f32 %v298, 0.01
  %v317 = vmul.f32 %v299, 0.01
  %v318 = vmul.f32 %v300, 0.01
  %v319 = vmul.f32 %v301, 0.01
  %v320 = vmul.f32 %v302, 0.01
  %v321 = vmul.f32 %v303, 0.01
  %v322 = vmul.f32 %v304, 0.01
  %v323 = vmul.f32 %v305, 0.01
  %v324 = vsel %vm306, %v297, %v315
  %v325 = vsel %vm307, %v298, %v316
  %v326 = vsel %vm308, %v299, %v317
  %v327 = vsel %vm309, %v300, %v318
  %v328 = vsel %vm310, %v301, %v319
  %v329 = vsel %vm311, %v302, %v320
  %v330 = vsel %vm312, %v303, %v321
  %v331 = vsel %vm313, %v304, %v322
  %v332 = vsel %vm314, %v305, %v323
  %s333 = scalar_lea.vmem %s0, 72
  %v334 = vld [vmem:[%s333] sm:$0xff]
  %v335 = vld [vmem:[%s333 + $0x8] sm:$0xff]
  %v336 = vld [vmem:[%s333 + $0x10] sm:$0xff]
  %v337 = vld [vmem:[%s333 + $0x18] sm:$0xff]
  %v338 = vld [vmem:[%s333 + $0x20] sm:$0xff]
  %v339 = vld [vmem:[%s333 + $0x28] sm:$0xff]
  %v340 = vld [vmem:[%s333 + $0x30] sm:$0xff]
  %v341 = vld [vmem:[%s333 + $0x38] sm:$0xff]
  %v342 = vld [vmem:[%s333 + $0x40] sm:$0xff]
  %v352 = vunpack.c.l.b16 %v334
  %v353 = vunpack.c.h.b16 %v334
  %v354 = vunpack.c.l.b16 %v335
  %v355 = vunpack.c.h.b16 %v335
  %v356 = vunpack.c.l.b16 %v336
  %v357 = vunpack.c.h.b16 %v336
  %v358 = vunpack.c.l.b16 %v337
  %v359 = vunpack.c.h.b16 %v337
  %v360 = vunpack.c.l.b16 %v338
  %v361 = vunpack.c.h.b16 %v338
  %v362 = vunpack.c.l.b16 %v339
  %v363 = vunpack.c.h.b16 %v339
  %v364 = vunpack.c.l.b16 %v340
  %v365 = vunpack.c.h.b16 %v340
  %v366 = vunpack.c.l.b16 %v341
  %v367 = vunpack.c.h.b16 %v341
  %v368 = vunpack.c.l.b16 %v342
  %v369 = vunpack.c.h.b16 %v342
  %v370 = vpack.c.b16 %v354, %v352
  %v371 = vpack.c.b16 %v355, %v353
  %v372 = vpack.c.b16 %v358, %v356
  %v373 = vpack.c.b16 %v359, %v357
  %v374 = vpack.c.b16 %v362, %v360
  %v375 = vpack.c.b16 %v363, %v361
  %v376 = vpack.c.b16 %v366, %v364
  %v377 = vpack.c.b16 %v367, %v365
  %v378 = vpack.c.b16 %v368, %v368
  %v379 = vpack.c.b16 %v369, %v369
  %390 = vmatprep.subr.bf16.mxu0 0
  %391 = vmatpush1.bf16.msra.mxu0 %v172
  %392 = vmatprep.subr.bf16.mxu0 0
  %393 = vmatpush1.bf16.msra.mxu0 %v173
  %394 = vmatprep.subr.bf16.mxu0 0
  %395 = vmatpush1.bf16.msra.mxu0 %v174
  %396 = vmatprep.subr.bf16.mxu0 0
  %397 = vmatpush1.bf16.msra.mxu0 %v175
  %398 = vmatprep.subr.bf16.mxu0 0
  %399 = vmatpush1.bf16.msra.mxu0 %v176
  %400 = vmatprep.subr.bf16.mxu0 0
  %401 = vmatpush1.bf16.msra.mxu0 %v177
  %402 = vmatprep.subr.bf16.mxu0 0
  %403 = vmatpush1.bf16.msra.mxu0 %v178
  %404 = vmatprep.subr.bf16.mxu0 0
  %405 = vmatpush1.bf16.msra.mxu0 %v179
  %406 = vmatprep.subr.bf16.mxu0 0
  %407 = vmatpush1.bf16.msra.mxu0 %v180
  %408 = vmatprep.subr.bf16.mxu0 0
  %409 = vmatpush1.bf16.msra.mxu0 %v181
  %410 = vmatprep.subr.bf16.mxu0 0
  %411 = vmatpush1.bf16.msra.mxu0 %v182
  %412 = vmatprep.subr.bf16.mxu0 0
  %413 = vmatpush1.bf16.msra.mxu0 %v183
  %414 = vmatprep.subr.bf16.mxu0 0
  %415 = vmatpush1.bf16.msra.mxu0 %v184
  %416 = vmatprep.subr.bf16.mxu0 0
  %417 = vmatpush1.bf16.msra.mxu0 %v185
  %418 = vmatprep.subr.bf16.mxu0 0
  %419 = vmatpush1.bf16.msra.mxu0 %v186
  %420 = vmatprep.subr.bf16.mxu0 0
  %421 = vmatpush1.bf16.msra.mxu0 %v187
  %422 = vmatprep.mubr.bf16.mxu0 %v371
  %423 = vmatmul.mubr.bf16.gmra.mrb[0].mxu0 %v370
  %v424 = vpop.f32.mrb[0].mxu0
  %v425 = vadd.f32 0.0, %v424
  %v426 = vpop.f32.mrb[0].mxu0
  %v427 = vpop.f32.mrb[0].mxu0
  %v428 = vadd.f32 0.0, %v427
  %v429 = vpop.f32.mrb[0].mxu0
  %430 = vmatprep.mubr.bf16.mxu0 %v373
  %431 = vmatmul.mubr.bf16.gmra.mrb[0].mxu0 %v372
  %v432 = vpop.f32.mrb[0].mxu0
  %v433 = vadd.f32 0.0, %v432
  %v434 = vpop.f32.mrb[0].mxu0
  %v435 = vpop.f32.mrb[0].mxu0
  %v436 = vadd.f32 0.0, %v435
  %v437 = vpop.f32.mrb[0].mxu0
  %438 = vmatprep.mubr.bf16.mxu0 %v375
  %439 = vmatmul.mubr.bf16.gmra.mrb[0].mxu0 %v374
  %v440 = vpop.f32.mrb[0].mxu0
  %v441 = vadd.f32 0.0, %v440
  %v442 = vpop.f32.mrb[0].mxu0
  %v443 = vpop.f32.mrb[0].mxu0
  %v444 = vadd.f32 0.0, %v443
  %v445 = vpop.f32.mrb[0].mxu0
  %446 = vmatprep.mubr.bf16.mxu0 %v377
  %447 = vmatmul.mubr.bf16.gmra.mrb[0].mxu0 %v376
  %v448 = vpop.f32.mrb[0].mxu0
  %v449 = vadd.f32 0.0, %v448
  %v450 = vpop.f32.mrb[0].mxu0
  %v451 = vpop.f32.mrb[0].mxu0
  %v452 = vadd.f32 0.0, %v451
  %v453 = vpop.f32.mrb[0].mxu0
  %454 = vmatprep.mubr.bf16.mxu0 %v379
  %455 = vmatmul.mubr.bf16.gmra.mrb[0].mxu0 %v378
  %v456 = vpop.f32.mrb[0].mxu0
  %v457 = vadd.f32 0.0, %v456
  %v458 = vpop.f32.mrb[0].mxu0
  %v459 = vpop.f32.mrb[0].mxu0
  %v460 = vpop.f32.mrb[0].mxu0
  %461 = vdwg.mxu0
  %v462 = vmul.f32 %v425, %v280
  %v463 = vmul.f32 %v428, %v280
  %v464 = vmul.f32 %v433, %v280
  %v465 = vmul.f32 %v436, %v280
  %v466 = vmul.f32 %v441, %v280
  %v467 = vmul.f32 %v444, %v280
  %v468 = vmul.f32 %v449, %v280
  %v469 = vmul.f32 %v452, %v280
  %v470 = vmul.f32 %v457, %v280
  %v471 = vadd.f32 %v462, %v295
  %v472 = vadd.f32 %v463, %v295
  %v473 = vadd.f32 %v464, %v295
  %v474 = vadd.f32 %v465, %v295
  %v475 = vadd.f32 %v466, %v295
  %v476 = vadd.f32 %v467, %v295
  %v477 = vadd.f32 %v468, %v295
  %v478 = vadd.f32 %v469, %v295
  %v479 = vadd.f32 %v470, %v295
  %vm480 = vcmp.gt.f32.partialorder %v471, 0.0
  %vm481 = vcmp.gt.f32.partialorder %v472, 0.0
  %vm482 = vcmp.gt.f32.partialorder %v473, 0.0
  %vm483 = vcmp.gt.f32.partialorder %v474, 0.0
  %vm484 = vcmp.gt.f32.partialorder %v475, 0.0
  %vm485 = vcmp.gt.f32.partialorder %v476, 0.0
  %vm486 = vcmp.gt.f32.partialorder %v477, 0.0
  %vm487 = vcmp.gt.f32.partialorder %v478, 0.0
  %vm488 = vcmp.gt.f32.partialorder %v479, 0.0
  %v489 = vmul.f32 %v471, 0.01
  %v490 = vmul.f32 %v472, 0.01
  %v491 = vmul.f32 %v473, 0.01
  %v492 = vmul.f32 %v474, 0.01
  %v493 = vmul.f32 %v475, 0.01
  %v494 = vmul.f32 %v476, 0.01
  %v495 = vmul.f32 %v477, 0.01
  %v496 = vmul.f32 %v478, 0.01
  %v497 = vmul.f32 %v479, 0.01
  %v498 = vsel %vm480, %v471, %v489
  %v499 = vsel %vm481, %v472, %v490
  %v500 = vsel %vm482, %v473, %v491
  %v501 = vsel %vm483, %v474, %v492
  %v502 = vsel %vm484, %v475, %v493
  %v503 = vsel %vm485, %v476, %v494
  %v504 = vsel %vm486, %v477, %v495
  %v505 = vsel %vm487, %v478, %v496
  %v506 = vsel %vm488, %v479, %v497
  %v507 = vmax.f32 %v324, %v498
  %v508 = vmax.f32 %v325, %v499
  %v509 = vmax.f32 %v326, %v500
  %v510 = vmax.f32 %v327, %v501
  %v511 = vmax.f32 %v328, %v502
  %v512 = vmax.f32 %v329, %v503
  %v513 = vmax.f32 %v330, %v504
  %v514 = vmax.f32 %v331, %v505
  %v515 = vmax.f32 %v332, %v506
  %s516 = scalar_lea.vmem %s0, 144
  %v517 = vld [vmem:[%s516] sm:$0xff]
  %v518 = vld [vmem:[%s516 + $0x8] sm:$0xff]
  %v519 = vld [vmem:[%s516 + $0x10] sm:$0xff]
  %v520 = vld [vmem:[%s516 + $0x18] sm:$0xff]
  %v521 = vld [vmem:[%s516 + $0x20] sm:$0xff]
  %v522 = vld [vmem:[%s516 + $0x28] sm:$0xff]
  %v523 = vld [vmem:[%s516 + $0x30] sm:$0xff]
  %v524 = vld [vmem:[%s516 + $0x38] sm:$0xff]
  %v525 = vld [vmem:[%s516 + $0x40] sm:$0xff]
  %v535 = vunpack.c.l.b16 %v517
  %v536 = vunpack.c.h.b16 %v517
  %v537 = vunpack.c.l.b16 %v518
  %v538 = vunpack.c.h.b16 %v518
  %v539 = vunpack.c.l.b16 %v519
  %v540 = vunpack.c.h.b16 %v519
  %v541 = vunpack.c.l.b16 %v520
  %v542 = vunpack.c.h.b16 %v520
  %v543 = vunpack.c.l.b16 %v521
  %v544 = vunpack.c.h.b16 %v521
  %v545 = vunpack.c.l.b16 %v522
  %v546 = vunpack.c.h.b16 %v522
  %v547 = vunpack.c.l.b16 %v523
  %v548 = vunpack.c.h.b16 %v523
  %v549 = vunpack.c.l.b16 %v524
  %v550 = vunpack.c.h.b16 %v524
  %v551 = vunpack.c.l.b16 %v525
  %v552 = vunpack.c.h.b16 %v525
  %v553 = vpack.c.b16 %v537, %v535
  %v554 = vpack.c.b16 %v538, %v536
  %v555 = vpack.c.b16 %v541, %v539
  %v556 = vpack.c.b16 %v542, %v540
  %v557 = vpack.c.b16 %v545, %v543
  %v558 = vpack.c.b16 %v546, %v544
  %v559 = vpack.c.b16 %v549, %v547
  %v560 = vpack.c.b16 %v550, %v548
  %v561 = vpack.c.b16 %v551, %v551
  %v562 = vpack.c.b16 %v552, %v552
  %573 = vmatprep.subr.bf16.mxu0 0
  %574 = vmatpush1.bf16.msra.mxu0 %v172
  %575 = vmatprep.subr.bf16.mxu0 0
  %576 = vmatpush1.bf16.msra.mxu0 %v173
  %577 = vmatprep.subr.bf16.mxu0 0
  %578 = vmatpush1.bf16.msra.mxu0 %v174
  %579 = vmatprep.subr.bf16.mxu0 0
  %580 = vmatpush1.bf16.msra.mxu0 %v175
  %581 = vmatprep.subr.bf16.mxu0 0
  %582 = vmatpush1.bf16.msra.mxu0 %v176
  %583 = vmatprep.subr.bf16.mxu0 0
  %584 = vmatpush1.bf16.msra.mxu0 %v177
  %585 = vmatprep.subr.bf16.mxu0 0
  %586 = vmatpush1.bf16.msra.mxu0 %v178
  %587 = vmatprep.subr.bf16.mxu0 0
  %588 = vmatpush1.bf16.msra.mxu0 %v179
  %589 = vmatprep.subr.bf16.mxu0 0
  %590 = vmatpush1.bf16.msra.mxu0 %v180
  %591 = vmatprep.subr.bf16.mxu0 0
  %592 = vmatpush1.bf16.msra.mxu0 %v181
  %593 = vmatprep.subr.bf16.mxu0 0
  %594 = vmatpush1.bf16.msra.mxu0 %v182
  %595 = vmatprep.subr.bf16.mxu0 0
  %596 = vmatpush1.bf16.msra.mxu0 %v183
  %597 = vmatprep.subr.bf16.mxu0 0
  %598 = vmatpush1.bf16.msra.mxu0 %v184
  %599 = vmatprep.subr.bf16.mxu0 0
  %600 = vmatpush1.bf16.msra.mxu0 %v185
  %601 = vmatprep.subr.bf16.mxu0 0
  %602 = vmatpush1.bf16.msra.mxu0 %v186
  %603 = vmatprep.subr.bf16.mxu0 0
  %604 = vmatpush1.bf16.msra.mxu0 %v187
  %605 = vmatprep.mubr.bf16.mxu0 %v554
  %606 = vmatmul.mubr.bf16.gmra.mrb[0].mxu0 %v553
  %v607 = vpop.f32.mrb[0].mxu0
  %v608 = vadd.f32 0.0, %v607
  %v609 = vpop.f32.mrb[0].mxu0
  %v610 = vpop.f32.mrb[0].mxu0
  %v611 = vadd.f32 0.0, %v610
  %v612 = vpop.f32.mrb[0].mxu0
  %613 = vmatprep.mubr.bf16.mxu0 %v556
  %614 = vmatmul.mubr.bf16.gmra.mrb[0].mxu0 %v555
  %v615 = vpop.f32.mrb[0].mxu0
  %v616 = vadd.f32 0.0, %v615
  %v617 = vpop.f32.mrb[0].mxu0
  %v618 = vpop.f32.mrb[0].mxu0
  %v619 = vadd.f32 0.0, %v618
  %v620 = vpop.f32.mrb[0].mxu0
  %621 = vmatprep.mubr.bf16.mxu0 %v558
  %622 = vmatmul.mubr.bf16.gmra.mrb[0].mxu0 %v557
  %v623 = vpop.f32.mrb[0].mxu0
  %v624 = vadd.f32 0.0, %v623
  %v625 = vpop.f32.mrb[0].mxu0
  %v626 = vpop.f32.mrb[0].mxu0
  %v627 = vadd.f32 0.0, %v626
  %v628 = vpop.f32.mrb[0].mxu0
  %629 = vmatprep.mubr.bf16.mxu0 %v560
  %630 = vmatmul.mubr.bf16.gmra.mrb[0].mxu0 %v559
  %v631 = vpop.f32.mrb[0].mxu0
  %v632 = vadd.f32 0.0, %v631
  %v633 = vpop.f32.mrb[0].mxu0
  %v634 = vpop.f32.mrb[0].mxu0
  %v635 = vadd.f32 0.0, %v634
  %v636 = vpop.f32.mrb[0].mxu0
  %637 = vmatprep.mubr.bf16.mxu0 %v562
  %638 = vmatmul.mubr.bf16.gmra.mrb[0].mxu0 %v561
  %v639 = vpop.f32.mrb[0].mxu0
  %v640 = vadd.f32 0.0, %v639
  %v641 = vpop.f32.mrb[0].mxu0
  %v642 = vpop.f32.mrb[0].mxu0
  %v643 = vpop.f32.mrb[0].mxu0
  %644 = vdwg.mxu0
  %v645 = vmul.f32 %v608, %v280
  %v646 = vmul.f32 %v611, %v280
  %v647 = vmul.f32 %v616, %v280
  %v648 = vmul.f32 %v619, %v280
  %v649 = vmul.f32 %v624, %v280
  %v650 = vmul.f32 %v627, %v280
  %v651 = vmul.f32 %v632, %v280
  %v652 = vmul.f32 %v635, %v280
  %v653 = vmul.f32 %v640, %v280
  %v654 = vadd.f32 %v645, %v295
  %v655 = vadd.f32 %v646, %v295
  %v656 = vadd.f32 %v647, %v295
  %v657 = vadd.f32 %v648, %v295
  %v658 = vadd.f32 %v649, %v295
  %v659 = vadd.f32 %v650, %v295
  %v660 = vadd.f32 %v651, %v295
  %v661 = vadd.f32 %v652, %v295
  %v662 = vadd.f32 %v653, %v295
  %vm663 = vcmp.gt.f32.partialorder %v654, 0.0
  %vm664 = vcmp.gt.f32.partialorder %v655, 0.0
  %vm665 = vcmp.gt.f32.partialorder %v656, 0.0
  %vm666 = vcmp.gt.f32.partialorder %v657, 0.0
  %vm667 = vcmp.gt.f32.partialorder %v658, 0.0
  %vm668 = vcmp.gt.f32.partialorder %v659, 0.0
  %vm669 = vcmp.gt.f32.partialorder %v660, 0.0
  %vm670 = vcmp.gt.f32.partialorder %v661, 0.0
  %vm671 = vcmp.gt.f32.partialorder %v662, 0.0
  %v672 = vmul.f32 %v654, 0.01
  %v673 = vmul.f32 %v655, 0.01
  %v674 = vmul.f32 %v656, 0.01
  %v675 = vmul.f32 %v657, 0.01
  %v676 = vmul.f32 %v658, 0.01
  %v677 = vmul.f32 %v659, 0.01
  %v678 = vmul.f32 %v660, 0.01
  %v679 = vmul.f32 %v661, 0.01
  %v680 = vmul.f32 %v662, 0.01
  %v681 = vsel %vm663, %v654, %v672
  %v682 = vsel %vm664, %v655, %v673
  %v683 = vsel %vm665, %v656, %v674
  %v684 = vsel %vm666, %v657, %v675
  %v685 = vsel %vm667, %v658, %v676
  %v686 = vsel %vm668, %v659, %v677
  %v687 = vsel %vm669, %v660, %v678
  %v688 = vsel %vm670, %v661, %v679
  %v689 = vsel %vm671, %v662, %v680
  %s690 = scalar_lea.vmem %s0, 216
  %v691 = vld [vmem:[%s690] sm:$0xff]
  %v692 = vld [vmem:[%s690 + $0x8] sm:$0xff]
  %v693 = vld [vmem:[%s690 + $0x10] sm:$0xff]
  %v694 = vld [vmem:[%s690 + $0x18] sm:$0xff]
  %v695 = vld [vmem:[%s690 + $0x20] sm:$0xff]
  %v696 = vld [vmem:[%s690 + $0x28] sm:$0xff]
  %v697 = vld [vmem:[%s690 + $0x30] sm:$0xff]
  %v698 = vld [vmem:[%s690 + $0x38] sm:$0xff]
  %v699 = vld [vmem:[%s690 + $0x40] sm:$0xff]
  %v709 = vunpack.c.l.b16 %v691
  %v710 = vunpack.c.h.b16 %v691
  %v711 = vunpack.c.l.b16 %v692
  %v712 = vunpack.c.h.b16 %v692
  %v713 = vunpack.c.l.b16 %v693
  %v714 = vunpack.c.h.b16 %v693
  %v715 = vunpack.c.l.b16 %v694
  %v716 = vunpack.c.h.b16 %v694
  %v717 = vunpack.c.l.b16 %v695
  %v718 = vunpack.c.h.b16 %v695
  %v719 = vunpack.c.l.b16 %v696
  %v720 = vunpack.c.h.b16 %v696
  %v721 = vunpack.c.l.b16 %v697
  %v722 = vunpack.c.h.b16 %v697
  %v723 = vunpack.c.l.b16 %v698
  %v724 = vunpack.c.h.b16 %v698
  %v725 = vunpack.c.l.b16 %v699
  %v726 = vunpack.c.h.b16 %v699
  %v727 = vpack.c.b16 %v711, %v709
  %v728 = vpack.c.b16 %v712, %v710
  %v729 = vpack.c.b16 %v715, %v713
  %v730 = vpack.c.b16 %v716, %v714
  %v731 = vpack.c.b16 %v719, %v717
  %v732 = vpack.c.b16 %v720, %v718
  %v733 = vpack.c.b16 %v723, %v721
  %v734 = vpack.c.b16 %v724, %v722
  %v735 = vpack.c.b16 %v725, %v725
  %v736 = vpack.c.b16 %v726, %v726
  %747 = vmatprep.subr.bf16.mxu0 0
  %748 = vmatpush1.bf16.msra.mxu0 %v172
  %749 = vmatprep.subr.bf16.mxu0 0
  %750 = vmatpush1.bf16.msra.mxu0 %v173
  %751 = vmatprep.subr.bf16.mxu0 0
  %752 = vmatpush1.bf16.msra.mxu0 %v174
  %753 = vmatprep.subr.bf16.mxu0 0
  %754 = vmatpush1.bf16.msra.mxu0 %v175
  %755 = vmatprep.subr.bf16.mxu0 0
  %756 = vmatpush1.bf16.msra.mxu0 %v176
  %757 = vmatprep.subr.bf16.mxu0 0
  %758 = vmatpush1.bf16.msra.mxu0 %v177
  %759 = vmatprep.subr.bf16.mxu0 0
  %760 = vmatpush1.bf16.msra.mxu0 %v178
  %761 = vmatprep.subr.bf16.mxu0 0
  %762 = vmatpush1.bf16.msra.mxu0 %v179
  %763 = vmatprep.subr.bf16.mxu0 0
  %764 = vmatpush1.bf16.msra.mxu0 %v180
  %765 = vmatprep.subr.bf16.mxu0 0
  %766 = vmatpush1.bf16.msra.mxu0 %v181
  %767 = vmatprep.subr.bf16.mxu0 0
  %768 = vmatpush1.bf16.msra.mxu0 %v182
  %769 = vmatprep.subr.bf16.mxu0 0
  %770 = vmatpush1.bf16.msra.mxu0 %v183
  %771 = vmatprep.subr.bf16.mxu0 0
  %772 = vmatpush1.bf16.msra.mxu0 %v184
  %773 = vmatprep.subr.bf16.mxu0 0
  %774 = vmatpush1.bf16.msra.mxu0 %v185
  %775 = vmatprep.subr.bf16.mxu0 0
  %776 = vmatpush1.bf16.msra.mxu0 %v186
  %777 = vmatprep.subr.bf16.mxu0 0
  %778 = vmatpush1.bf16.msra.mxu0 %v187
  %779 = vmatprep.mubr.bf16.mxu0 %v728
  %780 = vmatmul.mubr.bf16.gmra.mrb[0].mxu0 %v727
  %v781 = vpop.f32.mrb[0].mxu0
  %v782 = vadd.f32 0.0, %v781
  %v783 = vpop.f32.mrb[0].mxu0
  %v784 = vpop.f32.mrb[0].mxu0
  %v785 = vadd.f32 0.0, %v784
  %v786 = vpop.f32.mrb[0].mxu0
  %787 = vmatprep.mubr.bf16.mxu0 %v730
  %788 = vmatmul.mubr.bf16.gmra.mrb[0].mxu0 %v729
  %v789 = vpop.f32.mrb[0].mxu0
  %v790 = vadd.f32 0.0, %v789
  %v791 = vpop.f32.mrb[0].mxu0
  %v792 = vpop.f32.mrb[0].mxu0
  %v793 = vadd.f32 0.0, %v792
  %v794 = vpop.f32.mrb[0].mxu0
  %795 = vmatprep.mubr.bf16.mxu0 %v732
  %796 = vmatmul.mubr.bf16.gmra.mrb[0].mxu0 %v731
  %v797 = vpop.f32.mrb[0].mxu0
  %v798 = vadd.f32 0.0, %v797
  %v799 = vpop.f32.mrb[0].mxu0
  %v800 = vpop.f32.mrb[0].mxu0
  %v801 = vadd.f32 0.0, %v800
  %v802 = vpop.f32.mrb[0].mxu0
  %803 = vmatprep.mubr.bf16.mxu0 %v734
  %804 = vmatmul.mubr.bf16.gmra.mrb[0].mxu0 %v733
  %v805 = vpop.f32.mrb[0].mxu0
  %v806 = vadd.f32 0.0, %v805
  %v807 = vpop.f32.mrb[0].mxu0
  %v808 = vpop.f32.mrb[0].mxu0
  %v809 = vadd.f32 0.0, %v808
  %v810 = vpop.f32.mrb[0].mxu0
  %811 = vmatprep.mubr.bf16.mxu0 %v736
  %812 = vmatmul.mubr.bf16.gmra.mrb[0].mxu0 %v735
  %v813 = vpop.f32.mrb[0].mxu0
  %v814 = vadd.f32 0.0, %v813
  %v815 = vpop.f32.mrb[0].mxu0
  %v816 = vpop.f32.mrb[0].mxu0
  %v817 = vpop.f32.mrb[0].mxu0
  %818 = vdwg.mxu0
  %v819 = vmul.f32 %v782, %v280
  %v820 = vmul.f32 %v785, %v280
  %v821 = vmul.f32 %v790, %v280
  %v822 = vmul.f32 %v793, %v280
  %v823 = vmul.f32 %v798, %v280
  %v824 = vmul.f32 %v801, %v280
  %v825 = vmul.f32 %v806, %v280
  %v826 = vmul.f32 %v809, %v280
  %v827 = vmul.f32 %v814, %v280
  %v828 = vadd.f32 %v819, %v295
  %v829 = vadd.f32 %v820, %v295
  %v830 = vadd.f32 %v821, %v295
  %v831 = vadd.f32 %v822, %v295
  %v832 = vadd.f32 %v823, %v295
  %v833 = vadd.f32 %v824, %v295
  %v834 = vadd.f32 %v825, %v295
  %v835 = vadd.f32 %v826, %v295
  %v836 = vadd.f32 %v827, %v295
  %vm837 = vcmp.gt.f32.partialorder %v828, 0.0
  %vm838 = vcmp.gt.f32.partialorder %v829, 0.0
  %vm839 = vcmp.gt.f32.partialorder %v830, 0.0
  %vm840 = vcmp.gt.f32.partialorder %v831, 0.0
  %vm841 = vcmp.gt.f32.partialorder %v832, 0.0
  %vm842 = vcmp.gt.f32.partialorder %v833, 0.0
  %vm843 = vcmp.gt.f32.partialorder %v834, 0.0
  %vm844 = vcmp.gt.f32.partialorder %v835, 0.0
  %vm845 = vcmp.gt.f32.partialorder %v836, 0.0
  %v846 = vmul.f32 %v828, 0.01
  %v847 = vmul.f32 %v829, 0.01
  %v848 = vmul.f32 %v830, 0.01
  %v849 = vmul.f32 %v831, 0.01
  %v850 = vmul.f32 %v832, 0.01
  %v851 = vmul.f32 %v833, 0.01
  %v852 = vmul.f32 %v834, 0.01
  %v853 = vmul.f32 %v835, 0.01
  %v854 = vmul.f32 %v836, 0.01
  %v855 = vsel %vm837, %v828, %v846
  %v856 = vsel %vm838, %v829, %v847
  %v857 = vsel %vm839, %v830, %v848
  %v858 = vsel %vm840, %v831, %v849
  %v859 = vsel %vm841, %v832, %v850
  %v860 = vsel %vm842, %v833, %v851
  %v861 = vsel %vm843, %v834, %v852
  %v862 = vsel %vm844, %v835, %v853
  %v863 = vsel %vm845, %v836, %v854
  %v864 = vmax.f32 %v681, %v855
  %v865 = vmax.f32 %v682, %v856
  %v866 = vmax.f32 %v683, %v857
  %v867 = vmax.f32 %v684, %v858
  %v868 = vmax.f32 %v685, %v859
  %v869 = vmax.f32 %v686, %v860
  %v870 = vmax.f32 %v687, %v861
  %v871 = vmax.f32 %v688, %v862
  %v872 = vmax.f32 %v689, %v863
  %v873 = vmax.f32 %v507, %v864
  %v874 = vmax.f32 %v508, %v865
  %v875 = vmax.f32 %v509, %v866
  %v876 = vmax.f32 %v510, %v867
  %v877 = vmax.f32 %v511, %v868
  %v878 = vmax.f32 %v512, %v869
  %v879 = vmax.f32 %v513, %v870
  %v880 = vmax.f32 %v514, %v871
  %v881 = vmax.f32 %v515, %v872
  %v882 = vpack.c.bf16 %v874, %v873
  %v883 = vpack.c.bf16 %v876, %v875
  %v884 = vpack.c.bf16 %v878, %v877
  %v885 = vpack.c.bf16 %v880, %v879
  %v886 = vpack.c.bf16 %v881, %v881
  %v892 = vunpack.c.l.b16 %v882
  %v893 = vunpack.c.h.b16 %v882
  %v894 = vunpack.c.l.b16 %v883
  %v895 = vunpack.c.h.b16 %v883
  %v896 = vunpack.c.l.b16 %v884
  %v897 = vunpack.c.h.b16 %v884
  %v898 = vunpack.c.l.b16 %v885
  %v899 = vunpack.c.h.b16 %v885
  %v900 = vunpack.c.l.b16 %v886
  %v901 = vpack.c.b16 %v892, %v892
  %v902 = vpack.c.b16 %v893, %v893
  %v903 = vpack.c.b16 %v894, %v894
  %v904 = vpack.c.b16 %v895, %v895
  %v905 = vpack.c.b16 %v896, %v896
  %v906 = vpack.c.b16 %v897, %v897
  %v907 = vpack.c.b16 %v898, %v898
  %v908 = vpack.c.b16 %v899, %v899
  %v909 = vpack.c.b16 %v900, %v900
  %919 = vst [vmem:[%s4] sm:$0xf] %v901
  %920 = vst [vmem:[%s4 + $0x4] sm:$0xf] %v902
  %921 = vst [vmem:[%s4 + $0x8] sm:$0xf] %v903
  %922 = vst [vmem:[%s4 + $0xc] sm:$0xf] %v904
  %923 = vst [vmem:[%s4 + $0x10] sm:$0xf] %v905
  %924 = vst [vmem:[%s4 + $0x14] sm:$0xf] %v906
  %925 = vst [vmem:[%s4 + $0x18] sm:$0xf] %v907
  %926 = vst [vmem:[%s4 + $0x1c] sm:$0xf] %v908
  %927 = vst [vmem:[%s4 + $0x20] sm:$0xf] %v909
  // Predicated region
  $region18: #{cnn_forward.5} parent=0 // pred_check
    _
  $region19: #{cnn_forward.5} parent=0 // pred_check_branch
    %929 = sbr.rel (0) target = $region21
  $region20: #{cnn_forward.5} parent=0 // pred_region
    _
  $region21: #{cnn_forward.5} parent=0 // pred_fallthru
    _
  // Predicated region
  $region22: #{cnn_forward.5} parent=0 // pred_check
    _
  $region23: #{cnn_forward.5} parent=0 // pred_check_branch
    %931 = sbr.rel (0) target = $region25
  $region24: #{cnn_forward.5} parent=0 // pred_region
    _
  $region25: #{cnn_forward.5} parent=0 // pred_fallthru
    _

// kernel: cnn_forward.7
$region0: #{cnn_forward.7}
  #allocation0 [shape = 'u32[]', space=smem, size = 0x4, offset = 0x4, fixed_abs, tag = 'smem constant byte address 0x4 - core index']
  #allocation1 [shape = 'u32[144,128]{1,0:T(1,128)}', space=vmem, size = 0x12000, scoped, tag = 'internal scratch']
  %s0 = inlined_call_operand.vmem [shape: bf16[2,630], index: 0, kind: input, shape index: {}]
  %s1 = inlined_call_operand.vmem [shape: bf16[630,128], index: 1, kind: input, shape index: {}]
  %s2 = inlined_call_operand.vmem [shape: f32[1,128], index: 2, kind: input, shape index: {}]
  %s3 = inlined_call_operand.hbm [shape: f32[2,128], index: 3, kind: output, shape index: {}]
  %s4 = sld [smem:[#allocation0]]
  $region22: #{cnn_forward.7} parent=0
    _
  %s6 = ssub.s32 1, %s4
  %s7 = scalar_select 0, %s6, %s4
  $region1: #{cnn_forward.7} parent=0
    #allocation2 [shape = 'u8[1024]{0}', space=vmem, size = 0x400, scoped, tag = 'output window, operand 0, single buffered']
    #allocation3 [shape = 's32[1]{0}', space=sflag, size = 0x4, scoped, tag = 'scoped memory for cnn_forward.7']
    %8 = vsyncpa [#allocation3], 0
    // Predicated region
    $region2: #{cnn_forward.7} parent=1 // pred_check
      _
    $region3: #{cnn_forward.7} parent=1 // pred_check_branch
      %10 = sbr.rel (0) target = $region5
    $region4: #{cnn_forward.7} parent=1 // pred_region
      _
    $region5: #{cnn_forward.7} parent=1 // pred_fallthru
      _
    // Predicated region
    $region6: #{cnn_forward.7} parent=1 // pred_check
      _
    $region7: #{cnn_forward.7} parent=1 // pred_check_branch
      %12 = sbr.rel (0) target = $region9
    $region8: #{cnn_forward.7} parent=1 // pred_region
      _
    $region9: #{cnn_forward.7} parent=1 // pred_fallthru
      _
    // Predicated region
    $region10: #{cnn_forward.7} parent=1 // pred_check
      _
    $region11: #{cnn_forward.7} parent=1 // pred_check_branch
      %14 = sbr.rel (0) target = $region13
    $region12: #{cnn_forward.7} parent=1 // pred_region
      _
    $region13: #{cnn_forward.7} parent=1 // pred_fallthru
      _
    %v16 = vld [vmem:[%s0] sm:$0x1f]
    %v17 = vld [vmem:[%s1] sm:$0xf]
    %v18 = vld [vmem:[%s1 + $0x4] sm:$0xf]
    %v19 = vld [vmem:[%s1 + $0x8] sm:$0xf]
    %v20 = vld [vmem:[%s1 + $0xc] sm:$0xf]
    %v21 = vld [vmem:[%s1 + $0x10] sm:$0xf]
    %v22 = vld [vmem:[%s1 + $0x14] sm:$0xf]
    %v23 = vld [vmem:[%s1 + $0x18] sm:$0xf]
    %v24 = vld [vmem:[%s1 + $0x1c] sm:$0xf]
    %v25 = vld [vmem:[%s1 + $0x20] sm:$0xf]
    %v26 = vld [vmem:[%s1 + $0x24] sm:$0xf]
    %v27 = vld [vmem:[%s1 + $0x28] sm:$0xf]
    %v28 = vld [vmem:[%s1 + $0x2c] sm:$0xf]
    %v29 = vld [vmem:[%s1 + $0x30] sm:$0xf]
    %v30 = vld [vmem:[%s1 + $0x34] sm:$0xf]
    %v31 = vld [vmem:[%s1 + $0x38] sm:$0xf]
    %v32 = vld [vmem:[%s1 + $0x3c] sm:$0xf]
    %v33 = vld [vmem:[%s1 + $0x40] sm:$0xf]
    %v34 = vld [vmem:[%s1 + $0x44] sm:$0xf]
    %v35 = vld [vmem:[%s1 + $0x48] sm:$0xf]
    %v36 = vld [vmem:[%s1 + $0x4c] sm:$0xf]
    %v37 = vld [vmem:[%s1 + $0x50] sm:$0xf]
    %v38 = vld [vmem:[%s1 + $0x54] sm:$0xf]
    %v39 = vld [vmem:[%s1 + $0x58] sm:$0xf]
    %v40 = vld [vmem:[%s1 + $0x5c] sm:$0xf]
    %v41 = vld [vmem:[%s1 + $0x60] sm:$0xf]
    %v42 = vld [vmem:[%s1 + $0x64] sm:$0xf]
    %v43 = vld [vmem:[%s1 + $0x68] sm:$0xf]
    %v44 = vld [vmem:[%s1 + $0x6c] sm:$0xf]
    %v45 = vld [vmem:[%s1 + $0x70] sm:$0xf]
    %v46 = vld [vmem:[%s1 + $0x74] sm:$0xf]
    %v47 = vld [vmem:[%s1 + $0x78] sm:$0xf]
    %v48 = vld [vmem:[%s1 + $0x7c] sm:$0xf]
    %v49 = vld [vmem:[%s1 + $0x80] sm:$0xf]
    %v50 = vld [vmem:[%s1 + $0x84] sm:$0xf]
    %v51 = vld [vmem:[%s1 + $0x88] sm:$0xf]
    %v52 = vld [vmem:[%s1 + $0x8c] sm:$0xf]
    %v53 = vld [vmem:[%s1 + $0x90] sm:$0xf]
    %v54 = vld [vmem:[%s1 + $0x94] sm:$0xf]
    %v55 = vld [vmem:[%s1 + $0x98] sm:$0xf]
    %v56 = vld [vmem:[%s1 + $0x9c] sm:$0xf]
    %v57 = vld [vmem:[%s1 + $0xa0] sm:$0xf]
    %v58 = vld [vmem:[%s1 + $0xa4] sm:$0xf]
    %v59 = vld [vmem:[%s1 + $0xa8] sm:$0xf]
    %v60 = vld [vmem:[%s1 + $0xac] sm:$0xf]
    %v61 = vld [vmem:[%s1 + $0xb0] sm:$0xf]
    %v62 = vld [vmem:[%s1 + $0xb4] sm:$0xf]
    %v63 = vld [vmem:[%s1 + $0xb8] sm:$0xf]
    %v64 = vld [vmem:[%s1 + $0xbc] sm:$0xf]
    %v65 = vld [vmem:[%s1 + $0xc0] sm:$0xf]
    %v66 = vld [vmem:[%s1 + $0xc4] sm:$0xf]
    %v67 = vld [vmem:[%s1 + $0xc8] sm:$0xf]
    %v68 = vld [vmem:[%s1 + $0xcc] sm:$0xf]
    %v69 = vld [vmem:[%s1 + $0xd0] sm:$0xf]
    %v70 = vld [vmem:[%s1 + $0xd4] sm:$0xf]
    %v71 = vld [vmem:[%s1 + $0xd8] sm:$0xf]
    %v72 = vld [vmem:[%s1 + $0xdc] sm:$0xf]
    %v73 = vld [vmem:[%s1 + $0xe0] sm:$0xf]
    %v74 = vld [vmem:[%s1 + $0xe4] sm:$0xf]
    %v75 = vld [vmem:[%s1 + $0xe8] sm:$0xf]
    %v76 = vld [vmem:[%s1 + $0xec] sm:$0xf]
    %v77 = vld [vmem:[%s1 + $0xf0] sm:$0xf]
    %v78 = vld [vmem:[%s1 + $0xf4] sm:$0xf]
    %v79 = vld [vmem:[%s1 + $0xf8] sm:$0xf]
    %v80 = vld [vmem:[%s1 + $0xfc] sm:$0xf]
    %v81 = vld [vmem:[%s1 + $0x100] sm:$0xf]
    %v82 = vld [vmem:[%s1 + $0x104] sm:$0xf]
    %v83 = vld [vmem:[%s1 + $0x108] sm:$0xf]
    %v84 = vld [vmem:[%s1 + $0x10c] sm:$0xf]
    %v85 = vld [vmem:[%s1 + $0x110] sm:$0xf]
    %v86 = vld [vmem:[%s1 + $0x114] sm:$0xf]
    %v87 = vld [vmem:[%s1 + $0x118] sm:$0xf]
    %v88 = vld [vmem:[%s1 + $0x11c] sm:$0xf]
    %v89 = vld [vmem:[%s1 + $0x120] sm:$0xf]
    %v90 = vld [vmem:[%s1 + $0x124] sm:$0xf]
    %v91 = vld [vmem:[%s1 + $0x128] sm:$0xf]
    %v92 = vld [vmem:[%s1 + $0x12c] sm:$0xf]
    %v93 = vld [vmem:[%s1 + $0x130] sm:$0xf]
    %v94 = vld [vmem:[%s1 + $0x134] sm:$0xf]
    %v95 = vld [vmem:[%s1 + $0x138] sm:$0x7]
    %v96 = vld [vmem:[%s2] sm:$0x1]
    %v98 = vlaneseq
    %v99 = vshrl.u32 %v98, 7
    %v100 = vsub.s32 0, %v99
    %v101 = vrot.slane %v96, %v100
    %v104 = vcombine.high %v16, %v16
    %v106 = vunpack.c.l.s4 1966171168
    %v107 = vunpack.c.0.s8 %v106
    %v108 = vlaneseq
    %v109 = vshrl.u32 %v108, 7
    %v110 = vsub.s32 %v107, %v109
    %v111 = vrot.slane %v16, %v110
    %v113 = vunpack.c.l.s4 1966171168
    %v114 = vunpack.c.0.s8 %v113
    %v115 = vlaneseq
    %v116 = vshrl.u32 %v115, 7
    %v117 = vsub.s32 %v114, %v116
    %v118 = vrot.slane %v104, %v117
    %v119 = vcombine.high %v111, %v111
    %v121 = vunpack.c.l.s4 1966171168
    %v122 = vunpack.c.0.s8 %v121
    %v123 = vlaneseq
    %v124 = vshrl.u32 %v123, 7
    %v125 = vsub.s32 %v122, %v124
    %v126 = vrot.slane %v111, %v125
    %v128 = vunpack.c.l.s4 1966171168
    %v129 = vunpack.c.0.s8 %v128
    %v130 = vlaneseq
    %v131 = vshrl.u32 %v130, 7
    %v132 = vsub.s32 %v129, %v131
    %v133 = vrot.slane %v118, %v132
    %v135 = vunpack.c.l.s4 1966171168
    %v136 = vunpack.c.0.s8 %v135
    %v137 = vlaneseq
    %v138 = vshrl.u32 %v137, 7
    %v139 = vsub.s32 %v136, %v138
    %v140 = vrot.slane %v119, %v139
    %v141 = vcombine.high %v126, %v126
    %v142 = vcombine.high %v140, %v140
    %v226 = vunpack.c.l.b16 %v17
    %v227 = vunpack.c.l.b16 %v18
    %v228 = vunpack.c.l.b16 %v19
    %v229 = vunpack.c.l.b16 %v20
    %v230 = vunpack.c.l.b16 %v21
    %v231 = vunpack.c.l.b16 %v22
    %v232 = vunpack.c.l.b16 %v23
    %v233 = vunpack.c.l.b16 %v24
    %v234 = vunpack.c.l.b16 %v25
    %v235 = vunpack.c.l.b16 %v26
    %v236 = vunpack.c.l.b16 %v27
    %v237 = vunpack.c.l.b16 %v28
    %v238 = vunpack.c.l.b16 %v29
    %v239 = vunpack.c.l.b16 %v30
    %v240 = vunpack.c.l.b16 %v31
    %v241 = vunpack.c.l.b16 %v32
    %v242 = vunpack.c.l.b16 %v33
    %v243 = vunpack.c.l.b16 %v34
    %v244 = vunpack.c.l.b16 %v35
    %v245 = vunpack.c.l.b16 %v36
    %v246 = vunpack.c.l.b16 %v37
    %v247 = vunpack.c.l.b16 %v38
    %v248 = vunpack.c.l.b16 %v39
    %v249 = vunpack.c.l.b16 %v40
    %v250 = vunpack.c.l.b16 %v41
    %v251 = vunpack.c.l.b16 %v42
    %v252 = vunpack.c.l.b16 %v43
    %v253 = vunpack.c.l.b16 %v44
    %v254 = vunpack.c.l.b16 %v45
    %v255 = vunpack.c.l.b16 %v46
    %v256 = vunpack.c.l.b16 %v47
    %v257 = vunpack.c.l.b16 %v48
    %v258 = vunpack.c.l.b16 %v49
    %v259 = vunpack.c.l.b16 %v50
    %v260 = vunpack.c.l.b16 %v51
    %v261 = vunpack.c.l.b16 %v52
    %v262 = vunpack.c.l.b16 %v53
    %v263 = vunpack.c.l.b16 %v54
    %v264 = vunpack.c.l.b16 %v55
    %v265 = vunpack.c.l.b16 %v56
    %v266 = vunpack.c.l.b16 %v57
    %v267 = vunpack.c.l.b16 %v58
    %v268 = vunpack.c.l.b16 %v59
    %v269 = vunpack.c.l.b16 %v60
    %v270 = vunpack.c.l.b16 %v61
    %v271 = vunpack.c.l.b16 %v62
    %v272 = vunpack.c.l.b16 %v63
    %v273 = vunpack.c.l.b16 %v64
    %v274 = vunpack.c.l.b16 %v65
    %v275 = vunpack.c.l.b16 %v66
    %v276 = vunpack.c.l.b16 %v67
    %v277 = vunpack.c.l.b16 %v68
    %v278 = vunpack.c.l.b16 %v69
    %v279 = vunpack.c.l.b16 %v70
    %v280 = vunpack.c.l.b16 %v71
    %v281 = vunpack.c.l.b16 %v72
    %v282 = vunpack.c.l.b16 %v73
    %v283 = vunpack.c.l.b16 %v74
    %v284 = vunpack.c.l.b16 %v75
    %v285 = vunpack.c.l.b16 %v76
    %v286 = vunpack.c.l.b16 %v77
    %v287 = vunpack.c.l.b16 %v78
    %v288 = vunpack.c.l.b16 %v79
    %v289 = vunpack.c.l.b16 %v80
    %v290 = vunpack.c.l.b16 %v81
    %v291 = vunpack.c.l.b16 %v82
    %v292 = vunpack.c.l.b16 %v83
    %v293 = vunpack.c.l.b16 %v84
    %v294 = vunpack.c.l.b16 %v85
    %v295 = vunpack.c.l.b16 %v86
    %v296 = vunpack.c.l.b16 %v87
    %v297 = vunpack.c.l.b16 %v88
    %v298 = vunpack.c.l.b16 %v89
    %v299 = vunpack.c.l.b16 %v90
    %v300 = vunpack.c.l.b16 %v91
    %v301 = vunpack.c.l.b16 %v92
    %v302 = vunpack.c.l.b16 %v93
    %v303 = vunpack.c.l.b16 %v94
    %v304 = vunpack.c.l.b16 %v95
    %v305 = vpack.c.b16 %v227, %v226
    %v306 = vpack.c.b16 %v229, %v228
    %v307 = vpack.c.b16 %v231, %v230
    %v308 = vpack.c.b16 %v233, %v232
    %v309 = vpack.c.b16 %v235, %v234
    %v310 = vpack.c.b16 %v237, %v236
    %v311 = vpack.c.b16 %v239, %v238
    %v312 = vpack.c.b16 %v241, %v240
    %v313 = vpack.c.b16 %v243, %v242
    %v314 = vpack.c.b16 %v245, %v244
    %v315 = vpack.c.b16 %v247, %v246
    %v316 = vpack.c.b16 %v249, %v248
    %v317 = vpack.c.b16 %v251, %v250
    %v318 = vpack.c.b16 %v253, %v252
    %v319 = vpack.c.b16 %v255, %v254
    %v320 = vpack.c.b16 %v257, %v256
    %v321 = vpack.c.b16 %v259, %v258
    %v322 = vpack.c.b16 %v261, %v260
    %v323 = vpack.c.b16 %v263, %v262
    %v324 = vpack.c.b16 %v265, %v264
    %v325 = vpack.c.b16 %v267, %v266
    %v326 = vpack.c.b16 %v269, %v268
    %v327 = vpack.c.b16 %v271, %v270
    %v328 = vpack.c.b16 %v273, %v272
    %v329 = vpack.c.b16 %v275, %v274
    %v330 = vpack.c.b16 %v277, %v276
    %v331 = vpack.c.b16 %v279, %v278
    %v332 = vpack.c.b16 %v281, %v280
    %v333 = vpack.c.b16 %v283, %v282
    %v334 = vpack.c.b16 %v285, %v284
    %v335 = vpack.c.b16 %v287, %v286
    %v336 = vpack.c.b16 %v289, %v288
    %v337 = vpack.c.b16 %v291, %v290
    %v338 = vpack.c.b16 %v293, %v292
    %v339 = vpack.c.b16 %v295, %v294
    %v340 = vpack.c.b16 %v297, %v296
    %v341 = vpack.c.b16 %v299, %v298
    %v342 = vpack.c.b16 %v301, %v300
    %v343 = vpack.c.b16 %v303, %v302
    %v344 = vpack.c.b16 %v304, %v304
    %vm384 = vcmask 965632
    %v386 = vsel %vm384, %v133, 0
    %vm388 = vcmask 1042432
    %v390 = vsel %vm388, %v344, 0
    %392 = vmatprep.subr.bf16.mxu0 0
    %393 = vmatpush1.bf16.msra.mxu0 %v305
    %394 = vmatprep.subr.bf16.mxu0 0
    %395 = vmatpush1.bf16.msra.mxu0 %v306
    %396 = vmatprep.subr.bf16.mxu0 0
    %397 = vmatpush1.bf16.msra.mxu0 %v307
    %398 = vmatprep.subr.bf16.mxu0 0
    %399 = vmatpush1.bf16.msra.mxu0 %v308
    %400 = vmatprep.subr.bf16.mxu0 0
    %401 = vmatpush1.bf16.msra.mxu0 %v309
    %402 = vmatprep.subr.bf16.mxu0 0
    %403 = vmatpush1.bf16.msra.mxu0 %v310
    %404 = vmatprep.subr.bf16.mxu0 0
    %405 = vmatpush1.bf16.msra.mxu0 %v311
    %406 = vmatprep.subr.bf16.mxu0 0
    %407 = vmatpush1.bf16.msra.mxu0 %v312
    %408 = vmatprep.subr.bf16.mxu0 0
    %409 = vmatpush1.bf16.msra.mxu0 %v313
    %410 = vmatprep.subr.bf16.mxu0 0
    %411 = vmatpush1.bf16.msra.mxu0 %v314
    %412 = vmatprep.subr.bf16.mxu0 0
    %413 = vmatpush1.bf16.msra.mxu0 %v315
    %414 = vmatprep.subr.bf16.mxu0 0
    %415 = vmatpush1.bf16.msra.mxu0 %v316
    %416 = vmatprep.subr.bf16.mxu0 0
    %417 = vmatpush1.bf16.msra.mxu0 %v317
    %418 = vmatprep.subr.bf16.mxu0 0
    %419 = vmatpush1.bf16.msra.mxu0 %v318
    %420 = vmatprep.subr.bf16.mxu0 0
    %421 = vmatpush1.bf16.msra.mxu0 %v319
    %422 = vmatprep.subr.bf16.mxu0 0
    %423 = vmatpush1.bf16.msra.mxu0 %v320
    %424 = vmatprep.mubr.bf16.mxu0 %v140
    %425 = vmatmul.mubr.bf16.gmra.mrb[0].mxu0 %v126
    %v426 = vpop.f32.mrb[0].mxu0
    %v427 = vadd.f32 %v101, %v426
    %v428 = vpop.f32.mrb[0].mxu0
    %v429 = vpop.f32.mrb[0].mxu0
    %v430 = vpop.f32.mrb[0].mxu0
    %431 = vdwg.mxu0
    %432 = vmatprep.subr.bf16.mxu0 0
    %433 = vmatpush1.bf16.msra.mxu0 %v321
    %434 = vmatprep.subr.bf16.mxu0 0
    %435 = vmatpush1.bf16.msra.mxu0 %v322
    %436 = vmatprep.subr.bf16.mxu0 0
    %437 = vmatpush1.bf16.msra.mxu0 %v323
    %438 = vmatprep.subr.bf16.mxu0 0
    %439 = vmatpush1.bf16.msra.mxu0 %v324
    %440 = vmatprep.subr.bf16.mxu0 0
    %441 = vmatpush1.bf16.msra.mxu0 %v325
    %442 = vmatprep.subr.bf16.mxu0 0
    %443 = vmatpush1.bf16.msra.mxu0 %v326
    %444 = vmatprep.subr.bf16.mxu0 0
    %445 = vmatpush1.bf16.msra.mxu0 %v327
    %446 = vmatprep.subr.bf16.mxu0 0
    %447 = vmatpush1.bf16.msra.mxu0 %v328
    %448 = vmatprep.subr.bf16.mxu0 0
    %449 = vmatpush1.bf16.msra.mxu0 %v329
    %450 = vmatprep.subr.bf16.mxu0 0
    %451 = vmatpush1.bf16.msra.mxu0 %v330
    %452 = vmatprep.subr.bf16.mxu0 0
    %453 = vmatpush1.bf16.msra.mxu0 %v331
    %454 = vmatprep.subr.bf16.mxu0 0
    %455 = vmatpush1.bf16.msra.mxu0 %v332
    %456 = vmatprep.subr.bf16.mxu0 0
    %457 = vmatpush1.bf16.msra.mxu0 %v333
    %458 = vmatprep.subr.bf16.mxu0 0
    %459 = vmatpush1.bf16.msra.mxu0 %v334
    %460 = vmatprep.subr.bf16.mxu0 0
    %461 = vmatpush1.bf16.msra.mxu0 %v335
    %462 = vmatprep.subr.bf16.mxu0 0
    %463 = vmatpush1.bf16.msra.mxu0 %v336
    %464 = vmatprep.mubr.bf16.mxu0 %v142
    %465 = vmatmul.mubr.bf16.gmra.mrb[0].mxu0 %v141
    %v466 = vpop.f32.mrb[0].mxu0
    %v467 = vadd.f32 %v427, %v466
    %v468 = vpop.f32.mrb[0].mxu0
    %v469 = vpop.f32.mrb[0].mxu0
    %v470 = vpop.f32.mrb[0].mxu0
    %471 = vdwg.mxu0
    %472 = vmatprep.subr.bf16.mxu0 0
    %473 = vmatpush1.bf16.msra.mxu0 %v337
    %474 = vmatprep.subr.bf16.mxu0 0
    %475 = vmatpush1.bf16.msra.mxu0 %v338
    %476 = vmatprep.subr.bf16.mxu0 0
    %477 = vmatpush1.bf16.msra.mxu0 %v339
    %478 = vmatprep.subr.bf16.mxu0 0
    %479 = vmatpush1.bf16.msra.mxu0 %v340
    %480 = vmatprep.subr.bf16.mxu0 0
    %481 = vmatpush1.bf16.msra.mxu0 %v341
    %482 = vmatprep.subr.bf16.mxu0 0
    %483 = vmatpush1.bf16.msra.mxu0 %v342
    %484 = vmatprep.subr.bf16.mxu0 0
    %485 = vmatpush1.bf16.msra.mxu0 %v343
    %486 = vmatprep.subr.bf16.mxu0 0
    %487 = vmatpush1.bf16.msra.mxu0 %v390
    %488 = vmatprep.subr.bf16.mxu0 0
    %489 = vmatpush1.bf16.msra.mxu0 0
    %490 = vmatprep.subr.bf16.mxu0 0
    %491 = vmatpush1.bf16.msra.mxu0 0
    %492 = vmatprep.subr.bf16.mxu0 0
    %493 = vmatpush1.bf16.msra.mxu0 0
    %494 = vmatprep.subr.bf16.mxu0 0
    %495 = vmatpush1.bf16.msra.mxu0 0
    %496 = vmatprep.subr.bf16.mxu0 0
    %497 = vmatpush1.bf16.msra.mxu0 0
    %498 = vmatprep.subr.bf16.mxu0 0
    %499 = vmatpush1.bf16.msra.mxu0 0
    %500 = vmatprep.subr.bf16.mxu0 0
    %501 = vmatpush1.bf16.msra.mxu0 0
    %502 = vmatprep.subr.bf16.mxu0 0
    %503 = vmatpush1.bf16.msra.mxu0 0
    %504 = vmatprep.mubr.bf16.mxu0 0
    %505 = vmatmul.mubr.bf16.gmra.mrb[0].mxu0 %v386
    %v506 = vpop.f32.mrb[0].mxu0
    %v507 = vadd.f32 %v467, %v506
    %v508 = vpop.f32.mrb[0].mxu0
    %v509 = vpop.f32.mrb[0].mxu0
    %v510 = vpop.f32.mrb[0].mxu0
    %511 = vdwg.mxu0
    %vm512 = vcmask 1041408
    %v513 = vsel %vm512, %v507, -inf
    %514 = vmax.xlane.f32.xlu0 %v513
    %v515 = vpop.xlane.xlu0 %514
    %v516 = vsub.f32 %v507, %v515
    %v517 = vmul.f32 %v516, 1.442695
    %v518 = vpow.pop %v517
    %v519 = vsel %vm512, %v518, 0.0
    %520 = vadd.xlane.f32.xlu0 %v519
    %v521 = vpop.xlane.xlu0 %520
    %v522 = vrcp.pop %v521
    %v523 = vmul.f32 %v518, %v522
    %524 = vst [vmem:[#allocation2] sm:$0x3] %v523
    // Predicated region
    $region14: #{cnn_forward.7} parent=1 // pred_check
      _
    $region15: #{cnn_forward.7} parent=1 // pred_check_branch
      %526 = sbr.rel (0) target = $region17
    $region16: #{cnn_forward.7} parent=1 // pred_region
      %s528 = ssub.s32 32, 32
      %529 = vsyncadd [#allocation3], %s528
      %s531 = sshll.u32 [#allocation2], 4
      %s532 = int_to_ptr.vmem [resolvable:$true] %s531
      %534 = dma.vmem_to_hbm [thread:$0]  %s532, 32, %s3, [#allocation3]
    $region17: #{cnn_forward.7} parent=1 // pred_fallthru
      _
    // Predicated region
    $region18: #{cnn_forward.7} parent=1 // pred_check
      _
    $region19: #{cnn_forward.7} parent=1 // pred_check_branch
      %536 = sbr.rel (0) target = $region21
    $region20: #{cnn_forward.7} parent=1 // pred_region
      %537 = dma.done [#allocation3], 32
    $region21: #{cnn_forward.7} parent=1 // pred_fallthru
      _
    %538 = vsyncpa [#allocation3], 1

// kernel: cnn_forward.4
$region0: #{cnn_forward.4}
  #allocation0 [shape = 'u32[]', space=smem, size = 0x4, offset = 0x4, fixed_abs, tag = 'smem constant byte address 0x4 - core index']
  #allocation1 [shape = 'u32[144,128]{1,0:T(1,128)}', space=vmem, size = 0x12000, scoped, tag = 'internal scratch']
  %s0 = inlined_call_operand.vmem [shape: bf16[4,338,9], index: 0, kind: input, shape index: {}]
  %s1 = inlined_call_operand.vmem [shape: bf16[9,256], index: 1, kind: input, shape index: {}]
  %s2 = inlined_call_operand.vmem [shape: f32[1,256], index: 2, kind: input, shape index: {}]
  %s3 = inlined_call_operand.vmem [shape: f32[1,256], index: 3, kind: input, shape index: {}]
  %s4 = inlined_call_operand.vmem [shape: bf16[338,256], index: 4, kind: output, shape index: {}]
  %s5 = sld [smem:[#allocation0]]
  $region26: #{cnn_forward.4} parent=0
    _
  %s7 = ssub.s32 1, %s5
  %s8 = scalar_select 0, %s7, %s5
  // Predicated region
  $region2: #{cnn_forward.4} parent=0 // pred_check
    _
  $region3: #{cnn_forward.4} parent=0 // pred_check_branch
    %10 = sbr.rel (0) target = $region5
  $region4: #{cnn_forward.4} parent=0 // pred_region
    _
  $region5: #{cnn_forward.4} parent=0 // pred_fallthru
    _
  // Predicated region
  $region6: #{cnn_forward.4} parent=0 // pred_check
    _
  $region7: #{cnn_forward.4} parent=0 // pred_check_branch
    %12 = sbr.rel (0) target = $region9
  $region8: #{cnn_forward.4} parent=0 // pred_region
    _
  $region9: #{cnn_forward.4} parent=0 // pred_fallthru
    _
  // Predicated region
  $region10: #{cnn_forward.4} parent=0 // pred_check
    _
  $region11: #{cnn_forward.4} parent=0 // pred_check_branch
    %14 = sbr.rel (0) target = $region13
  $region12: #{cnn_forward.4} parent=0 // pred_region
    _
  $region13: #{cnn_forward.4} parent=0 // pred_fallthru
    _
  // Predicated region
  $region14: #{cnn_forward.4} parent=0 // pred_check
    _
  $region15: #{cnn_forward.4} parent=0 // pred_check_branch
    %16 = sbr.rel (0) target = $region17
  $region16: #{cnn_forward.4} parent=0 // pred_region
    _
  $region17: #{cnn_forward.4} parent=0 // pred_fallthru
    _
  %v18 = vld [vmem:[%s1] sm:$0xff]
  %v19 = vld [vmem:[%s1 + $0x8] sm:$0x11]
  %v20 = vld [vmem:[%s2] sm:$0x3]
  %v21 = vld [vmem:[%s3] sm:$0x3]
  %v22 = vld [vmem:[%s0] sm:$0xf]
  %v23 = vld [vmem:[%s0 + $0x4] sm:$0xf]
  %v24 = vld [vmem:[%s0 + $0x8] sm:$0xf]
  %v25 = vld [vmem:[%s0 + $0xc] sm:$0xf]
  %v26 = vld [vmem:[%s0 + $0x10] sm:$0xf]
  %v27 = vld [vmem:[%s0 + $0x14] sm:$0xf]
  %v28 = vld [vmem:[%s0 + $0x18] sm:$0xf]
  %v29 = vld [vmem:[%s0 + $0x1c] sm:$0xf]
  %v30 = vld [vmem:[%s0 + $0x20] sm:$0xf]
  %v31 = vld [vmem:[%s0 + $0x24] sm:$0xf]
  %v32 = vld [vmem:[%s0 + $0x28] sm:$0xf]
  %v33 = vld [vmem:[%s0 + $0x2c] sm:$0xf]
  %v34 = vld [vmem:[%s0 + $0x30] sm:$0xf]
  %v35 = vld [vmem:[%s0 + $0x34] sm:$0xf]
  %v36 = vld [vmem:[%s0 + $0x38] sm:$0xf]
  %v37 = vld [vmem:[%s0 + $0x3c] sm:$0xf]
  %v38 = vld [vmem:[%s0 + $0x40] sm:$0xf]
  %v39 = vld [vmem:[%s0 + $0x44] sm:$0xf]
  %v40 = vld [vmem:[%s0 + $0x48] sm:$0xf]
  %v41 = vld [vmem:[%s0 + $0x4c] sm:$0xf]
  %v42 = vld [vmem:[%s0 + $0x50] sm:$0xf]
  %v43 = vld [vmem:[%s0 + $0x54] sm:$0xf]
  %v44 = vld [vmem:[%s0 + $0x58] sm:$0xf]
  %v45 = vld [vmem:[%s0 + $0x5c] sm:$0xf]
  %v46 = vld [vmem:[%s0 + $0x60] sm:$0xf]
  %v47 = vld [vmem:[%s0 + $0x64] sm:$0xf]
  %v48 = vld [vmem:[%s0 + $0x68] sm:$0xf]
  %v49 = vld [vmem:[%s0 + $0x6c] sm:$0xf]
  %v50 = vld [vmem:[%s0 + $0x70] sm:$0xf]
  %v51 = vld [vmem:[%s0 + $0x74] sm:$0xf]
  %v52 = vld [vmem:[%s0 + $0x78] sm:$0xf]
  %v53 = vld [vmem:[%s0 + $0x7c] sm:$0xf]
  %v54 = vld [vmem:[%s0 + $0x80] sm:$0xf]
  %v55 = vld [vmem:[%s0 + $0x84] sm:$0xf]
  %v56 = vld [vmem:[%s0 + $0x88] sm:$0xf]
  %v57 = vld [vmem:[%s0 + $0x8c] sm:$0xf]
  %v58 = vld [vmem:[%s0 + $0x90] sm:$0xf]
  %v59 = vld [vmem:[%s0 + $0x94] sm:$0xf]
  %v60 = vld [vmem:[%s0 + $0x98] sm:$0xf]
  %v61 = vld [vmem:[%s0 + $0x9c] sm:$0xf]
  %v62 = vld [vmem:[%s0 + $0xa0] sm:$0xf]
  %v63 = vld [vmem:[%s0 + $0xa4] sm:$0xf]
  %v64 = vld [vmem:[%s0 + $0xa8] sm:$0x1]
  %v108 = vunpack.c.l.b16 %v22
  %v109 = vunpack.c.l.b16 %v23
  %v110 = vunpack.c.l.b16 %v24
  %v111 = vunpack.c.l.b16 %v25
  %v112 = vunpack.c.l.b16 %v26
  %v113 = vunpack.c.l.b16 %v27
  %v114 = vunpack.c.l.b16 %v28
  %v115 = vunpack.c.l.b16 %v29
  %v116 = vunpack.c.l.b16 %v30
  %v117 = vunpack.c.l.b16 %v31
  %v118 = vunpack.c.l.b16 %v32
  %v119 = vunpack.c.l.b16 %v33
  %v120 = vunpack.c.l.b16 %v34
  %v121 = vunpack.c.l.b16 %v35
  %v122 = vunpack.c.l.b16 %v36
  %v123 = vunpack.c.l.b16 %v37
  %v124 = vunpack.c.l.b16 %v38
  %v125 = vunpack.c.l.b16 %v39
  %v126 = vunpack.c.l.b16 %v40
  %v127 = vunpack.c.l.b16 %v41
  %v128 = vunpack.c.l.b16 %v42
  %v129 = vunpack.c.l.b16 %v43
  %v130 = vunpack.c.l.b16 %v44
  %v131 = vunpack.c.l.b16 %v45
  %v132 = vunpack.c.l.b16 %v46
  %v133 = vunpack.c.l.b16 %v47
  %v134 = vunpack.c.l.b16 %v48
  %v135 = vunpack.c.l.b16 %v49
  %v136 = vunpack.c.l.b16 %v50
  %v137 = vunpack.c.l.b16 %v51
  %v138 = vunpack.c.l.b16 %v52
  %v139 = vunpack.c.l.b16 %v53
  %v140 = vunpack.c.l.b16 %v54
  %v141 = vunpack.c.l.b16 %v55
  %v142 = vunpack.c.l.b16 %v56
  %v143 = vunpack.c.l.b16 %v57
  %v144 = vunpack.c.l.b16 %v58
  %v145 = vunpack.c.l.b16 %v59
  %v146 = vunpack.c.l.b16 %v60
  %v147 = vunpack.c.l.b16 %v61
  %v148 = vunpack.c.l.b16 %v62
  %v149 = vunpack.c.l.b16 %v63
  %v150 = vunpack.c.l.b16 %v64
  %v151 = vpack.c.b16 %v109, %v108
  %v152 = vpack.c.b16 %v111, %v110
  %v153 = vpack.c.b16 %v113, %v112
  %v154 = vpack.c.b16 %v115, %v114
  %v155 = vpack.c.b16 %v117, %v116
  %v156 = vpack.c.b16 %v119, %v118
  %v157 = vpack.c.b16 %v121, %v120
  %v158 = vpack.c.b16 %v123, %v122
  %v159 = vpack.c.b16 %v125, %v124
  %v160 = vpack.c.b16 %v127, %v126
  %v161 = vpack.c.b16 %v129, %v128
  %v162 = vpack.c.b16 %v131, %v130
  %v163 = vpack.c.b16 %v133, %v132
  %v164 = vpack.c.b16 %v135, %v134
  %v165 = vpack.c.b16 %v137, %v136
  %v166 = vpack.c.b16 %v139, %v138
  %v167 = vpack.c.b16 %v141, %v140
  %v168 = vpack.c.b16 %v143, %v142
  %v169 = vpack.c.b16 %v145, %v144
  %v170 = vpack.c.b16 %v147, %v146
  %v171 = vpack.c.b16 %v149, %v148
  %v172 = vpack.c.b16 %v150, %v150
  %v175 = vunpack.c.l.b16 %v18
  %v176 = vunpack.c.h.b16 %v18
  %v177 = vunpack.c.l.b16 %v19
  %v178 = vunpack.c.h.b16 %v19
  %v179 = vpack.c.b16 %v177, %v175
  %v180 = vpack.c.b16 %v178, %v176
  %vm181 = vcmask 72704
  %v183 = vsel %vm181, %v151, 0
  %v186 = vsel %vm181, %v152, 0
  %v189 = vsel %vm181, %v153, 0
  %v192 = vsel %vm181, %v154, 0
  %v195 = vsel %vm181, %v155, 0
  %v198 = vsel %vm181, %v156, 0
  %v201 = vsel %vm181, %v157, 0
  %v204 = vsel %vm181, %v158, 0
  %v207 = vsel %vm181, %v159, 0
  %v210 = vsel %vm181, %v160, 0
  %v213 = vsel %vm181, %v161, 0
  %v216 = vsel %vm181, %v162, 0
  %v219 = vsel %vm181, %v163, 0
  %v222 = vsel %vm181, %v164, 0
  %v225 = vsel %vm181, %v165, 0
  %v228 = vsel %vm181, %v166, 0
  %v231 = vsel %vm181, %v167, 0
  %v234 = vsel %vm181, %v168, 0
  %v237 = vsel %vm181, %v169, 0
  %v240 = vsel %vm181, %v170, 0
  %v243 = vsel %vm181, %v171, 0
  %v246 = vsel %vm181, %v172, 0
  %vm248 = vcmask 1043456
  %vm249 = vcmask 1044480
  %v250 = vsel %vm248, 4294967295, 65535
  %v251 = vsel %vm249, %v250, 0
  %v253 = vand.u32 %v179, %v251
  %v256 = vand.u32 %v180, %v251
  %258 = vmatprep.subr.bf16.mxu0 %v256
  %259 = vmatpush1.bf16.msra.mxu0 %v253
  %260 = vmatprep.subr.bf16.mxu0 0
  %261 = vmatpush1.bf16.msra.mxu0 0
  %262 = vmatprep.subr.bf16.mxu0 0
  %263 = vmatpush1.bf16.msra.mxu0 0
  %264 = vmatprep.subr.bf16.mxu0 0
  %265 = vmatpush1.bf16.msra.mxu0 0
  %266 = vmatprep.subr.bf16.mxu0 0
  %267 = vmatpush1.bf16.msra.mxu0 0
  %268 = vmatprep.subr.bf16.mxu0 0
  %269 = vmatpush1.bf16.msra.mxu0 0
  %270 = vmatprep.subr.bf16.mxu0 0
  %271 = vmatpush1.bf16.msra.mxu0 0
  %272 = vmatprep.subr.bf16.mxu0 0
  %273 = vmatpush1.bf16.msra.mxu0 0
  %274 = vmatprep.subr.bf16.mxu0 0
  %275 = vmatpush1.bf16.msra.mxu0 0
  %276 = vmatprep.subr.bf16.mxu0 0
  %277 = vmatpush1.bf16.msra.mxu0 0
  %278 = vmatprep.subr.bf16.mxu0 0
  %279 = vmatpush1.bf16.msra.mxu0 0
  %280 = vmatprep.subr.bf16.mxu0 0
  %281 = vmatpush1.bf16.msra.mxu0 0
  %282 = vmatprep.subr.bf16.mxu0 0
  %283 = vmatpush1.bf16.msra.mxu0 0
  %284 = vmatprep.subr.bf16.mxu0 0
  %285 = vmatpush1.bf16.msra.mxu0 0
  %286 = vmatprep.subr.bf16.mxu0 0
  %287 = vmatpush1.bf16.msra.mxu0 0
  %288 = vmatprep.subr.bf16.mxu0 0
  %289 = vmatpush1.bf16.msra.mxu0 0
  %290 = vmatprep.mubr.bf16.mxu0 0
  %291 = vmatmul.mubr.bf16.gmra.mrb[0].mxu0 %v183
  %v292 = vpop.f32.mrb[0].mxu0
  %v293 = vadd.f32 0.0, %v292
  %v294 = vpop.f32.mrb[0].mxu0
  %v295 = vadd.f32 0.0, %v294
  %v296 = vpop.f32.mrb[0].mxu0
  %v297 = vadd.f32 0.0, %v296
  %v298 = vpop.f32.mrb[0].mxu0
  %v299 = vadd.f32 0.0, %v298
  %300 = vmatprep.mubr.bf16.mxu0 0
  %301 = vmatmul.mubr.bf16.gmra.mrb[0].mxu0 %v186
  %v302 = vpop.f32.mrb[0].mxu0
  %v303 = vadd.f32 0.0, %v302
  %v304 = vpop.f32.mrb[0].mxu0
  %v305 = vadd.f32 0.0, %v304
  %v306 = vpop.f32.mrb[0].mxu0
  %v307 = vadd.f32 0.0, %v306
  %v308 = vpop.f32.mrb[0].mxu0
  %v309 = vadd.f32 0.0, %v308
  %310 = vmatprep.mubr.bf16.mxu0 0
  %311 = vmatmul.mubr.bf16.gmra.mrb[0].mxu0 %v189
  %v312 = vpop.f32.mrb[0].mxu0
  %v313 = vadd.f32 0.0, %v312
  %v314 = vpop.f32.mrb[0].mxu0
  %v315 = vadd.f32 0.0, %v314
  %v316 = vpop.f32.mrb[0].mxu0
  %v317 = vadd.f32 0.0, %v316
  %v318 = vpop.f32.mrb[0].mxu0
  %v319 = vadd.f32 0.0, %v318
  %320 = vmatprep.mubr.bf16.mxu0 0
  %321 = vmatmul.mubr.bf16.gmra.mrb[0].mxu0 %v192
  %v322 = vpop.f32.mrb[0].mxu0
  %v323 = vadd.f32 0.0, %v322
  %v324 = vpop.f32.mrb[0].mxu0
  %v325 = vadd.f32 0.0, %v324
  %v326 = vpop.f32.mrb[0].mxu0
  %v327 = vadd.f32 0.0, %v326
  %v328 = vpop.f32.mrb[0].mxu0
  %v329 = vadd.f32 0.0, %v328
  %330 = vmatprep.mubr.bf16.mxu0 0
  %331 = vmatmul.mubr.bf16.gmra.mrb[0].mxu0 %v195
  %v332 = vpop.f32.mrb[0].mxu0
  %v333 = vadd.f32 0.0, %v332
  %v334 = vpop.f32.mrb[0].mxu0
  %v335 = vadd.f32 0.0, %v334
  %v336 = vpop.f32.mrb[0].mxu0
  %v337 = vadd.f32 0.0, %v336
  %v338 = vpop.f32.mrb[0].mxu0
  %v339 = vadd.f32 0.0, %v338
  %340 = vmatprep.mubr.bf16.mxu0 0
  %341 = vmatmul.mubr.bf16.gmra.mrb[0].mxu0 %v198
  %v342 = vpop.f32.mrb[0].mxu0
  %v343 = vadd.f32 0.0, %v342
  %v344 = vpop.f32.mrb[0].mxu0
  %v345 = vadd.f32 0.0, %v344
  %v346 = vpop.f32.mrb[0].mxu0
  %v347 = vadd.f32 0.0, %v346
  %v348 = vpop.f32.mrb[0].mxu0
  %v349 = vadd.f32 0.0, %v348
  %350 = vmatprep.mubr.bf16.mxu0 0
  %351 = vmatmul.mubr.bf16.gmra.mrb[0].mxu0 %v201
  %v352 = vpop.f32.mrb[0].mxu0
  %v353 = vadd.f32 0.0, %v352
  %v354 = vpop.f32.mrb[0].mxu0
  %v355 = vadd.f32 0.0, %v354
  %v356 = vpop.f32.mrb[0].mxu0
  %v357 = vadd.f32 0.0, %v356
  %v358 = vpop.f32.mrb[0].mxu0
  %v359 = vadd.f32 0.0, %v358
  %360 = vmatprep.mubr.bf16.mxu0 0
  %361 = vmatmul.mubr.bf16.gmra.mrb[0].mxu0 %v204
  %v362 = vpop.f32.mrb[0].mxu0
  %v363 = vadd.f32 0.0, %v362
  %v364 = vpop.f32.mrb[0].mxu0
  %v365 = vadd.f32 0.0, %v364
  %v366 = vpop.f32.mrb[0].mxu0
  %v367 = vadd.f32 0.0, %v366
  %v368 = vpop.f32.mrb[0].mxu0
  %v369 = vadd.f32 0.0, %v368
  %370 = vmatprep.mubr.bf16.mxu0 0
  %371 = vmatmul.mubr.bf16.gmra.mrb[0].mxu0 %v207
  %v372 = vpop.f32.mrb[0].mxu0
  %v373 = vadd.f32 0.0, %v372
  %v374 = vpop.f32.mrb[0].mxu0
  %v375 = vadd.f32 0.0, %v374
  %v376 = vpop.f32.mrb[0].mxu0
  %v377 = vadd.f32 0.0, %v376
  %v378 = vpop.f32.mrb[0].mxu0
  %v379 = vadd.f32 0.0, %v378
  %380 = vmatprep.mubr.bf16.mxu0 0
  %381 = vmatmul.mubr.bf16.gmra.mrb[0].mxu0 %v210
  %v382 = vpop.f32.mrb[0].mxu0
  %v383 = vadd.f32 0.0, %v382
  %v384 = vpop.f32.mrb[0].mxu0
  %v385 = vadd.f32 0.0, %v384
  %v386 = vpop.f32.mrb[0].mxu0
  %v387 = vadd.f32 0.0, %v386
  %v388 = vpop.f32.mrb[0].mxu0
  %v389 = vadd.f32 0.0, %v388
  %390 = vmatprep.mubr.bf16.mxu0 0
  %391 = vmatmul.mubr.bf16.gmra.mrb[0].mxu0 %v213
  %v392 = vpop.f32.mrb[0].mxu0
  %v393 = vadd.f32 0.0, %v392
  %v394 = vpop.f32.mrb[0].mxu0
  %v395 = vadd.f32 0.0, %v394
  %v396 = vpop.f32.mrb[0].mxu0
  %v397 = vadd.f32 0.0, %v396
  %v398 = vpop.f32.mrb[0].mxu0
  %v399 = vadd.f32 0.0, %v398
  %400 = vmatprep.mubr.bf16.mxu0 0
  %401 = vmatmul.mubr.bf16.gmra.mrb[0].mxu0 %v216
  %v402 = vpop.f32.mrb[0].mxu0
  %v403 = vadd.f32 0.0, %v402
  %v404 = vpop.f32.mrb[0].mxu0
  %v405 = vadd.f32 0.0, %v404
  %v406 = vpop.f32.mrb[0].mxu0
  %v407 = vadd.f32 0.0, %v406
  %v408 = vpop.f32.mrb[0].mxu0
  %v409 = vadd.f32 0.0, %v408
  %410 = vmatprep.mubr.bf16.mxu0 0
  %411 = vmatmul.mubr.bf16.gmra.mrb[0].mxu0 %v219
  %v412 = vpop.f32.mrb[0].mxu0
  %v413 = vadd.f32 0.0, %v412
  %v414 = vpop.f32.mrb[0].mxu0
  %v415 = vadd.f32 0.0, %v414
  %v416 = vpop.f32.mrb[0].mxu0
  %v417 = vadd.f32 0.0, %v416
  %v418 = vpop.f32.mrb[0].mxu0
  %v419 = vadd.f32 0.0, %v418
  %420 = vmatprep.mubr.bf16.mxu0 0
  %421 = vmatmul.mubr.bf16.gmra.mrb[0].mxu0 %v222
  %v422 = vpop.f32.mrb[0].mxu0
  %v423 = vadd.f32 0.0, %v422
  %v424 = vpop.f32.mrb[0].mxu0
  %v425 = vadd.f32 0.0, %v424
  %v426 = vpop.f32.mrb[0].mxu0
  %v427 = vadd.f32 0.0, %v426
  %v428 = vpop.f32.mrb[0].mxu0
  %v429 = vadd.f32 0.0, %v428
  %430 = vmatprep.mubr.bf16.mxu0 0
  %431 = vmatmul.mubr.bf16.gmra.mrb[0].mxu0 %v225
  %v432 = vpop.f32.mrb[0].mxu0
  %v433 = vadd.f32 0.0, %v432
  %v434 = vpop.f32.mrb[0].mxu0
  %v435 = vadd.f32 0.0, %v434
  %v436 = vpop.f32.mrb[0].mxu0
  %v437 = vadd.f32 0.0, %v436
  %v438 = vpop.f32.mrb[0].mxu0
  %v439 = vadd.f32 0.0, %v438
  %440 = vmatprep.mubr.bf16.mxu0 0
  %441 = vmatmul.mubr.bf16.gmra.mrb[0].mxu0 %v228
  %v442 = vpop.f32.mrb[0].mxu0
  %v443 = vadd.f32 0.0, %v442
  %v444 = vpop.f32.mrb[0].mxu0
  %v445 = vadd.f32 0.0, %v444
  %v446 = vpop.f32.mrb[0].mxu0
  %v447 = vadd.f32 0.0, %v446
  %v448 = vpop.f32.mrb[0].mxu0
  %v449 = vadd.f32 0.0, %v448
  %450 = vmatprep.mubr.bf16.mxu0 0
  %451 = vmatmul.mubr.bf16.gmra.mrb[0].mxu0 %v231
  %v452 = vpop.f32.mrb[0].mxu0
  %v453 = vadd.f32 0.0, %v452
  %v454 = vpop.f32.mrb[0].mxu0
  %v455 = vadd.f32 0.0, %v454
  %v456 = vpop.f32.mrb[0].mxu0
  %v457 = vadd.f32 0.0, %v456
  %v458 = vpop.f32.mrb[0].mxu0
  %v459 = vadd.f32 0.0, %v458
  %460 = vmatprep.mubr.bf16.mxu0 0
  %461 = vmatmul.mubr.bf16.gmra.mrb[0].mxu0 %v234
  %v462 = vpop.f32.mrb[0].mxu0
  %v463 = vadd.f32 0.0, %v462
  %v464 = vpop.f32.mrb[0].mxu0
  %v465 = vadd.f32 0.0, %v464
  %v466 = vpop.f32.mrb[0].mxu0
  %v467 = vadd.f32 0.0, %v466
  %v468 = vpop.f32.mrb[0].mxu0
  %v469 = vadd.f32 0.0, %v468
  %470 = vmatprep.mubr.bf16.mxu0 0
  %471 = vmatmul.mubr.bf16.gmra.mrb[0].mxu0 %v237
  %v472 = vpop.f32.mrb[0].mxu0
  %v473 = vadd.f32 0.0, %v472
  %v474 = vpop.f32.mrb[0].mxu0
  %v475 = vadd.f32 0.0, %v474
  %v476 = vpop.f32.mrb[0].mxu0
  %v477 = vadd.f32 0.0, %v476
  %v478 = vpop.f32.mrb[0].mxu0
  %v479 = vadd.f32 0.0, %v478
  %480 = vmatprep.mubr.bf16.mxu0 0
  %481 = vmatmul.mubr.bf16.gmra.mrb[0].mxu0 %v240
  %v482 = vpop.f32.mrb[0].mxu0
  %v483 = vadd.f32 0.0, %v482
  %v484 = vpop.f32.mrb[0].mxu0
  %v485 = vadd.f32 0.0, %v484
  %v486 = vpop.f32.mrb[0].mxu0
  %v487 = vadd.f32 0.0, %v486
  %v488 = vpop.f32.mrb[0].mxu0
  %v489 = vadd.f32 0.0, %v488
  %490 = vmatprep.mubr.bf16.mxu0 0
  %491 = vmatmul.mubr.bf16.gmra.mrb[0].mxu0 %v243
  %v492 = vpop.f32.mrb[0].mxu0
  %v493 = vadd.f32 0.0, %v492
  %v494 = vpop.f32.mrb[0].mxu0
  %v495 = vadd.f32 0.0, %v494
  %v496 = vpop.f32.mrb[0].mxu0
  %v497 = vadd.f32 0.0, %v496
  %v498 = vpop.f32.mrb[0].mxu0
  %v499 = vadd.f32 0.0, %v498
  %500 = vmatprep.mubr.bf16.mxu0 0
  %501 = vmatmul.mubr.bf16.gmra.mrb[0].mxu0 %v246
  %v502 = vpop.f32.mrb[0].mxu0
  %v503 = vadd.f32 0.0, %v502
  %v504 = vpop.f32.mrb[0].mxu0
  %v505 = vadd.f32 0.0, %v504
  %v506 = vpop.f32.mrb[0].mxu0
  %v507 = vpop.f32.mrb[0].mxu0
  %508 = vdwg.mxu0
  %v510 = vlaneseq
  %v511 = vshrl.u32 %v510, 7
  %v512 = vsub.s32 0, %v511
  %v513 = vrot.slane %v20, %v512
  %v514 = vlaneseq
  %v515 = vshrl.u32 %v514, 7
  %v516 = vsub.s32 1, %v515
  %v517 = vrot.slane %v20, %v516
  %v520 = vmul.f32 %v293, %v513
  %v521 = vmul.f32 %v295, %v517
  %v522 = vmul.f32 %v297, %v513
  %v523 = vmul.f32 %v299, %v517
  %v524 = vmul.f32 %v303, %v513
  %v525 = vmul.f32 %v305, %v517
  %v526 = vmul.f32 %v307, %v513
  %v527 = vmul.f32 %v309, %v517
  %v528 = vmul.f32 %v313, %v513
  %v529 = vmul.f32 %v315, %v517
  %v530 = vmul.f32 %v317, %v513
  %v531 = vmul.f32 %v319, %v517
  %v532 = vmul.f32 %v323, %v513
  %v533 = vmul.f32 %v325, %v517
  %v534 = vmul.f32 %v327, %v513
  %v535 = vmul.f32 %v329, %v517
  %v536 = vmul.f32 %v333, %v513
  %v537 = vmul.f32 %v335, %v517
  %v538 = vmul.f32 %v337, %v513
  %v539 = vmul.f32 %v339, %v517
  %v540 = vmul.f32 %v343, %v513
  %v541 = vmul.f32 %v345, %v517
  %v542 = vmul.f32 %v347, %v513
  %v543 = vmul.f32 %v349, %v517
  %v544 = vmul.f32 %v353, %v513
  %v545 = vmul.f32 %v355, %v517
  %v546 = vmul.f32 %v357, %v513
  %v547 = vmul.f32 %v359, %v517
  %v548 = vmul.f32 %v363, %v513
  %v549 = vmul.f32 %v365, %v517
  %v550 = vmul.f32 %v367, %v513
  %v551 = vmul.f32 %v369, %v517
  %v552 = vmul.f32 %v373, %v513
  %v553 = vmul.f32 %v375, %v517
  %v554 = vmul.f32 %v377, %v513
  %v555 = vmul.f32 %v379, %v517
  %v556 = vmul.f32 %v383, %v513
  %v557 = vmul.f32 %v385, %v517
  %v558 = vmul.f32 %v387, %v513
  %v559 = vmul.f32 %v389, %v517
  %v560 = vmul.f32 %v393, %v513
  %v561 = vmul.f32 %v395, %v517
  %v562 = vmul.f32 %v397, %v513
  %v563 = vmul.f32 %v399, %v517
  %v564 = vmul.f32 %v403, %v513
  %v565 = vmul.f32 %v405, %v517
  %v566 = vmul.f32 %v407, %v513
  %v567 = vmul.f32 %v409, %v517
  %v568 = vmul.f32 %v413, %v513
  %v569 = vmul.f32 %v415, %v517
  %v570 = vmul.f32 %v417, %v513
  %v571 = vmul.f32 %v419, %v517
  %v572 = vmul.f32 %v423, %v513
  %v573 = vmul.f32 %v425, %v517
  %v574 = vmul.f32 %v427, %v513
  %v575 = vmul.f32 %v429, %v517
  %v576 = vmul.f32 %v433, %v513
  %v577 = vmul.f32 %v435, %v517
  %v578 = vmul.f32 %v437, %v513
  %v579 = vmul.f32 %v439, %v517
  %v580 = vmul.f32 %v443, %v513
  %v581 = vmul.f32 %v445, %v517
  %v582 = vmul.f32 %v447, %v513
  %v583 = vmul.f32 %v449, %v517
  %v584 = vmul.f32 %v453, %v513
  %v585 = vmul.f32 %v455, %v517
  %v586 = vmul.f32 %v457, %v513
  %v587 = vmul.f32 %v459, %v517
  %v588 = vmul.f32 %v463, %v513
  %v589 = vmul.f32 %v465, %v517
  %v590 = vmul.f32 %v467, %v513
  %v591 = vmul.f32 %v469, %v517
  %v592 = vmul.f32 %v473, %v513
  %v593 = vmul.f32 %v475, %v517
  %v594 = vmul.f32 %v477, %v513
  %v595 = vmul.f32 %v479, %v517
  %v596 = vmul.f32 %v483, %v513
  %v597 = vmul.f32 %v485, %v517
  %v598 = vmul.f32 %v487, %v513
  %v599 = vmul.f32 %v489, %v517
  %v600 = vmul.f32 %v493, %v513
  %v601 = vmul.f32 %v495, %v517
  %v602 = vmul.f32 %v497, %v513
  %v603 = vmul.f32 %v499, %v517
  %v604 = vmul.f32 %v503, %v513
  %v605 = vmul.f32 %v505, %v517
  %v607 = vlaneseq
  %v608 = vshrl.u32 %v607, 7
  %v609 = vsub.s32 0, %v608
  %v610 = vrot.slane %v21, %v609
  %v611 = vlaneseq
  %v612 = vshrl.u32 %v611, 7
  %v613 = vsub.s32 1, %v612
  %v614 = vrot.slane %v21, %v613
  %v617 = vadd.f32 %v520, %v610
  %v618 = vadd.f32 %v521, %v614
  %v619 = vadd.f32 %v522, %v610
  %v620 = vadd.f32 %v523, %v614
  %v621 = vadd.f32 %v524, %v610
  %v622 = vadd.f32 %v525, %v614
  %v623 = vadd.f32 %v526, %v610
  %v624 = vadd.f32 %v527, %v614
  %v625 = vadd.f32 %v528, %v610
  %v626 = vadd.f32 %v529, %v614
  %v627 = vadd.f32 %v530, %v610
  %v628 = vadd.f32 %v531, %v614
  %v629 = vadd.f32 %v532, %v610
  %v630 = vadd.f32 %v533, %v614
  %v631 = vadd.f32 %v534, %v610
  %v632 = vadd.f32 %v535, %v614
  %v633 = vadd.f32 %v536, %v610
  %v634 = vadd.f32 %v537, %v614
  %v635 = vadd.f32 %v538, %v610
  %v636 = vadd.f32 %v539, %v614
  %v637 = vadd.f32 %v540, %v610
  %v638 = vadd.f32 %v541, %v614
  %v639 = vadd.f32 %v542, %v610
  %v640 = vadd.f32 %v543, %v614
  %v641 = vadd.f32 %v544, %v610
  %v642 = vadd.f32 %v545, %v614
  %v643 = vadd.f32 %v546, %v610
  %v644 = vadd.f32 %v547, %v614
  %v645 = vadd.f32 %v548, %v610
  %v646 = vadd.f32 %v549, %v614
  %v647 = vadd.f32 %v550, %v610
  %v648 = vadd.f32 %v551, %v614
  %v649 = vadd.f32 %v552, %v610
  %v650 = vadd.f32 %v553, %v614
  %v651 = vadd.f32 %v554, %v610
  %v652 = vadd.f32 %v555, %v614
  %v653 = vadd.f32 %v556, %v610
  %v654 = vadd.f32 %v557, %v614
  %v655 = vadd.f32 %v558, %v610
  %v656 = vadd.f32 %v559, %v614
  %v657 = vadd.f32 %v560, %v610
  %v658 = vadd.f32 %v561, %v614
  %v659 = vadd.f32 %v562, %v610
  %v660 = vadd.f32 %v563, %v614
  %v661 = vadd.f32 %v564, %v610
  %v662 = vadd.f32 %v565, %v614
  %v663 = vadd.f32 %v566, %v610
  %v664 = vadd.f32 %v567, %v614
  %v665 = vadd.f32 %v568, %v610
  %v666 = vadd.f32 %v569, %v614
  %v667 = vadd.f32 %v570, %v610
  %v668 = vadd.f32 %v571, %v614
  %v669 = vadd.f32 %v572, %v610
  %v670 = vadd.f32 %v573, %v614
  %v671 = vadd.f32 %v574, %v610
  %v672 = vadd.f32 %v575, %v614
  %v673 = vadd.f32 %v576, %v610
  %v674 = vadd.f32 %v577, %v614
  %v675 = vadd.f32 %v578, %v610
  %v676 = vadd.f32 %v579, %v614
  %v677 = vadd.f32 %v580, %v610
  %v678 = vadd.f32 %v581, %v614
  %v679 = vadd.f32 %v582, %v610
  %v680 = vadd.f32 %v583, %v614
  %v681 = vadd.f32 %v584, %v610
  %v682 = vadd.f32 %v585, %v614
  %v683 = vadd.f32 %v586, %v610
  %v684 = vadd.f32 %v587, %v614
  %v685 = vadd.f32 %v588, %v610
  %v686 = vadd.f32 %v589, %v614
  %v687 = vadd.f32 %v590, %v610
  %v688 = vadd.f32 %v591, %v614
  %v689 = vadd.f32 %v592, %v610
  %v690 = vadd.f32 %v593, %v614
  %v691 = vadd.f32 %v594, %v610
  %v692 = vadd.f32 %v595, %v614
  %v693 = vadd.f32 %v596, %v610
  %v694 = vadd.f32 %v597, %v614
  %v695 = vadd.f32 %v598, %v610
  %v696 = vadd.f32 %v599, %v614
  %v697 = vadd.f32 %v600, %v610
  %v698 = vadd.f32 %v601, %v614
  %v699 = vadd.f32 %v602, %v610
  %v700 = vadd.f32 %v603, %v614
  %v701 = vadd.f32 %v604, %v610
  %v702 = vadd.f32 %v605, %v614
  %vm703 = vcmp.gt.f32.partialorder %v617, 0.0
  %vm704 = vcmp.gt.f32.partialorder %v618, 0.0
  %vm705 = vcmp.gt.f32.partialorder %v619, 0.0
  %vm706 = vcmp.gt.f32.partialorder %v620, 0.0
  %vm707 = vcmp.gt.f32.partialorder %v621, 0.0
  %vm708 = vcmp.gt.f32.partialorder %v622, 0.0
  %vm709 = vcmp.gt.f32.partialorder %v623, 0.0
  %vm710 = vcmp.gt.f32.partialorder %v624, 0.0
  %vm711 = vcmp.gt.f32.partialorder %v625, 0.0
  %vm712 = vcmp.gt.f32.partialorder %v626, 0.0
  %vm713 = vcmp.gt.f32.partialorder %v627, 0.0
  %vm714 = vcmp.gt.f32.partialorder %v628, 0.0
  %vm715 = vcmp.gt.f32.partialorder %v629, 0.0
  %vm716 = vcmp.gt.f32.partialorder %v630, 0.0
  %vm717 = vcmp.gt.f32.partialorder %v631, 0.0
  %vm718 = vcmp.gt.f32.partialorder %v632, 0.0
  %vm719 = vcmp.gt.f32.partialorder %v633, 0.0
  %vm720 = vcmp.gt.f32.partialorder %v634, 0.0
  %vm721 = vcmp.gt.f32.partialorder %v635, 0.0
  %vm722 = vcmp.gt.f32.partialorder %v636, 0.0
  %vm723 = vcmp.gt.f32.partialorder %v637, 0.0
  %vm724 = vcmp.gt.f32.partialorder %v638, 0.0
  %vm725 = vcmp.gt.f32.partialorder %v639, 0.0
  %vm726 = vcmp.gt.f32.partialorder %v640, 0.0
  %vm727 = vcmp.gt.f32.partialorder %v641, 0.0
  %vm728 = vcmp.gt.f32.partialorder %v642, 0.0
  %vm729 = vcmp.gt.f32.partialorder %v643, 0.0
  %vm730 = vcmp.gt.f32.partialorder %v644, 0.0
  %vm731 = vcmp.gt.f32.partialorder %v645, 0.0
  %vm732 = vcmp.gt.f32.partialorder %v646, 0.0
  %vm733 = vcmp.gt.f32.partialorder %v647, 0.0
  %vm734 = vcmp.gt.f32.partialorder %v648, 0.0
  %vm735 = vcmp.gt.f32.partialorder %v649, 0.0
  %vm736 = vcmp.gt.f32.partialorder %v650, 0.0
  %vm737 = vcmp.gt.f32.partialorder %v651, 0.0
  %vm738 = vcmp.gt.f32.partialorder %v652, 0.0
  %vm739 = vcmp.gt.f32.partialorder %v653, 0.0
  %vm740 = vcmp.gt.f32.partialorder %v654, 0.0
  %vm741 = vcmp.gt.f32.partialorder %v655, 0.0
  %vm742 = vcmp.gt.f32.partialorder %v656, 0.0
  %vm743 = vcmp.gt.f32.partialorder %v657, 0.0
  %vm744 = vcmp.gt.f32.partialorder %v658, 0.0
  %vm745 = vcmp.gt.f32.partialorder %v659, 0.0
  %vm746 = vcmp.gt.f32.partialorder %v660, 0.0
  %vm747 = vcmp.gt.f32.partialorder %v661, 0.0
  %vm748 = vcmp.gt.f32.partialorder %v662, 0.0
  %vm749 = vcmp.gt.f32.partialorder %v663, 0.0
  %vm750 = vcmp.gt.f32.partialorder %v664, 0.0
  %vm751 = vcmp.gt.f32.partialorder %v665, 0.0
  %vm752 = vcmp.gt.f32.partialorder %v666, 0.0
  %vm753 = vcmp.gt.f32.partialorder %v667, 0.0
  %vm754 = vcmp.gt.f32.partialorder %v668, 0.0
  %vm755 = vcmp.gt.f32.partialorder %v669, 0.0
  %vm756 = vcmp.gt.f32.partialorder %v670, 0.0
  %vm757 = vcmp.gt.f32.partialorder %v671, 0.0
  %vm758 = vcmp.gt.f32.partialorder %v672, 0.0
  %vm759 = vcmp.gt.f32.partialorder %v673, 0.0
  %vm760 = vcmp.gt.f32.partialorder %v674, 0.0
  %vm761 = vcmp.gt.f32.partialorder %v675, 0.0
  %vm762 = vcmp.gt.f32.partialorder %v676, 0.0
  %vm763 = vcmp.gt.f32.partialorder %v677, 0.0
  %vm764 = vcmp.gt.f32.partialorder %v678, 0.0
  %vm765 = vcmp.gt.f32.partialorder %v679, 0.0
  %vm766 = vcmp.gt.f32.partialorder %v680, 0.0
  %vm767 = vcmp.gt.f32.partialorder %v681, 0.0
  %vm768 = vcmp.gt.f32.partialorder %v682, 0.0
  %vm769 = vcmp.gt.f32.partialorder %v683, 0.0
  %vm770 = vcmp.gt.f32.partialorder %v684, 0.0
  %vm771 = vcmp.gt.f32.partialorder %v685, 0.0
  %vm772 = vcmp.gt.f32.partialorder %v686, 0.0
  %vm773 = vcmp.gt.f32.partialorder %v687, 0.0
  %vm774 = vcmp.gt.f32.partialorder %v688, 0.0
  %vm775 = vcmp.gt.f32.partialorder %v689, 0.0
  %vm776 = vcmp.gt.f32.partialorder %v690, 0.0
  %vm777 = vcmp.gt.f32.partialorder %v691, 0.0
  %vm778 = vcmp.gt.f32.partialorder %v692, 0.0
  %vm779 = vcmp.gt.f32.partialorder %v693, 0.0
  %vm780 = vcmp.gt.f32.partialorder %v694, 0.0
  %vm781 = vcmp.gt.f32.partialorder %v695, 0.0
  %vm782 = vcmp.gt.f32.partialorder %v696, 0.0
  %vm783 = vcmp.gt.f32.partialorder %v697, 0.0
  %vm784 = vcmp.gt.f32.partialorder %v698, 0.0
  %vm785 = vcmp.gt.f32.partialorder %v699, 0.0
  %vm786 = vcmp.gt.f32.partialorder %v700, 0.0
  %vm787 = vcmp.gt.f32.partialorder %v701, 0.0
  %vm788 = vcmp.gt.f32.partialorder %v702, 0.0
  %v789 = vmul.f32 %v617, 0.01
  %v790 = vmul.f32 %v618, 0.01
  %v791 = vmul.f32 %v619, 0.01
  %v792 = vmul.f32 %v620, 0.01
  %v793 = vmul.f32 %v621, 0.01
  %v794 = vmul.f32 %v622, 0.01
  %v795 = vmul.f32 %v623, 0.01
  %v796 = vmul.f32 %v624, 0.01
  %v797 = vmul.f32 %v625, 0.01
  %v798 = vmul.f32 %v626, 0.01
  %v799 = vmul.f32 %v627, 0.01
  %v800 = vmul.f32 %v628, 0.01
  %v801 = vmul.f32 %v629, 0.01
  %v802 = vmul.f32 %v630, 0.01
  %v803 = vmul.f32 %v631, 0.01
  %v804 = vmul.f32 %v632, 0.01
  %v805 = vmul.f32 %v633, 0.01
  %v806 = vmul.f32 %v634, 0.01
  %v807 = vmul.f32 %v635, 0.01
  %v808 = vmul.f32 %v636, 0.01
  %v809 = vmul.f32 %v637, 0.01
  %v810 = vmul.f32 %v638, 0.01
  %v811 = vmul.f32 %v639, 0.01
  %v812 = vmul.f32 %v640, 0.01
  %v813 = vmul.f32 %v641, 0.01
  %v814 = vmul.f32 %v642, 0.01
  %v815 = vmul.f32 %v643, 0.01
  %v816 = vmul.f32 %v644, 0.01
  %v817 = vmul.f32 %v645, 0.01
  %v818 = vmul.f32 %v646, 0.01
  %v819 = vmul.f32 %v647, 0.01
  %v820 = vmul.f32 %v648, 0.01
  %v821 = vmul.f32 %v649, 0.01
  %v822 = vmul.f32 %v650, 0.01
  %v823 = vmul.f32 %v651, 0.01
  %v824 = vmul.f32 %v652, 0.01
  %v825 = vmul.f32 %v653, 0.01
  %v826 = vmul.f32 %v654, 0.01
  %v827 = vmul.f32 %v655, 0.01
  %v828 = vmul.f32 %v656, 0.01
  %v829 = vmul.f32 %v657, 0.01
  %v830 = vmul.f32 %v658, 0.01
  %v831 = vmul.f32 %v659, 0.01
  %v832 = vmul.f32 %v660, 0.01
  %v833 = vmul.f32 %v661, 0.01
  %v834 = vmul.f32 %v662, 0.01
  %v835 = vmul.f32 %v663, 0.01
  %v836 = vmul.f32 %v664, 0.01
  %v837 = vmul.f32 %v665, 0.01
  %v838 = vmul.f32 %v666, 0.01
  %v839 = vmul.f32 %v667, 0.01
  %v840 = vmul.f32 %v668, 0.01
  %v841 = vmul.f32 %v669, 0.01
  %v842 = vmul.f32 %v670, 0.01
  %v843 = vmul.f32 %v671, 0.01
  %v844 = vmul.f32 %v672, 0.01
  %v845 = vmul.f32 %v673, 0.01
  %v846 = vmul.f32 %v674, 0.01
  %v847 = vmul.f32 %v675, 0.01
  %v848 = vmul.f32 %v676, 0.01
  %v849 = vmul.f32 %v677, 0.01
  %v850 = vmul.f32 %v678, 0.01
  %v851 = vmul.f32 %v679, 0.01
  %v852 = vmul.f32 %v680, 0.01
  %v853 = vmul.f32 %v681, 0.01
  %v854 = vmul.f32 %v682, 0.01
  %v855 = vmul.f32 %v683, 0.01
  %v856 = vmul.f32 %v684, 0.01
  %v857 = vmul.f32 %v685, 0.01
  %v858 = vmul.f32 %v686, 0.01
  %v859 = vmul.f32 %v687, 0.01
  %v860 = vmul.f32 %v688, 0.01
  %v861 = vmul.f32 %v689, 0.01
  %v862 = vmul.f32 %v690, 0.01
  %v863 = vmul.f32 %v691, 0.01
  %v864 = vmul.f32 %v692, 0.01
  %v865 = vmul.f32 %v693, 0.01
  %v866 = vmul.f32 %v694, 0.01
  %v867 = vmul.f32 %v695, 0.01
  %v868 = vmul.f32 %v696, 0.01
  %v869 = vmul.f32 %v697, 0.01
  %v870 = vmul.f32 %v698, 0.01
  %v871 = vmul.f32 %v699, 0.01
  %v872 = vmul.f32 %v700, 0.01
  %v873 = vmul.f32 %v701, 0.01
  %v874 = vmul.f32 %v702, 0.01
  %v875 = vsel %vm703, %v617, %v789
  %v876 = vsel %vm704, %v618, %v790
  %v877 = vsel %vm705, %v619, %v791
  %v878 = vsel %vm706, %v620, %v792
  %v879 = vsel %vm707, %v621, %v793
  %v880 = vsel %vm708, %v622, %v794
  %v881 = vsel %vm709, %v623, %v795
  %v882 = vsel %vm710, %v624, %v796
  %v883 = vsel %vm711, %v625, %v797
  %v884 = vsel %vm712, %v626, %v798
  %v885 = vsel %vm713, %v627, %v799
  %v886 = vsel %vm714, %v628, %v800
  %v887 = vsel %vm715, %v629, %v801
  %v888 = vsel %vm716, %v630, %v802
  %v889 = vsel %vm717, %v631, %v803
  %v890 = vsel %vm718, %v632, %v804
  %v891 = vsel %vm719, %v633, %v805
  %v892 = vsel %vm720, %v634, %v806
  %v893 = vsel %vm721, %v635, %v807
  %v894 = vsel %vm722, %v636, %v808
  %v895 = vsel %vm723, %v637, %v809
  %v896 = vsel %vm724, %v638, %v810
  %v897 = vsel %vm725, %v639, %v811
  %v898 = vsel %vm726, %v640, %v812
  %v899 = vsel %vm727, %v641, %v813
  %v900 = vsel %vm728, %v642, %v814
  %v901 = vsel %vm729, %v643, %v815
  %v902 = vsel %vm730, %v644, %v816
  %v903 = vsel %vm731, %v645, %v817
  %v904 = vsel %vm732, %v646, %v818
  %v905 = vsel %vm733, %v647, %v819
  %v906 = vsel %vm734, %v648, %v820
  %v907 = vsel %vm735, %v649, %v821
  %v908 = vsel %vm736, %v650, %v822
  %v909 = vsel %vm737, %v651, %v823
  %v910 = vsel %vm738, %v652, %v824
  %v911 = vsel %vm739, %v653, %v825
  %v912 = vsel %vm740, %v654, %v826
  %v913 = vsel %vm741, %v655, %v827
  %v914 = vsel %vm742, %v656, %v828
  %v915 = vsel %vm743, %v657, %v829
  %v916 = vsel %vm744, %v658, %v830
  %v917 = vsel %vm745, %v659, %v831
  %v918 = vsel %vm746, %v660, %v832
  %v919 = vsel %vm747, %v661, %v833
  %v920 = vsel %vm748, %v662, %v834
  %v921 = vsel %vm749, %v663, %v835
  %v922 = vsel %vm750, %v664, %v836
  %v923 = vsel %vm751, %v665, %v837
  %v924 = vsel %vm752, %v666, %v838
  %v925 = vsel %vm753, %v667, %v839
  %v926 = vsel %vm754, %v668, %v840
  %v927 = vsel %vm755, %v669, %v841
  %v928 = vsel %vm756, %v670, %v842
  %v929 = vsel %vm757, %v671, %v843
  %v930 = vsel %vm758, %v672, %v844
  %v931 = vsel %vm759, %v673, %v845
  %v932 = vsel %vm760, %v674, %v846
  %v933 = vsel %vm761, %v675, %v847
  %v934 = vsel %vm762, %v676, %v848
  %v935 = vsel %vm763, %v677, %v849
  %v936 = vsel %vm764, %v678, %v850
  %v937 = vsel %vm765, %v679, %v851
  %v938 = vsel %vm766, %v680, %v852
  %v939 = vsel %vm767, %v681, %v853
  %v940 = vsel %vm768, %v682, %v854
  %v941 = vsel %vm769, %v683, %v855
  %v942 = vsel %vm770, %v684, %v856
  %v943 = vsel %vm771, %v685, %v857
  %v944 = vsel %vm772, %v686, %v858
  %v945 = vsel %vm773, %v687, %v859
  %v946 = vsel %vm774, %v688, %v860
  %v947 = vsel %vm775, %v689, %v861
  %v948 = vsel %vm776, %v690, %v862
  %v949 = vsel %vm777, %v691, %v863
  %v950 = vsel %vm778, %v692, %v864
  %v951 = vsel %vm779, %v693, %v865
  %v952 = vsel %vm780, %v694, %v866
  %v953 = vsel %vm781, %v695, %v867
  %v954 = vsel %vm782, %v696, %v868
  %v955 = vsel %vm783, %v697, %v869
  %v956 = vsel %vm784, %v698, %v870
  %v957 = vsel %vm785, %v699, %v871
  %v958 = vsel %vm786, %v700, %v872
  %v959 = vsel %vm787, %v701, %v873
  %v960 = vsel %vm788, %v702, %v874
  %s961 = scalar_lea.vmem %s0, 172
  %v962 = vld [vmem:[%s961] sm:$0xf]
  %v963 = vld [vmem:[%s961 + $0x4] sm:$0xf]
  %v964 = vld [vmem:[%s961 + $0x8] sm:$0xf]
  %v965 = vld [vmem:[%s961 + $0xc] sm:$0xf]
  %v966 = vld [vmem:[%s961 + $0x10] sm:$0xf]
  %v967 = vld [vmem:[%s961 + $0x14] sm:$0xf]
  %v968 = vld [vmem:[%s961 + $0x18] sm:$0xf]
  %v969 = vld [vmem:[%s961 + $0x1c] sm:$0xf]
  %v970 = vld [vmem:[%s961 + $0x20] sm:$0xf]
  %v971 = vld [vmem:[%s961 + $0x24] sm:$0xf]
  %v972 = vld [vmem:[%s961 + $0x28] sm:$0xf]
  %v973 = vld [vmem:[%s961 + $0x2c] sm:$0xf]
  %v974 = vld [vmem:[%s961 + $0x30] sm:$0xf]
  %v975 = vld [vmem:[%s961 + $0x34] sm:$0xf]
  %v976 = vld [vmem:[%s961 + $0x38] sm:$0xf]
  %v977 = vld [vmem:[%s961 + $0x3c] sm:$0xf]
  %v978 = vld [vmem:[%s961 + $0x40] sm:$0xf]
  %v979 = vld [vmem:[%s961 + $0x44] sm:$0xf]
  %v980 = vld [vmem:[%s961 + $0x48] sm:$0xf]
  %v981 = vld [vmem:[%s961 + $0x4c] sm:$0xf]
  %v982 = vld [vmem:[%s961 + $0x50] sm:$0xf]
  %v983 = vld [vmem:[%s961 + $0x54] sm:$0xf]
  %v984 = vld [vmem:[%s961 + $0x58] sm:$0xf]
  %v985 = vld [vmem:[%s961 + $0x5c] sm:$0xf]
  %v986 = vld [vmem:[%s961 + $0x60] sm:$0xf]
  %v987 = vld [vmem:[%s961 + $0x64] sm:$0xf]
  %v988 = vld [vmem:[%s961 + $0x68] sm:$0xf]
  %v989 = vld [vmem:[%s961 + $0x6c] sm:$0xf]
  %v990 = vld [vmem:[%s961 + $0x70] sm:$0xf]
  %v991 = vld [vmem:[%s961 + $0x74] sm:$0xf]
  %v992 = vld [vmem:[%s961 + $0x78] sm:$0xf]
  %v993 = vld [vmem:[%s961 + $0x7c] sm:$0xf]
  %v994 = vld [vmem:[%s961 + $0x80] sm:$0xf]
  %v995 = vld [vmem:[%s961 + $0x84] sm:$0xf]
  %v996 = vld [vmem:[%s961 + $0x88] sm:$0xf]
  %v997 = vld [vmem:[%s961 + $0x8c] sm:$0xf]
  %v998 = vld [vmem:[%s961 + $0x90] sm:$0xf]
  %v999 = vld [vmem:[%s961 + $0x94] sm:$0xf]
  %v1000 = vld [vmem:[%s961 + $0x98] sm:$0xf]
  %v1001 = vld [vmem:[%s961 + $0x9c] sm:$0xf]
  %v1002 = vld [vmem:[%s961 + $0xa0] sm:$0xf]
  %v1003 = vld [vmem:[%s961 + $0xa4] sm:$0xf]
  %v1004 = vld [vmem:[%s961 + $0xa8] sm:$0x1]
  %v1048 = vunpack.c.l.b16 %v962
  %v1049 = vunpack.c.l.b16 %v963
  %v1050 = vunpack.c.l.b16 %v964
  %v1051 = vunpack.c.l.b16 %v965
  %v1052 = vunpack.c.l.b16 %v966
  %v1053 = vunpack.c.l.b16 %v967
  %v1054 = vunpack.c.l.b16 %v968
  %v1055 = vunpack.c.l.b16 %v969
  %v1056 = vunpack.c.l.b16 %v970
  %v1057 = vunpack.c.l.b16 %v971
  %v1058 = vunpack.c.l.b16 %v972
  %v1059 = vunpack.c.l.b16 %v973
  %v1060 = vunpack.c.l.b16 %v974
  %v1061 = vunpack.c.l.b16 %v975
  %v1062 = vunpack.c.l.b16 %v976
  %v1063 = vunpack.c.l.b16 %v977
  %v1064 = vunpack.c.l.b16 %v978
  %v1065 = vunpack.c.l.b16 %v979
  %v1066 = vunpack.c.l.b16 %v980
  %v1067 = vunpack.c.l.b16 %v981
  %v1068 = vunpack.c.l.b16 %v982
  %v1069 = vunpack.c.l.b16 %v983
  %v1070 = vunpack.c.l.b16 %v984
  %v1071 = vunpack.c.l.b16 %v985
  %v1072 = vunpack.c.l.b16 %v986
  %v1073 = vunpack.c.l.b16 %v987
  %v1074 = vunpack.c.l.b16 %v988
  %v1075 = vunpack.c.l.b16 %v989
  %v1076 = vunpack.c.l.b16 %v990
  %v1077 = vunpack.c.l.b16 %v991
  %v1078 = vunpack.c.l.b16 %v992
  %v1079 = vunpack.c.l.b16 %v993
  %v1080 = vunpack.c.l.b16 %v994
  %v1081 = vunpack.c.l.b16 %v995
  %v1082 = vunpack.c.l.b16 %v996
  %v1083 = vunpack.c.l.b16 %v997
  %v1084 = vunpack.c.l.b16 %v998
  %v1085 = vunpack.c.l.b16 %v999
  %v1086 = vunpack.c.l.b16 %v1000
  %v1087 = vunpack.c.l.b16 %v1001
  %v1088 = vunpack.c.l.b16 %v1002
  %v1089 = vunpack.c.l.b16 %v1003
  %v1090 = vunpack.c.l.b16 %v1004
  %v1091 = vpack.c.b16 %v1049, %v1048
  %v1092 = vpack.c.b16 %v1051, %v1050
  %v1093 = vpack.c.b16 %v1053, %v1052
  %v1094 = vpack.c.b16 %v1055, %v1054
  %v1095 = vpack.c.b16 %v1057, %v1056
  %v1096 = vpack.c.b16 %v1059, %v1058
  %v1097 = vpack.c.b16 %v1061, %v1060
  %v1098 = vpack.c.b16 %v1063, %v1062
  %v1099 = vpack.c.b16 %v1065, %v1064
  %v1100 = vpack.c.b16 %v1067, %v1066
  %v1101 = vpack.c.b16 %v1069, %v1068
  %v1102 = vpack.c.b16 %v1071, %v1070
  %v1103 = vpack.c.b16 %v1073, %v1072
  %v1104 = vpack.c.b16 %v1075, %v1074
  %v1105 = vpack.c.b16 %v1077, %v1076
  %v1106 = vpack.c.b16 %v1079, %v1078
  %v1107 = vpack.c.b16 %v1081, %v1080
  %v1108 = vpack.c.b16 %v1083, %v1082
  %v1109 = vpack.c.b16 %v1085, %v1084
  %v1110 = vpack.c.b16 %v1087, %v1086
  %v1111 = vpack.c.b16 %v1089, %v1088
  %v1112 = vpack.c.b16 %v1090, %v1090
  %v1114 = vsel %vm181, %v1091, 0
  %v1117 = vsel %vm181, %v1092, 0
  %v1120 = vsel %vm181, %v1093, 0
  %v1123 = vsel %vm181, %v1094, 0
  %v1126 = vsel %vm181, %v1095, 0
  %v1129 = vsel %vm181, %v1096, 0
  %v1132 = vsel %vm181, %v1097, 0
  %v1135 = vsel %vm181, %v1098, 0
  %v1138 = vsel %vm181, %v1099, 0
  %v1141 = vsel %vm181, %v1100, 0
  %v1144 = vsel %vm181, %v1101, 0
  %v1147 = vsel %vm181, %v1102, 0
  %v1150 = vsel %vm181, %v1103, 0
  %v1153 = vsel %vm181, %v1104, 0
  %v1156 = vsel %vm181, %v1105, 0
  %v1159 = vsel %vm181, %v1106, 0
  %v1162 = vsel %vm181, %v1107, 0
  %v1165 = vsel %vm181, %v1108, 0
  %v1168 = vsel %vm181, %v1109, 0
  %v1171 = vsel %vm181, %v1110, 0
  %v1174 = vsel %vm181, %v1111, 0
  %v1177 = vsel %vm181, %v1112, 0
  %1179 = vmatprep.subr.bf16.mxu0 %v256
  %1180 = vmatpush1.bf16.msra.mxu0 %v253
  %1181 = vmatprep.subr.bf16.mxu0 0
  %1182 = vmatpush1.bf16.msra.mxu0 0
  %1183 = vmatprep.subr.bf16.mxu0 0
  %1184 = vmatpush1.bf16.msra.mxu0 0
  %1185 = vmatprep.subr.bf16.mxu0 0
  %1186 = vmatpush1.bf16.msra.mxu0 0
  %1187 = vmatprep.subr.bf16.mxu0 0
  %1188 = vmatpush1.bf16.msra.mxu0 0
  %1189 = vmatprep.subr.bf16.mxu0 0
  %1190 = vmatpush1.bf16.msra.mxu0 0
  %1191 = vmatprep.subr.bf16.mxu0 0
  %1192 = vmatpush1.bf16.msra.mxu0 0
  %1193 = vmatprep.subr.bf16.mxu0 0
  %1194 = vmatpush1.bf16.msra.mxu0 0
  %1195 = vmatprep.subr.bf16.mxu0 0
  %1196 = vmatpush1.bf16.msra.mxu0 0
  %1197 = vmatprep.subr.bf16.mxu0 0
  %1198 = vmatpush1.bf16.msra.mxu0 0
  %1199 = vmatprep.subr.bf16.mxu0 0
  %1200 = vmatpush1.bf16.msra.mxu0 0
  %1201 = vmatprep.subr.bf16.mxu0 0
  %1202 = vmatpush1.bf16.msra.mxu0 0
  %1203 = vmatprep.subr.bf16.mxu0 0
  %1204 = vmatpush1.bf16.msra.mxu0 0
  %1205 = vmatprep.subr.bf16.mxu0 0
  %1206 = vmatpush1.bf16.msra.mxu0 0
  %1207 = vmatprep.subr.bf16.mxu0 0
  %1208 = vmatpush1.bf16.msra.mxu0 0
  %1209 = vmatprep.subr.bf16.mxu0 0
  %1210 = vmatpush1.bf16.msra.mxu0 0
  %1211 = vmatprep.mubr.bf16.mxu0 0
  %1212 = vmatmul.mubr.bf16.gmra.mrb[0].mxu0 %v1114
  %v1213 = vpop.f32.mrb[0].mxu0
  %v1214 = vadd.f32 0.0, %v1213
  %v1215 = vpop.f32.mrb[0].mxu0
  %v1216 = vadd.f32 0.0, %v1215
  %v1217 = vpop.f32.mrb[0].mxu0
  %v1218 = vadd.f32 0.0, %v1217
  %v1219 = vpop.f32.mrb[0].mxu0
  %v1220 = vadd.f32 0.0, %v1219
  %1221 = vmatprep.mubr.bf16.mxu0 0
  %1222 = vmatmul.mubr.bf16.gmra.mrb[0].mxu0 %v1117
  %v1223 = vpop.f32.mrb[0].mxu0
  %v1224 = vadd.f32 0.0, %v1223
  %v1225 = vpop.f32.mrb[0].mxu0
  %v1226 = vadd.f32 0.0, %v1225
  %v1227 = vpop.f32.mrb[0].mxu0
  %v1228 = vadd.f32 0.0, %v1227
  %v1229 = vpop.f32.mrb[0].mxu0
  %v1230 = vadd.f32 0.0, %v1229
  %1231 = vmatprep.mubr.bf16.mxu0 0
  %1232 = vmatmul.mubr.bf16.gmra.mrb[0].mxu0 %v1120
  %v1233 = vpop.f32.mrb[0].mxu0
  %v1234 = vadd.f32 0.0, %v1233
  %v1235 = vpop.f32.mrb[0].mxu0
  %v1236 = vadd.f32 0.0, %v1235
  %v1237 = vpop.f32.mrb[0].mxu0
  %v1238 = vadd.f32 0.0, %v1237
  %v1239 = vpop.f32.mrb[0].mxu0
  %v1240 = vadd.f32 0.0, %v1239
  %1241 = vmatprep.mubr.bf16.mxu0 0
  %1242 = vmatmul.mubr.bf16.gmra.mrb[0].mxu0 %v1123
  %v1243 = vpop.f32.mrb[0].mxu0
  %v1244 = vadd.f32 0.0, %v1243
  %v1245 = vpop.f32.mrb[0].mxu0
  %v1246 = vadd.f32 0.0, %v1245
  %v1247 = vpop.f32.mrb[0].mxu0
  %v1248 = vadd.f32 0.0, %v1247
  %v1249 = vpop.f32.mrb[0].mxu0
  %v1250 = vadd.f32 0.0, %v1249
  %1251 = vmatprep.mubr.bf16.mxu0 0
  %1252 = vmatmul.mubr.bf16.gmra.mrb[0].mxu0 %v1126
  %v1253 = vpop.f32.mrb[0].mxu0
  %v1254 = vadd.f32 0.0, %v1253
  %v1255 = vpop.f32.mrb[0].mxu0
  %v1256 = vadd.f32 0.0, %v1255
  %v1257 = vpop.f32.mrb[0].mxu0
  %v1258 = vadd.f32 0.0, %v1257
  %v1259 = vpop.f32.mrb[0].mxu0
  %v1260 = vadd.f32 0.0, %v1259
  %1261 = vmatprep.mubr.bf16.mxu0 0
  %1262 = vmatmul.mubr.bf16.gmra.mrb[0].mxu0 %v1129
  %v1263 = vpop.f32.mrb[0].mxu0
  %v1264 = vadd.f32 0.0, %v1263
  %v1265 = vpop.f32.mrb[0].mxu0
  %v1266 = vadd.f32 0.0, %v1265
  %v1267 = vpop.f32.mrb[0].mxu0
  %v1268 = vadd.f32 0.0, %v1267
  %v1269 = vpop.f32.mrb[0].mxu0
  %v1270 = vadd.f32 0.0, %v1269
  %1271 = vmatprep.mubr.bf16.mxu0 0
  %1272 = vmatmul.mubr.bf16.gmra.mrb[0].mxu0 %v1132
  %v1273 = vpop.f32.mrb[0].mxu0
  %v1274 = vadd.f32 0.0, %v1273
  %v1275 = vpop.f32.mrb[0].mxu0
  %v1276 = vadd.f32 0.0, %v1275
  %v1277 = vpop.f32.mrb[0].mxu0
  %v1278 = vadd.f32 0.0, %v1277
  %v1279 = vpop.f32.mrb[0].mxu0
  %v1280 = vadd.f32 0.0, %v1279
  %1281 = vmatprep.mubr.bf16.mxu0 0
  %1282 = vmatmul.mubr.bf16.gmra.mrb[0].mxu0 %v1135
  %v1283 = vpop.f32.mrb[0].mxu0
  %v1284 = vadd.f32 0.0, %v1283
  %v1285 = vpop.f32.mrb[0].mxu0
  %v1286 = vadd.f32 0.0, %v1285
  %v1287 = vpop.f32.mrb[0].mxu0
  %v1288 = vadd.f32 0.0, %v1287
  %v1289 = vpop.f32.mrb[0].mxu0
  %v1290 = vadd.f32 0.0, %v1289
  %1291 = vmatprep.mubr.bf16.mxu0 0
  %1292 = vmatmul.mubr.bf16.gmra.mrb[0].mxu0 %v1138
  %v1293 = vpop.f32.mrb[0].mxu0
  %v1294 = vadd.f32 0.0, %v1293
  %v1295 = vpop.f32.mrb[0].mxu0
  %v1296 = vadd.f32 0.0, %v1295
  %v1297 = vpop.f32.mrb[0].mxu0
  %v1298 = vadd.f32 0.0, %v1297
  %v1299 = vpop.f32.mrb[0].mxu0
  %v1300 = vadd.f32 0.0, %v1299
  %1301 = vmatprep.mubr.bf16.mxu0 0
  %1302 = vmatmul.mubr.bf16.gmra.mrb[0].mxu0 %v1141
  %v1303 = vpop.f32.mrb[0].mxu0
  %v1304 = vadd.f32 0.0, %v1303
  %v1305 = vpop.f32.mrb[0].mxu0
  %v1306 = vadd.f32 0.0, %v1305
  %v1307 = vpop.f32.mrb[0].mxu0
  %v1308 = vadd.f32 0.0, %v1307
  %v1309 = vpop.f32.mrb[0].mxu0
  %v1310 = vadd.f32 0.0, %v1309
  %1311 = vmatprep.mubr.bf16.mxu0 0
  %1312 = vmatmul.mubr.bf16.gmra.mrb[0].mxu0 %v1144
  %v1313 = vpop.f32.mrb[0].mxu0
  %v1314 = vadd.f32 0.0, %v1313
  %v1315 = vpop.f32.mrb[0].mxu0
  %v1316 = vadd.f32 0.0, %v1315
  %v1317 = vpop.f32.mrb[0].mxu0
  %v1318 = vadd.f32 0.0, %v1317
  %v1319 = vpop.f32.mrb[0].mxu0
  %v1320 = vadd.f32 0.0, %v1319
  %1321 = vmatprep.mubr.bf16.mxu0 0
  %1322 = vmatmul.mubr.bf16.gmra.mrb[0].mxu0 %v1147
  %v1323 = vpop.f32.mrb[0].mxu0
  %v1324 = vadd.f32 0.0, %v1323
  %v1325 = vpop.f32.mrb[0].mxu0
  %v1326 = vadd.f32 0.0, %v1325
  %v1327 = vpop.f32.mrb[0].mxu0
  %v1328 = vadd.f32 0.0, %v1327
  %v1329 = vpop.f32.mrb[0].mxu0
  %v1330 = vadd.f32 0.0, %v1329
  %1331 = vmatprep.mubr.bf16.mxu0 0
  %1332 = vmatmul.mubr.bf16.gmra.mrb[0].mxu0 %v1150
  %v1333 = vpop.f32.mrb[0].mxu0
  %v1334 = vadd.f32 0.0, %v1333
  %v1335 = vpop.f32.mrb[0].mxu0
  %v1336 = vadd.f32 0.0, %v1335
  %v1337 = vpop.f32.mrb[0].mxu0
  %v1338 = vadd.f32 0.0, %v1337
  %v1339 = vpop.f32.mrb[0].mxu0
  %v1340 = vadd.f32 0.0, %v1339
  %1341 = vmatprep.mubr.bf16.mxu0 0
  %1342 = vmatmul.mubr.bf16.gmra.mrb[0].mxu0 %v1153
  %v1343 = vpop.f32.mrb[0].mxu0
  %v1344 = vadd.f32 0.0, %v1343
  %v1345 = vpop.f32.mrb[0].mxu0
  %v1346 = vadd.f32 0.0, %v1345
  %v1347 = vpop.f32.mrb[0].mxu0
  %v1348 = vadd.f32 0.0, %v1347
  %v1349 = vpop.f32.mrb[0].mxu0
  %v1350 = vadd.f32 0.0, %v1349
  %1351 = vmatprep.mubr.bf16.mxu0 0
  %1352 = vmatmul.mubr.bf16.gmra.mrb[0].mxu0 %v1156
  %v1353 = vpop.f32.mrb[0].mxu0
  %v1354 = vadd.f32 0.0, %v1353
  %v1355 = vpop.f32.mrb[0].mxu0
  %v1356 = vadd.f32 0.0, %v1355
  %v1357 = vpop.f32.mrb[0].mxu0
  %v1358 = vadd.f32 0.0, %v1357
  %v1359 = vpop.f32.mrb[0].mxu0
  %v1360 = vadd.f32 0.0, %v1359
  %1361 = vmatprep.mubr.bf16.mxu0 0
  %1362 = vmatmul.mubr.bf16.gmra.mrb[0].mxu0 %v1159
  %v1363 = vpop.f32.mrb[0].mxu0
  %v1364 = vadd.f32 0.0, %v1363
  %v1365 = vpop.f32.mrb[0].mxu0
  %v1366 = vadd.f32 0.0, %v1365
  %v1367 = vpop.f32.mrb[0].mxu0
  %v1368 = vadd.f32 0.0, %v1367
  %v1369 = vpop.f32.mrb[0].mxu0
  %v1370 = vadd.f32 0.0, %v1369
  %1371 = vmatprep.mubr.bf16.mxu0 0
  %1372 = vmatmul.mubr.bf16.gmra.mrb[0].mxu0 %v1162
  %v1373 = vpop.f32.mrb[0].mxu0
  %v1374 = vadd.f32 0.0, %v1373
  %v1375 = vpop.f32.mrb[0].mxu0
  %v1376 = vadd.f32 0.0, %v1375
  %v1377 = vpop.f32.mrb[0].mxu0
  %v1378 = vadd.f32 0.0, %v1377
  %v1379 = vpop.f32.mrb[0].mxu0
  %v1380 = vadd.f32 0.0, %v1379
  %1381 = vmatprep.mubr.bf16.mxu0 0
  %1382 = vmatmul.mubr.bf16.gmra.mrb[0].mxu0 %v1165
  %v1383 = vpop.f32.mrb[0].mxu0
  %v1384 = vadd.f32 0.0, %v1383
  %v1385 = vpop.f32.mrb[0].mxu0
  %v1386 = vadd.f32 0.0, %v1385
  %v1387 = vpop.f32.mrb[0].mxu0
  %v1388 = vadd.f32 0.0, %v1387
  %v1389 = vpop.f32.mrb[0].mxu0
  %v1390 = vadd.f32 0.0, %v1389
  %1391 = vmatprep.mubr.bf16.mxu0 0
  %1392 = vmatmul.mubr.bf16.gmra.mrb[0].mxu0 %v1168
  %v1393 = vpop.f32.mrb[0].mxu0
  %v1394 = vadd.f32 0.0, %v1393
  %v1395 = vpop.f32.mrb[0].mxu0
  %v1396 = vadd.f32 0.0, %v1395
  %v1397 = vpop.f32.mrb[0].mxu0
  %v1398 = vadd.f32 0.0, %v1397
  %v1399 = vpop.f32.mrb[0].mxu0
  %v1400 = vadd.f32 0.0, %v1399
  %1401 = vmatprep.mubr.bf16.mxu0 0
  %1402 = vmatmul.mubr.bf16.gmra.mrb[0].mxu0 %v1171
  %v1403 = vpop.f32.mrb[0].mxu0
  %v1404 = vadd.f32 0.0, %v1403
  %v1405 = vpop.f32.mrb[0].mxu0
  %v1406 = vadd.f32 0.0, %v1405
  %v1407 = vpop.f32.mrb[0].mxu0
  %v1408 = vadd.f32 0.0, %v1407
  %v1409 = vpop.f32.mrb[0].mxu0
  %v1410 = vadd.f32 0.0, %v1409
  %1411 = vmatprep.mubr.bf16.mxu0 0
  %1412 = vmatmul.mubr.bf16.gmra.mrb[0].mxu0 %v1174
  %v1413 = vpop.f32.mrb[0].mxu0
  %v1414 = vadd.f32 0.0, %v1413
  %v1415 = vpop.f32.mrb[0].mxu0
  %v1416 = vadd.f32 0.0, %v1415
  %v1417 = vpop.f32.mrb[0].mxu0
  %v1418 = vadd.f32 0.0, %v1417
  %v1419 = vpop.f32.mrb[0].mxu0
  %v1420 = vadd.f32 0.0, %v1419
  %1421 = vmatprep.mubr.bf16.mxu0 0
  %1422 = vmatmul.mubr.bf16.gmra.mrb[0].mxu0 %v1177
  %v1423 = vpop.f32.mrb[0].mxu0
  %v1424 = vadd.f32 0.0, %v1423
  %v1425 = vpop.f32.mrb[0].mxu0
  %v1426 = vadd.f32 0.0, %v1425
  %v1427 = vpop.f32.mrb[0].mxu0
  %v1428 = vpop.f32.mrb[0].mxu0
  %1429 = vdwg.mxu0
  %v1430 = vmul.f32 %v1214, %v513
  %v1431 = vmul.f32 %v1216, %v517
  %v1432 = vmul.f32 %v1218, %v513
  %v1433 = vmul.f32 %v1220, %v517
  %v1434 = vmul.f32 %v1224, %v513
  %v1435 = vmul.f32 %v1226, %v517
  %v1436 = vmul.f32 %v1228, %v513
  %v1437 = vmul.f32 %v1230, %v517
  %v1438 = vmul.f32 %v1234, %v513
  %v1439 = vmul.f32 %v1236, %v517
  %v1440 = vmul.f32 %v1238, %v513
  %v1441 = vmul.f32 %v1240, %v517
  %v1442 = vmul.f32 %v1244, %v513
  %v1443 = vmul.f32 %v1246, %v517
  %v1444 = vmul.f32 %v1248, %v513
  %v1445 = vmul.f32 %v1250, %v517
  %v1446 = vmul.f32 %v1254, %v513
  %v1447 = vmul.f32 %v1256, %v517
  %v1448 = vmul.f32 %v1258, %v513
  %v1449 = vmul.f32 %v1260, %v517
  %v1450 = vmul.f32 %v1264, %v513
  %v1451 = vmul.f32 %v1266, %v517
  %v1452 = vmul.f32 %v1268, %v513
  %v1453 = vmul.f32 %v1270, %v517
  %v1454 = vmul.f32 %v1274, %v513
  %v1455 = vmul.f32 %v1276, %v517
  %v1456 = vmul.f32 %v1278, %v513
  %v1457 = vmul.f32 %v1280, %v517
  %v1458 = vmul.f32 %v1284, %v513
  %v1459 = vmul.f32 %v1286, %v517
  %v1460 = vmul.f32 %v1288, %v513
  %v1461 = vmul.f32 %v1290, %v517
  %v1462 = vmul.f32 %v1294, %v513
  %v1463 = vmul.f32 %v1296, %v517
  %v1464 = vmul.f32 %v1298, %v513
  %v1465 = vmul.f32 %v1300, %v517
  %v1466 = vmul.f32 %v1304, %v513
  %v1467 = vmul.f32 %v1306, %v517
  %v1468 = vmul.f32 %v1308, %v513
  %v1469 = vmul.f32 %v1310, %v517
  %v1470 = vmul.f32 %v1314, %v513
  %v1471 = vmul.f32 %v1316, %v517
  %v1472 = vmul.f32 %v1318, %v513
  %v1473 = vmul.f32 %v1320, %v517
  %v1474 = vmul.f32 %v1324, %v513
  %v1475 = vmul.f32 %v1326, %v517
  %v1476 = vmul.f32 %v1328, %v513
  %v1477 = vmul.f32 %v1330, %v517
  %v1478 = vmul.f32 %v1334, %v513
  %v1479 = vmul.f32 %v1336, %v517
  %v1480 = vmul.f32 %v1338, %v513
  %v1481 = vmul.f32 %v1340, %v517
  %v1482 = vmul.f32 %v1344, %v513
  %v1483 = vmul.f32 %v1346, %v517
  %v1484 = vmul.f32 %v1348, %v513
  %v1485 = vmul.f32 %v1350, %v517
  %v1486 = vmul.f32 %v1354, %v513
  %v1487 = vmul.f32 %v1356, %v517
  %v1488 = vmul.f32 %v1358, %v513
  %v1489 = vmul.f32 %v1360, %v517
  %v1490 = vmul.f32 %v1364, %v513
  %v1491 = vmul.f32 %v1366, %v517
  %v1492 = vmul.f32 %v1368, %v513
  %v1493 = vmul.f32 %v1370, %v517
  %v1494 = vmul.f32 %v1374, %v513
  %v1495 = vmul.f32 %v1376, %v517
  %v1496 = vmul.f32 %v1378, %v513
  %v1497 = vmul.f32 %v1380, %v517
  %v1498 = vmul.f32 %v1384, %v513
  %v1499 = vmul.f32 %v1386, %v517
  %v1500 = vmul.f32 %v1388, %v513
  %v1501 = vmul.f32 %v1390, %v517
  %v1502 = vmul.f32 %v1394, %v513
  %v1503 = vmul.f32 %v1396, %v517
  %v1504 = vmul.f32 %v1398, %v513
  %v1505 = vmul.f32 %v1400, %v517
  %v1506 = vmul.f32 %v1404, %v513
  %v1507 = vmul.f32 %v1406, %v517
  %v1508 = vmul.f32 %v1408, %v513
  %v1509 = vmul.f32 %v1410, %v517
  %v1510 = vmul.f32 %v1414, %v513
  %v1511 = vmul.f32 %v1416, %v517
  %v1512 = vmul.f32 %v1418, %v513
  %v1513 = vmul.f32 %v1420, %v517
  %v1514 = vmul.f32 %v1424, %v513
  %v1515 = vmul.f32 %v1426, %v517
  %v1516 = vadd.f32 %v1430, %v610
  %v1517 = vadd.f32 %v1431, %v614
  %v1518 = vadd.f32 %v1432, %v610
  %v1519 = vadd.f32 %v1433, %v614
  %v1520 = vadd.f32 %v1434, %v610
  %v1521 = vadd.f32 %v1435, %v614
  %v1522 = vadd.f32 %v1436, %v610
  %v1523 = vadd.f32 %v1437, %v614
  %v1524 = vadd.f32 %v1438, %v610
  %v1525 = vadd.f32 %v1439, %v614
  %v1526 = vadd.f32 %v1440, %v610
  %v1527 = vadd.f32 %v1441, %v614
  %v1528 = vadd.f32 %v1442, %v610
  %v1529 = vadd.f32 %v1443, %v614
  %v1530 = vadd.f32 %v1444, %v610
  %v1531 = vadd.f32 %v1445, %v614
  %v1532 = vadd.f32 %v1446, %v610
  %v1533 = vadd.f32 %v1447, %v614
  %v1534 = vadd.f32 %v1448, %v610
  %v1535 = vadd.f32 %v1449, %v614
  %v1536 = vadd.f32 %v1450, %v610
  %v1537 = vadd.f32 %v1451, %v614
  %v1538 = vadd.f32 %v1452, %v610
  %v1539 = vadd.f32 %v1453, %v614
  %v1540 = vadd.f32 %v1454, %v610
  %v1541 = vadd.f32 %v1455, %v614
  %v1542 = vadd.f32 %v1456, %v610
  %v1543 = vadd.f32 %v1457, %v614
  %v1544 = vadd.f32 %v1458, %v610
  %v1545 = vadd.f32 %v1459, %v614
  %v1546 = vadd.f32 %v1460, %v610
  %v1547 = vadd.f32 %v1461, %v614
  %v1548 = vadd.f32 %v1462, %v610
  %v1549 = vadd.f32 %v1463, %v614
  %v1550 = vadd.f32 %v1464, %v610
  %v1551 = vadd.f32 %v1465, %v614
  %v1552 = vadd.f32 %v1466, %v610
  %v1553 = vadd.f32 %v1467, %v614
  %v1554 = vadd.f32 %v1468, %v610
  %v1555 = vadd.f32 %v1469, %v614
  %v1556 = vadd.f32 %v1470, %v610
  %v1557 = vadd.f32 %v1471, %v614
  %v1558 = vadd.f32 %v1472, %v610
  %v1559 = vadd.f32 %v1473, %v614
  %v1560 = vadd.f32 %v1474, %v610
  %v1561 = vadd.f32 %v1475, %v614
  %v1562 = vadd.f32 %v1476, %v610
  %v1563 = vadd.f32 %v1477, %v614
  %v1564 = vadd.f32 %v1478, %v610
  %v1565 = vadd.f32 %v1479, %v614
  %v1566 = vadd.f32 %v1480, %v610
  %v1567 = vadd.f32 %v1481, %v614
  %v1568 = vadd.f32 %v1482, %v610
  %v1569 = vadd.f32 %v1483, %v614
  %v1570 = vadd.f32 %v1484, %v610
  %v1571 = vadd.f32 %v1485, %v614
  %v1572 = vadd.f32 %v1486, %v610
  %v1573 = vadd.f32 %v1487, %v614
  %v1574 = vadd.f32 %v1488, %v610
  %v1575 = vadd.f32 %v1489, %v614
  %v1576 = vadd.f32 %v1490, %v610
  %v1577 = vadd.f32 %v1491, %v614
  %v1578 = vadd.f32 %v1492, %v610
  %v1579 = vadd.f32 %v1493, %v614
  %v1580 = vadd.f32 %v1494, %v610
  %v1581 = vadd.f32 %v1495, %v614
  %v1582 = vadd.f32 %v1496, %v610
  %v1583 = vadd.f32 %v1497, %v614
  %v1584 = vadd.f32 %v1498, %v610
  %v1585 = vadd.f32 %v1499, %v614
  %v1586 = vadd.f32 %v1500, %v610
  %v1587 = vadd.f32 %v1501, %v614
  %v1588 = vadd.f32 %v1502, %v610
  %v1589 = vadd.f32 %v1503, %v614
  %v1590 = vadd.f32 %v1504, %v610
  %v1591 = vadd.f32 %v1505, %v614
  %v1592 = vadd.f32 %v1506, %v610
  %v1593 = vadd.f32 %v1507, %v614
  %v1594 = vadd.f32 %v1508, %v610
  %v1595 = vadd.f32 %v1509, %v614
  %v1596 = vadd.f32 %v1510, %v610
  %v1597 = vadd.f32 %v1511, %v614
  %v1598 = vadd.f32 %v1512, %v610
  %v1599 = vadd.f32 %v1513, %v614
  %v1600 = vadd.f32 %v1514, %v610
  %v1601 = vadd.f32 %v1515, %v614
  %vm1602 = vcmp.gt.f32.partialorder %v1516, 0.0
  %vm1603 = vcmp.gt.f32.partialorder %v1517, 0.0
  %vm1604 = vcmp.gt.f32.partialorder %v1518, 0.0
  %vm1605 = vcmp.gt.f32.partialorder %v1519, 0.0
  %vm1606 = vcmp.gt.f32.partialorder %v1520, 0.0
  %vm1607 = vcmp.gt.f32.partialorder %v1521, 0.0
  %vm1608 = vcmp.gt.f32.partialorder %v1522, 0.0
  %vm1609 = vcmp.gt.f32.partialorder %v1523, 0.0
  %vm1610 = vcmp.gt.f32.partialorder %v1524, 0.0
  %vm1611 = vcmp.gt.f32.partialorder %v1525, 0.0
  %vm1612 = vcmp.gt.f32.partialorder %v1526, 0.0
  %vm1613 = vcmp.gt.f32.partialorder %v1527, 0.0
  %vm1614 = vcmp.gt.f32.partialorder %v1528, 0.0
  %vm1615 = vcmp.gt.f32.partialorder %v1529, 0.0
  %vm1616 = vcmp.gt.f32.partialorder %v1530, 0.0
  %vm1617 = vcmp.gt.f32.partialorder %v1531, 0.0
  %vm1618 = vcmp.gt.f32.partialorder %v1532, 0.0
  %vm1619 = vcmp.gt.f32.partialorder %v1533, 0.0
  %vm1620 = vcmp.gt.f32.partialorder %v1534, 0.0
  %vm1621 = vcmp.gt.f32.partialorder %v1535, 0.0
  %vm1622 = vcmp.gt.f32.partialorder %v1536, 0.0
  %vm1623 = vcmp.gt.f32.partialorder %v1537, 0.0
  %vm1624 = vcmp.gt.f32.partialorder %v1538, 0.0
  %vm1625 = vcmp.gt.f32.partialorder %v1539, 0.0
  %vm1626 = vcmp.gt.f32.partialorder %v1540, 0.0
  %vm1627 = vcmp.gt.f32.partialorder %v1541, 0.0
  %vm1628 = vcmp.gt.f32.partialorder %v1542, 0.0
  %vm1629 = vcmp.gt.f32.partialorder %v1543, 0.0
  %vm1630 = vcmp.gt.f32.partialorder %v1544, 0.0
  %vm1631 = vcmp.gt.f32.partialorder %v1545, 0.0
  %vm1632 = vcmp.gt.f32.partialorder %v1546, 0.0
  %vm1633 = vcmp.gt.f32.partialorder %v1547, 0.0
  %vm1634 = vcmp.gt.f32.partialorder %v1548, 0.0
  %vm1635 = vcmp.gt.f32.partialorder %v1549, 0.0
  %vm1636 = vcmp.gt.f32.partialorder %v1550, 0.0
  %vm1637 = vcmp.gt.f32.partialorder %v1551, 0.0
  %vm1638 = vcmp.gt.f32.partialorder %v1552, 0.0
  %vm1639 = vcmp.gt.f32.partialorder %v1553, 0.0
  %vm1640 = vcmp.gt.f32.partialorder %v1554, 0.0
  %vm1641 = vcmp.gt.f32.partialorder %v1555, 0.0
  %vm1642 = vcmp.gt.f32.partialorder %v1556, 0.0
  %vm1643 = vcmp.gt.f32.partialorder %v1557, 0.0
  %vm1644 = vcmp.gt.f32.partialorder %v1558, 0.0
  %vm1645 = vcmp.gt.f32.partialorder %v1559, 0.0
  %vm1646 = vcmp.gt.f32.partialorder %v1560, 0.0
  %vm1647 = vcmp.gt.f32.partialorder %v1561, 0.0
  %vm1648 = vcmp.gt.f32.partialorder %v1562, 0.0
  %vm1649 = vcmp.gt.f32.partialorder %v1563, 0.0
  %vm1650 = vcmp.gt.f32.partialorder %v1564, 0.0
  %vm1651 = vcmp.gt.f32.partialorder %v1565, 0.0
  %vm1652 = vcmp.gt.f32.partialorder %v1566, 0.0
  %vm1653 = vcmp.gt.f32.partialorder %v1567, 0.0
  %vm1654 = vcmp.gt.f32.partialorder %v1568, 0.0
  %vm1655 = vcmp.gt.f32.partialorder %v1569, 0.0
  %vm1656 = vcmp.gt.f32.partialorder %v1570, 0.0
  %vm1657 = vcmp.gt.f32.partialorder %v1571, 0.0
  %vm1658 = vcmp.gt.f32.partialorder %v1572, 0.0
  %vm1659 = vcmp.gt.f32.partialorder %v1573, 0.0
  %vm1660 = vcmp.gt.f32.partialorder %v1574, 0.0
  %vm1661 = vcmp.gt.f32.partialorder %v1575, 0.0
  %vm1662 = vcmp.gt.f32.partialorder %v1576, 0.0
  %vm1663 = vcmp.gt.f32.partialorder %v1577, 0.0
  %vm1664 = vcmp.gt.f32.partialorder %v1578, 0.0
  %vm1665 = vcmp.gt.f32.partialorder %v1579, 0.0
  %vm1666 = vcmp.gt.f32.partialorder %v1580, 0.0
  %vm1667 = vcmp.gt.f32.partialorder %v1581, 0.0
  %vm1668 = vcmp.gt.f32.partialorder %v1582, 0.0
  %vm1669 = vcmp.gt.f32.partialorder %v1583, 0.0
  %vm1670 = vcmp.gt.f32.partialorder %v1584, 0.0
  %vm1671 = vcmp.gt.f32.partialorder %v1585, 0.0
  %vm1672 = vcmp.gt.f32.partialorder %v1586, 0.0
  %vm1673 = vcmp.gt.f32.partialorder %v1587, 0.0
  %vm1674 = vcmp.gt.f32.partialorder %v1588, 0.0
  %vm1675 = vcmp.gt.f32.partialorder %v1589, 0.0
  %vm1676 = vcmp.gt.f32.partialorder %v1590, 0.0
  %vm1677 = vcmp.gt.f32.partialorder %v1591, 0.0
  %vm1678 = vcmp.gt.f32.partialorder %v1592, 0.0
  %vm1679 = vcmp.gt.f32.partialorder %v1593, 0.0
  %vm1680 = vcmp.gt.f32.partialorder %v1594, 0.0
  %vm1681 = vcmp.gt.f32.partialorder %v1595, 0.0
  %vm1682 = vcmp.gt.f32.partialorder %v1596, 0.0
  %vm1683 = vcmp.gt.f32.partialorder %v1597, 0.0
  %vm1684 = vcmp.gt.f32.partialorder %v1598, 0.0
  %vm1685 = vcmp.gt.f32.partialorder %v1599, 0.0
  %vm1686 = vcmp.gt.f32.partialorder %v1600, 0.0
  %vm1687 = vcmp.gt.f32.partialorder %v1601, 0.0
  %v1688 = vmul.f32 %v1516, 0.01
  %v1689 = vmul.f32 %v1517, 0.01
  %v1690 = vmul.f32 %v1518, 0.01
  %v1691 = vmul.f32 %v1519, 0.01
  %v1692 = vmul.f32 %v1520, 0.01
  %v1693 = vmul.f32 %v1521, 0.01
  %v1694 = vmul.f32 %v1522, 0.01
  %v1695 = vmul.f32 %v1523, 0.01
  %v1696 = vmul.f32 %v1524, 0.01
  %v1697 = vmul.f32 %v1525, 0.01
  %v1698 = vmul.f32 %v1526, 0.01
  %v1699 = vmul.f32 %v1527, 0.01
  %v1700 = vmul.f32 %v1528, 0.01
  %v1701 = vmul.f32 %v1529, 0.01
  %v1702 = vmul.f32 %v1530, 0.01
  %v1703 = vmul.f32 %v1531, 0.01
  %v1704 = vmul.f32 %v1532, 0.01
  %v1705 = vmul.f32 %v1533, 0.01
  %v1706 = vmul.f32 %v1534, 0.01
  %v1707 = vmul.f32 %v1535, 0.01
  %v1708 = vmul.f32 %v1536, 0.01
  %v1709 = vmul.f32 %v1537, 0.01
  %v1710 = vmul.f32 %v1538, 0.01
  %v1711 = vmul.f32 %v1539, 0.01
  %v1712 = vmul.f32 %v1540, 0.01
  %v1713 = vmul.f32 %v1541, 0.01
  %v1714 = vmul.f32 %v1542, 0.01
  %v1715 = vmul.f32 %v1543, 0.01
  %v1716 = vmul.f32 %v1544, 0.01
  %v1717 = vmul.f32 %v1545, 0.01
  %v1718 = vmul.f32 %v1546, 0.01
  %v1719 = vmul.f32 %v1547, 0.01
  %v1720 = vmul.f32 %v1548, 0.01
  %v1721 = vmul.f32 %v1549, 0.01
  %v1722 = vmul.f32 %v1550, 0.01
  %v1723 = vmul.f32 %v1551, 0.01
  %v1724 = vmul.f32 %v1552, 0.01
  %v1725 = vmul.f32 %v1553, 0.01
  %v1726 = vmul.f32 %v1554, 0.01
  %v1727 = vmul.f32 %v1555, 0.01
  %v1728 = vmul.f32 %v1556, 0.01
  %v1729 = vmul.f32 %v1557, 0.01
  %v1730 = vmul.f32 %v1558, 0.01
  %v1731 = vmul.f32 %v1559, 0.01
  %v1732 = vmul.f32 %v1560, 0.01
  %v1733 = vmul.f32 %v1561, 0.01
  %v1734 = vmul.f32 %v1562, 0.01
  %v1735 = vmul.f32 %v1563, 0.01
  %v1736 = vmul.f32 %v1564, 0.01
  %v1737 = vmul.f32 %v1565, 0.01
  %v1738 = vmul.f32 %v1566, 0.01
  %v1739 = vmul.f32 %v1567, 0.01
  %v1740 = vmul.f32 %v1568, 0.01
  %v1741 = vmul.f32 %v1569, 0.01
  %v1742 = vmul.f32 %v1570, 0.01
  %v1743 = vmul.f32 %v1571, 0.01
  %v1744 = vmul.f32 %v1572, 0.01
  %v1745 = vmul.f32 %v1573, 0.01
  %v1746 = vmul.f32 %v1574, 0.01
  %v1747 = vmul.f32 %v1575, 0.01
  %v1748 = vmul.f32 %v1576, 0.01
  %v1749 = vmul.f32 %v1577, 0.01
  %v1750 = vmul.f32 %v1578, 0.01
  %v1751 = vmul.f32 %v1579, 0.01
  %v1752 = vmul.f32 %v1580, 0.01
  %v1753 = vmul.f32 %v1581, 0.01
  %v1754 = vmul.f32 %v1582, 0.01
  %v1755 = vmul.f32 %v1583, 0.01
  %v1756 = vmul.f32 %v1584, 0.01
  %v1757 = vmul.f32 %v1585, 0.01
  %v1758 = vmul.f32 %v1586, 0.01
  %v1759 = vmul.f32 %v1587, 0.01
  %v1760 = vmul.f32 %v1588, 0.01
  %v1761 = vmul.f32 %v1589, 0.01
  %v1762 = vmul.f32 %v1590, 0.01
  %v1763 = vmul.f32 %v1591, 0.01
  %v1764 = vmul.f32 %v1592, 0.01
  %v1765 = vmul.f32 %v1593, 0.01
  %v1766 = vmul.f32 %v1594, 0.01
  %v1767 = vmul.f32 %v1595, 0.01
  %v1768 = vmul.f32 %v1596, 0.01
  %v1769 = vmul.f32 %v1597, 0.01
  %v1770 = vmul.f32 %v1598, 0.01
  %v1771 = vmul.f32 %v1599, 0.01
  %v1772 = vmul.f32 %v1600, 0.01
  %v1773 = vmul.f32 %v1601, 0.01
  %v1774 = vsel %vm1602, %v1516, %v1688
  %v1775 = vsel %vm1603, %v1517, %v1689
  %v1776 = vsel %vm1604, %v1518, %v1690
  %v1777 = vsel %vm1605, %v1519, %v1691
  %v1778 = vsel %vm1606, %v1520, %v1692
  %v1779 = vsel %vm1607, %v1521, %v1693
  %v1780 = vsel %vm1608, %v1522, %v1694
  %v1781 = vsel %vm1609, %v1523, %v1695
  %v1782 = vsel %vm1610, %v1524, %v1696
  %v1783 = vsel %vm1611, %v1525, %v1697
  %v1784 = vsel %vm1612, %v1526, %v1698
  %v1785 = vsel %vm1613, %v1527, %v1699
  %v1786 = vsel %vm1614, %v1528, %v1700
  %v1787 = vsel %vm1615, %v1529, %v1701
  %v1788 = vsel %vm1616, %v1530, %v1702
  %v1789 = vsel %vm1617, %v1531, %v1703
  %v1790 = vsel %vm1618, %v1532, %v1704
  %v1791 = vsel %vm1619, %v1533, %v1705
  %v1792 = vsel %vm1620, %v1534, %v1706
  %v1793 = vsel %vm1621, %v1535, %v1707
  %v1794 = vsel %vm1622, %v1536, %v1708
  %v1795 = vsel %vm1623, %v1537, %v1709
  %v1796 = vsel %vm1624, %v1538, %v1710
  %v1797 = vsel %vm1625, %v1539, %v1711
  %v1798 = vsel %vm1626, %v1540, %v1712
  %v1799 = vsel %vm1627, %v1541, %v1713
  %v1800 = vsel %vm1628, %v1542, %v1714
  %v1801 = vsel %vm1629, %v1543, %v1715
  %v1802 = vsel %vm1630, %v1544, %v1716
  %v1803 = vsel %vm1631, %v1545, %v1717
  %v1804 = vsel %vm1632, %v1546, %v1718
  %v1805 = vsel %vm1633, %v1547, %v1719
  %v1806 = vsel %vm1634, %v1548, %v1720
  %v1807 = vsel %vm1635, %v1549, %v1721
  %v1808 = vsel %vm1636, %v1550, %v1722
  %v1809 = vsel %vm1637, %v1551, %v1723
  %v1810 = vsel %vm1638, %v1552, %v1724
  %v1811 = vsel %vm1639, %v1553, %v1725
  %v1812 = vsel %vm1640, %v1554, %v1726
  %v1813 = vsel %vm1641, %v1555, %v1727
  %v1814 = vsel %vm1642, %v1556, %v1728
  %v1815 = vsel %vm1643, %v1557, %v1729
  %v1816 = vsel %vm1644, %v1558, %v1730
  %v1817 = vsel %vm1645, %v1559, %v1731
  %v1818 = vsel %vm1646, %v1560, %v1732
  %v1819 = vsel %vm1647, %v1561, %v1733
  %v1820 = vsel %vm1648, %v1562, %v1734
  %v1821 = vsel %vm1649, %v1563, %v1735
  %v1822 = vsel %vm1650, %v1564, %v1736
  %v1823 = vsel %vm1651, %v1565, %v1737
  %v1824 = vsel %vm1652, %v1566, %v1738
  %v1825 = vsel %vm1653, %v1567, %v1739
  %v1826 = vsel %vm1654, %v1568, %v1740
  %v1827 = vsel %vm1655, %v1569, %v1741
  %v1828 = vsel %vm1656, %v1570, %v1742
  %v1829 = vsel %vm1657, %v1571, %v1743
  %v1830 = vsel %vm1658, %v1572, %v1744
  %v1831 = vsel %vm1659, %v1573, %v1745
  %v1832 = vsel %vm1660, %v1574, %v1746
  %v1833 = vsel %vm1661, %v1575, %v1747
  %v1834 = vsel %vm1662, %v1576, %v1748
  %v1835 = vsel %vm1663, %v1577, %v1749
  %v1836 = vsel %vm1664, %v1578, %v1750
  %v1837 = vsel %vm1665, %v1579, %v1751
  %v1838 = vsel %vm1666, %v1580, %v1752
  %v1839 = vsel %vm1667, %v1581, %v1753
  %v1840 = vsel %vm1668, %v1582, %v1754
  %v1841 = vsel %vm1669, %v1583, %v1755
  %v1842 = vsel %vm1670, %v1584, %v1756
  %v1843 = vsel %vm1671, %v1585, %v1757
  %v1844 = vsel %vm1672, %v1586, %v1758
  %v1845 = vsel %vm1673, %v1587, %v1759
  %v1846 = vsel %vm1674, %v1588, %v1760
  %v1847 = vsel %vm1675, %v1589, %v1761
  %v1848 = vsel %vm1676, %v1590, %v1762
  %v1849 = vsel %vm1677, %v1591, %v1763
  %v1850 = vsel %vm1678, %v1592, %v1764
  %v1851 = vsel %vm1679, %v1593, %v1765
  %v1852 = vsel %vm1680, %v1594, %v1766
  %v1853 = vsel %vm1681, %v1595, %v1767
  %v1854 = vsel %vm1682, %v1596, %v1768
  %v1855 = vsel %vm1683, %v1597, %v1769
  %v1856 = vsel %vm1684, %v1598, %v1770
  %v1857 = vsel %vm1685, %v1599, %v1771
  %v1858 = vsel %vm1686, %v1600, %v1772
  %v1859 = vsel %vm1687, %v1601, %v1773
  %v1860 = vmax.f32 %v875, %v1774
  %v1861 = vmax.f32 %v876, %v1775
  %v1862 = vmax.f32 %v877, %v1776
  %v1863 = vmax.f32 %v878, %v1777
  %v1864 = vmax.f32 %v879, %v1778
  %v1865 = vmax.f32 %v880, %v1779
  %v1866 = vmax.f32 %v881, %v1780
  %v1867 = vmax.f32 %v882, %v1781
  %v1868 = vmax.f32 %v883, %v1782
  %v1869 = vmax.f32 %v884, %v1783
  %v1870 = vmax.f32 %v885, %v1784
  %v1871 = vmax.f32 %v886, %v1785
  %v1872 = vmax.f32 %v887, %v1786
  %v1873 = vmax.f32 %v888, %v1787
  %v1874 = vmax.f32 %v889, %v1788
  %v1875 = vmax.f32 %v890, %v1789
  %v1876 = vmax.f32 %v891, %v1790
  %v1877 = vmax.f32 %v892, %v1791
  %v1878 = vmax.f32 %v893, %v1792
  %v1879 = vmax.f32 %v894, %v1793
  %v1880 = vmax.f32 %v895, %v1794
  %v1881 = vmax.f32 %v896, %v1795
  %v1882 = vmax.f32 %v897, %v1796
  %v1883 = vmax.f32 %v898, %v1797
  %v1884 = vmax.f32 %v899, %v1798
  %v1885 = vmax.f32 %v900, %v1799
  %v1886 = vmax.f32 %v901, %v1800
  %v1887 = vmax.f32 %v902, %v1801
  %v1888 = vmax.f32 %v903, %v1802
  %v1889 = vmax.f32 %v904, %v1803
  %v1890 = vmax.f32 %v905, %v1804
  %v1891 = vmax.f32 %v906, %v1805
  %v1892 = vmax.f32 %v907, %v1806
  %v1893 = vmax.f32 %v908, %v1807
  %v1894 = vmax.f32 %v909, %v1808
  %v1895 = vmax.f32 %v910, %v1809
  %v1896 = vmax.f32 %v911, %v1810
  %v1897 = vmax.f32 %v912, %v1811
  %v1898 = vmax.f32 %v913, %v1812
  %v1899 = vmax.f32 %v914, %v1813
  %v1900 = vmax.f32 %v915, %v1814
  %v1901 = vmax.f32 %v916, %v1815
  %v1902 = vmax.f32 %v917, %v1816
  %v1903 = vmax.f32 %v918, %v1817
  %v1904 = vmax.f32 %v919, %v1818
  %v1905 = vmax.f32 %v920, %v1819
  %v1906 = vmax.f32 %v921, %v1820
  %v1907 = vmax.f32 %v922, %v1821
  %v1908 = vmax.f32 %v923, %v1822
  %v1909 = vmax.f32 %v924, %v1823
  %v1910 = vmax.f32 %v925, %v1824
  %v1911 = vmax.f32 %v926, %v1825
  %v1912 = vmax.f32 %v927, %v1826
  %v1913 = vmax.f32 %v928, %v1827
  %v1914 = vmax.f32 %v929, %v1828
  %v1915 = vmax.f32 %v930, %v1829
  %v1916 = vmax.f32 %v931, %v1830
  %v1917 = vmax.f32 %v932, %v1831
  %v1918 = vmax.f32 %v933, %v1832
  %v1919 = vmax.f32 %v934, %v1833
  %v1920 = vmax.f32 %v935, %v1834
  %v1921 = vmax.f32 %v936, %v1835
  %v1922 = vmax.f32 %v937, %v1836
  %v1923 = vmax.f32 %v938, %v1837
  %v1924 = vmax.f32 %v939, %v1838
  %v1925 = vmax.f32 %v940, %v1839
  %v1926 = vmax.f32 %v941, %v1840
  %v1927 = vmax.f32 %v942, %v1841
  %v1928 = vmax.f32 %v943, %v1842
  %v1929 = vmax.f32 %v944, %v1843
  %v1930 = vmax.f32 %v945, %v1844
  %v1931 = vmax.f32 %v946, %v1845
  %v1932 = vmax.f32 %v947, %v1846
  %v1933 = vmax.f32 %v948, %v1847
  %v1934 = vmax.f32 %v949, %v1848
  %v1935 = vmax.f32 %v950, %v1849
  %v1936 = vmax.f32 %v951, %v1850
  %v1937 = vmax.f32 %v952, %v1851
  %v1938 = vmax.f32 %v953, %v1852
  %v1939 = vmax.f32 %v954, %v1853
  %v1940 = vmax.f32 %v955, %v1854
  %v1941 = vmax.f32 %v956, %v1855
  %v1942 = vmax.f32 %v957, %v1856
  %v1943 = vmax.f32 %v958, %v1857
  %v1944 = vmax.f32 %v959, %v1858
  %v1945 = vmax.f32 %v960, %v1859
  %s1946 = scalar_lea.vmem %s0, 344
  %v1947 = vld [vmem:[%s1946] sm:$0xf]
  %v1948 = vld [vmem:[%s1946 + $0x4] sm:$0xf]
  %v1949 = vld [vmem:[%s1946 + $0x8] sm:$0xf]
  %v1950 = vld [vmem:[%s1946 + $0xc] sm:$0xf]
  %v1951 = vld [vmem:[%s1946 + $0x10] sm:$0xf]
  %v1952 = vld [vmem:[%s1946 + $0x14] sm:$0xf]
  %v1953 = vld [vmem:[%s1946 + $0x18] sm:$0xf]
  %v1954 = vld [vmem:[%s1946 + $0x1c] sm:$0xf]
  %v1955 = vld [vmem:[%s1946 + $0x20] sm:$0xf]
  %v1956 = vld [vmem:[%s1946 + $0x24] sm:$0xf]
  %v1957 = vld [vmem:[%s1946 + $0x28] sm:$0xf]
  %v1958 = vld [vmem:[%s1946 + $0x2c] sm:$0xf]
  %v1959 = vld [vmem:[%s1946 + $0x30] sm:$0xf]
  %v1960 = vld [vmem:[%s1946 + $0x34] sm:$0xf]
  %v1961 = vld [vmem:[%s1946 + $0x38] sm:$0xf]
  %v1962 = vld [vmem:[%s1946 + $0x3c] sm:$0xf]
  %v1963 = vld [vmem:[%s1946 + $0x40] sm:$0xf]
  %v1964 = vld [vmem:[%s1946 + $0x44] sm:$0xf]
  %v1965 = vld [vmem:[%s1946 + $0x48] sm:$0xf]
  %v1966 = vld [vmem:[%s1946 + $0x4c] sm:$0xf]
  %v1967 = vld [vmem:[%s1946 + $0x50] sm:$0xf]
  %v1968 = vld [vmem:[%s1946 + $0x54] sm:$0xf]
  %v1969 = vld [vmem:[%s1946 + $0x58] sm:$0xf]
  %v1970 = vld [vmem:[%s1946 + $0x5c] sm:$0xf]
  %v1971 = vld [vmem:[%s1946 + $0x60] sm:$0xf]
  %v1972 = vld [vmem:[%s1946 + $0x64] sm:$0xf]
  %v1973 = vld [vmem:[%s1946 + $0x68] sm:$0xf]
  %v1974 = vld [vmem:[%s1946 + $0x6c] sm:$0xf]
  %v1975 = vld [vmem:[%s1946 + $0x70] sm:$0xf]
  %v1976 = vld [vmem:[%s1946 + $0x74] sm:$0xf]
  %v1977 = vld [vmem:[%s1946 + $0x78] sm:$0xf]
  %v1978 = vld [vmem:[%s1946 + $0x7c] sm:$0xf]
  %v1979 = vld [vmem:[%s1946 + $0x80] sm:$0xf]
  %v1980 = vld [vmem:[%s1946 + $0x84] sm:$0xf]
  %v1981 = vld [vmem:[%s1946 + $0x88] sm:$0xf]
  %v1982 = vld [vmem:[%s1946 + $0x8c] sm:$0xf]
  %v1983 = vld [vmem:[%s1946 + $0x90] sm:$0xf]
  %v1984 = vld [vmem:[%s1946 + $0x94] sm:$0xf]
  %v1985 = vld [vmem:[%s1946 + $0x98] sm:$0xf]
  %v1986 = vld [vmem:[%s1946 + $0x9c] sm:$0xf]
  %v1987 = vld [vmem:[%s1946 + $0xa0] sm:$0xf]
  %v1988 = vld [vmem:[%s1946 + $0xa4] sm:$0xf]
  %v1989 = vld [vmem:[%s1946 + $0xa8] sm:$0x1]
  %v2033 = vunpack.c.l.b16 %v1947
  %v2034 = vunpack.c.l.b16 %v1948
  %v2035 = vunpack.c.l.b16 %v1949
  %v2036 = vunpack.c.l.b16 %v1950
  %v2037 = vunpack.c.l.b16 %v1951
  %v2038 = vunpack.c.l.b16 %v1952
  %v2039 = vunpack.c.l.b16 %v1953
  %v2040 = vunpack.c.l.b16 %v1954
  %v2041 = vunpack.c.l.b16 %v1955
  %v2042 = vunpack.c.l.b16 %v1956
  %v2043 = vunpack.c.l.b16 %v1957
  %v2044 = vunpack.c.l.b16 %v1958
  %v2045 = vunpack.c.l.b16 %v1959
  %v2046 = vunpack.c.l.b16 %v1960
  %v2047 = vunpack.c.l.b16 %v1961
  %v2048 = vunpack.c.l.b16 %v1962
  %v2049 = vunpack.c.l.b16 %v1963
  %v2050 = vunpack.c.l.b16 %v1964
  %v2051 = vunpack.c.l.b16 %v1965
  %v2052 = vunpack.c.l.b16 %v1966
  %v2053 = vunpack.c.l.b16 %v1967
  %v2054 = vunpack.c.l.b16 %v1968
  %v2055 = vunpack.c.l.b16 %v1969
  %v2056 = vunpack.c.l.b16 %v1970
  %v2057 = vunpack.c.l.b16 %v1971
  %v2058 = vunpack.c.l.b16 %v1972
  %v2059 = vunpack.c.l.b16 %v1973
  %v2060 = vunpack.c.l.b16 %v1974
  %v2061 = vunpack.c.l.b16 %v1975
  %v2062 = vunpack.c.l.b16 %v1976
  %v2063 = vunpack.c.l.b16 %v1977
  %v2064 = vunpack.c.l.b16 %v1978
  %v2065 = vunpack.c.l.b16 %v1979
  %v2066 = vunpack.c.l.b16 %v1980
  %v2067 = vunpack.c.l.b16 %v1981
  %v2068 = vunpack.c.l.b16 %v1982
  %v2069 = vunpack.c.l.b16 %v1983
  %v2070 = vunpack.c.l.b16 %v1984
  %v2071 = vunpack.c.l.b16 %v1985
  %v2072 = vunpack.c.l.b16 %v1986
  %v2073 = vunpack.c.l.b16 %v1987
  %v2074 = vunpack.c.l.b16 %v1988
  %v2075 = vunpack.c.l.b16 %v1989
  %v2076 = vpack.c.b16 %v2034, %v2033
  %v2077 = vpack.c.b16 %v2036, %v2035
  %v2078 = vpack.c.b16 %v2038, %v2037
  %v2079 = vpack.c.b16 %v2040, %v2039
  %v2080 = vpack.c.b16 %v2042, %v2041
  %v2081 = vpack.c.b16 %v2044, %v2043
  %v2082 = vpack.c.b16 %v2046, %v2045
  %v2083 = vpack.c.b16 %v2048, %v2047
  %v2084 = vpack.c.b16 %v2050, %v2049
  %v2085 = vpack.c.b16 %v2052, %v2051
  %v2086 = vpack.c.b16 %v2054, %v2053
  %v2087 = vpack.c.b16 %v2056, %v2055
  %v2088 = vpack.c.b16 %v2058, %v2057
  %v2089 = vpack.c.b16 %v2060, %v2059
  %v2090 = vpack.c.b16 %v2062, %v2061
  %v2091 = vpack.c.b16 %v2064, %v2063
  %v2092 = vpack.c.b16 %v2066, %v2065
  %v2093 = vpack.c.b16 %v2068, %v2067
  %v2094 = vpack.c.b16 %v2070, %v2069
  %v2095 = vpack.c.b16 %v2072, %v2071
  %v2096 = vpack.c.b16 %v2074, %v2073
  %v2097 = vpack.c.b16 %v2075, %v2075
  %v2099 = vsel %vm181, %v2076, 0
  %v2102 = vsel %vm181, %v2077, 0
  %v2105 = vsel %vm181, %v2078, 0
  %v2108 = vsel %vm181, %v2079, 0
  %v2111 = vsel %vm181, %v2080, 0
  %v2114 = vsel %vm181, %v2081, 0
  %v2117 = vsel %vm181, %v2082, 0
  %v2120 = vsel %vm181, %v2083, 0
  %v2123 = vsel %vm181, %v2084, 0
  %v2126 = vsel %vm181, %v2085, 0
  %v2129 = vsel %vm181, %v2086, 0
  %v2132 = vsel %vm181, %v2087, 0
  %v2135 = vsel %vm181, %v2088, 0
  %v2138 = vsel %vm181, %v2089, 0
  %v2141 = vsel %vm181, %v2090, 0
  %v2144 = vsel %vm181, %v2091, 0
  %v2147 = vsel %vm181, %v2092, 0
  %v2150 = vsel %vm181, %v2093, 0
  %v2153 = vsel %vm181, %v2094, 0
  %v2156 = vsel %vm181, %v2095, 0
  %v2159 = vsel %vm181, %v2096, 0
  %v2162 = vsel %vm181, %v2097, 0
  %2164 = vmatprep.subr.bf16.mxu0 %v256
  %2165 = vmatpush1.bf16.msra.mxu0 %v253
  %2166 = vmatprep.subr.bf16.mxu0 0
  %2167 = vmatpush1.bf16.msra.mxu0 0
  %2168 = vmatprep.subr.bf16.mxu0 0
  %2169 = vmatpush1.bf16.msra.mxu0 0
  %2170 = vmatprep.subr.bf16.mxu0 0
  %2171 = vmatpush1.bf16.msra.mxu0 0
  %2172 = vmatprep.subr.bf16.mxu0 0
  %2173 = vmatpush1.bf16.msra.mxu0 0
  %2174 = vmatprep.subr.bf16.mxu0 0
  %2175 = vmatpush1.bf16.msra.mxu0 0
  %2176 = vmatprep.subr.bf16.mxu0 0
  %2177 = vmatpush1.bf16.msra.mxu0 0
  %2178 = vmatprep.subr.bf16.mxu0 0
  %2179 = vmatpush1.bf16.msra.mxu0 0
  %2180 = vmatprep.subr.bf16.mxu0 0
  %2181 = vmatpush1.bf16.msra.mxu0 0
  %2182 = vmatprep.subr.bf16.mxu0 0
  %2183 = vmatpush1.bf16.msra.mxu0 0
  %2184 = vmatprep.subr.bf16.mxu0 0
  %2185 = vmatpush1.bf16.msra.mxu0 0
  %2186 = vmatprep.subr.bf16.mxu0 0
  %2187 = vmatpush1.bf16.msra.mxu0 0
  %2188 = vmatprep.subr.bf16.mxu0 0
  %2189 = vmatpush1.bf16.msra.mxu0 0
  %2190 = vmatprep.subr.bf16.mxu0 0
  %2191 = vmatpush1.bf16.msra.mxu0 0
  %2192 = vmatprep.subr.bf16.mxu0 0
  %2193 = vmatpush1.bf16.msra.mxu0 0
  %2194 = vmatprep.subr.bf16.mxu0 0
  %2195 = vmatpush1.bf16.msra.mxu0 0
  %2196 = vmatprep.mubr.bf16.mxu0 0
  %2197 = vmatmul.mubr.bf16.gmra.mrb[0].mxu0 %v2099
  %v2198 = vpop.f32.mrb[0].mxu0
  %v2199 = vadd.f32 0.0, %v2198
  %v2200 = vpop.f32.mrb[0].mxu0
  %v2201 = vadd.f32 0.0, %v2200
  %v2202 = vpop.f32.mrb[0].mxu0
  %v2203 = vadd.f32 0.0, %v2202
  %v2204 = vpop.f32.mrb[0].mxu0
  %v2205 = vadd.f32 0.0, %v2204
  %2206 = vmatprep.mubr.bf16.mxu0 0
  %2207 = vmatmul.mubr.bf16.gmra.mrb[0].mxu0 %v2102
  %v2208 = vpop.f32.mrb[0].mxu0
  %v2209 = vadd.f32 0.0, %v2208
  %v2210 = vpop.f32.mrb[0].mxu0
  %v2211 = vadd.f32 0.0, %v2210
  %v2212 = vpop.f32.mrb[0].mxu0
  %v2213 = vadd.f32 0.0, %v2212
  %v2214 = vpop.f32.mrb[0].mxu0
  %v2215 = vadd.f32 0.0, %v2214
  %2216 = vmatprep.mubr.bf16.mxu0 0
  %2217 = vmatmul.mubr.bf16.gmra.mrb[0].mxu0 %v2105
  %v2218 = vpop.f32.mrb[0].mxu0
  %v2219 = vadd.f32 0.0, %v2218
  %v2220 = vpop.f32.mrb[0].mxu0
  %v2221 = vadd.f32 0.0, %v2220
  %v2222 = vpop.f32.mrb[0].mxu0
  %v2223 = vadd.f32 0.0, %v2222
  %v2224 = vpop.f32.mrb[0].mxu0
  %v2225 = vadd.f32 0.0, %v2224
  %2226 = vmatprep.mubr.bf16.mxu0 0
  %2227 = vmatmul.mubr.bf16.gmra.mrb[0].mxu0 %v2108
  %v2228 = vpop.f32.mrb[0].mxu0
  %v2229 = vadd.f32 0.0, %v2228
  %v2230 = vpop.f32.mrb[0].mxu0
  %v2231 = vadd.f32 0.0, %v2230
  %v2232 = vpop.f32.mrb[0].mxu0
  %v2233 = vadd.f32 0.0, %v2232
  %v2234 = vpop.f32.mrb[0].mxu0
  %v2235 = vadd.f32 0.0, %v2234
  %2236 = vmatprep.mubr.bf16.mxu0 0
  %2237 = vmatmul.mubr.bf16.gmra.mrb[0].mxu0 %v2111
  %v2238 = vpop.f32.mrb[0].mxu0
  %v2239 = vadd.f32 0.0, %v2238
  %v2240 = vpop.f32.mrb[0].mxu0
  %v2241 = vadd.f32 0.0, %v2240
  %v2242 = vpop.f32.mrb[0].mxu0
  %v2243 = vadd.f32 0.0, %v2242
  %v2244 = vpop.f32.mrb[0].mxu0
  %v2245 = vadd.f32 0.0, %v2244
  %2246 = vmatprep.mubr.bf16.mxu0 0
  %2247 = vmatmul.mubr.bf16.gmra.mrb[0].mxu0 %v2114
  %v2248 = vpop.f32.mrb[0].mxu0
  %v2249 = vadd.f32 0.0, %v2248
  %v2250 = vpop.f32.mrb[0].mxu0
  %v2251 = vadd.f32 0.0, %v2250
  %v2252 = vpop.f32.mrb[0].mxu0
  %v2253 = vadd.f32 0.0, %v2252
  %v2254 = vpop.f32.mrb[0].mxu0
  %v2255 = vadd.f32 0.0, %v2254
  %2256 = vmatprep.mubr.bf16.mxu0 0
  %2257 = vmatmul.mubr.bf16.gmra.mrb[0].mxu0 %v2117
  %v2258 = vpop.f32.mrb[0].mxu0
  %v2259 = vadd.f32 0.0, %v2258
  %v2260 = vpop.f32.mrb[0].mxu0
  %v2261 = vadd.f32 0.0, %v2260
  %v2262 = vpop.f32.mrb[0].mxu0
  %v2263 = vadd.f32 0.0, %v2262
  %v2264 = vpop.f32.mrb[0].mxu0
  %v2265 = vadd.f32 0.0, %v2264
  %2266 = vmatprep.mubr.bf16.mxu0 0
  %2267 = vmatmul.mubr.bf16.gmra.mrb[0].mxu0 %v2120
  %v2268 = vpop.f32.mrb[0].mxu0
  %v2269 = vadd.f32 0.0, %v2268
  %v2270 = vpop.f32.mrb[0].mxu0
  %v2271 = vadd.f32 0.0, %v2270
  %v2272 = vpop.f32.mrb[0].mxu0
  %v2273 = vadd.f32 0.0, %v2272
  %v2274 = vpop.f32.mrb[0].mxu0
  %v2275 = vadd.f32 0.0, %v2274
  %2276 = vmatprep.mubr.bf16.mxu0 0
  %2277 = vmatmul.mubr.bf16.gmra.mrb[0].mxu0 %v2123
  %v2278 = vpop.f32.mrb[0].mxu0
  %v2279 = vadd.f32 0.0, %v2278
  %v2280 = vpop.f32.mrb[0].mxu0
  %v2281 = vadd.f32 0.0, %v2280
  %v2282 = vpop.f32.mrb[0].mxu0
  %v2283 = vadd.f32 0.0, %v2282
  %v2284 = vpop.f32.mrb[0].mxu0
  %v2285 = vadd.f32 0.0, %v2284
  %2286 = vmatprep.mubr.bf16.mxu0 0
  %2287 = vmatmul.mubr.bf16.gmra.mrb[0].mxu0 %v2126
  %v2288 = vpop.f32.mrb[0].mxu0
  %v2289 = vadd.f32 0.0, %v2288
  %v2290 = vpop.f32.mrb[0].mxu0
  %v2291 = vadd.f32 0.0, %v2290
  %v2292 = vpop.f32.mrb[0].mxu0
  %v2293 = vadd.f32 0.0, %v2292
  %v2294 = vpop.f32.mrb[0].mxu0
  %v2295 = vadd.f32 0.0, %v2294
  %2296 = vmatprep.mubr.bf16.mxu0 0
  %2297 = vmatmul.mubr.bf16.gmra.mrb[0].mxu0 %v2129
  %v2298 = vpop.f32.mrb[0].mxu0
  %v2299 = vadd.f32 0.0, %v2298
  %v2300 = vpop.f32.mrb[0].mxu0
  %v2301 = vadd.f32 0.0, %v2300
  %v2302 = vpop.f32.mrb[0].mxu0
  %v2303 = vadd.f32 0.0, %v2302
  %v2304 = vpop.f32.mrb[0].mxu0
  %v2305 = vadd.f32 0.0, %v2304
  %2306 = vmatprep.mubr.bf16.mxu0 0
  %2307 = vmatmul.mubr.bf16.gmra.mrb[0].mxu0 %v2132
  %v2308 = vpop.f32.mrb[0].mxu0
  %v2309 = vadd.f32 0.0, %v2308
  %v2310 = vpop.f32.mrb[0].mxu0
  %v2311 = vadd.f32 0.0, %v2310
  %v2312 = vpop.f32.mrb[0].mxu0
  %v2313 = vadd.f32 0.0, %v2312
  %v2314 = vpop.f32.mrb[0].mxu0
  %v2315 = vadd.f32 0.0, %v2314
  %2316 = vmatprep.mubr.bf16.mxu0 0
  %2317 = vmatmul.mubr.bf16.gmra.mrb[0].mxu0 %v2135
  %v2318 = vpop.f32.mrb[0].mxu0
  %v2319 = vadd.f32 0.0, %v2318
  %v2320 = vpop.f32.mrb[0].mxu0
  %v2321 = vadd.f32 0.0, %v2320
  %v2322 = vpop.f32.mrb[0].mxu0
  %v2323 = vadd.f32 0.0, %v2322
  %v2324 = vpop.f32.mrb[0].mxu0
  %v2325 = vadd.f32 0.0, %v2324
  %2326 = vmatprep.mubr.bf16.mxu0 0
  %2327 = vmatmul.mubr.bf16.gmra.mrb[0].mxu0 %v2138
  %v2328 = vpop.f32.mrb[0].mxu0
  %v2329 = vadd.f32 0.0, %v2328
  %v2330 = vpop.f32.mrb[0].mxu0
  %v2331 = vadd.f32 0.0, %v2330
  %v2332 = vpop.f32.mrb[0].mxu0
  %v2333 = vadd.f32 0.0, %v2332
  %v2334 = vpop.f32.mrb[0].mxu0
  %v2335 = vadd.f32 0.0, %v2334
  %2336 = vmatprep.mubr.bf16.mxu0 0
  %2337 = vmatmul.mubr.bf16.gmra.mrb[0].mxu0 %v2141
  %v2338 = vpop.f32.mrb[0].mxu0
  %v2339 = vadd.f32 0.0, %v2338
  %v2340 = vpop.f32.mrb[0].mxu0
  %v2341 = vadd.f32 0.0, %v2340
  %v2342 = vpop.f32.mrb[0].mxu0
  %v2343 = vadd.f32 0.0, %v2342
  %v2344 = vpop.f32.mrb[0].mxu0
  %v2345 = vadd.f32 0.0, %v2344
  %2346 = vmatprep.mubr.bf16.mxu0 0
  %2347 = vmatmul.mubr.bf16.gmra.mrb[0].mxu0 %v2144
  %v2348 = vpop.f32.mrb[0].mxu0
  %v2349 = vadd.f32 0.0, %v2348
  %v2350 = vpop.f32.mrb[0].mxu0
  %v2351 = vadd.f32 0.0, %v2350
  %v2352 = vpop.f32.mrb[0].mxu0
  %v2353 = vadd.f32 0.0, %v2352
  %v2354 = vpop.f32.mrb[0].mxu0
  %v2355 = vadd.f32 0.0, %v2354
  %2356 = vmatprep.mubr.bf16.mxu0 0
  %2357 = vmatmul.mubr.bf16.gmra.mrb[0].mxu0 %v2147
  %v2358 = vpop.f32.mrb[0].mxu0
  %v2359 = vadd.f32 0.0, %v2358
  %v2360 = vpop.f32.mrb[0].mxu0
  %v2361 = vadd.f32 0.0, %v2360
  %v2362 = vpop.f32.mrb[0].mxu0
  %v2363 = vadd.f32 0.0, %v2362
  %v2364 = vpop.f32.mrb[0].mxu0
  %v2365 = vadd.f32 0.0, %v2364
  %2366 = vmatprep.mubr.bf16.mxu0 0
  %2367 = vmatmul.mubr.bf16.gmra.mrb[0].mxu0 %v2150
  %v2368 = vpop.f32.mrb[0].mxu0
  %v2369 = vadd.f32 0.0, %v2368
  %v2370 = vpop.f32.mrb[0].mxu0
  %v2371 = vadd.f32 0.0, %v2370
  %v2372 = vpop.f32.mrb[0].mxu0
  %v2373 = vadd.f32 0.0, %v2372
  %v2374 = vpop.f32.mrb[0].mxu0
  %v2375 = vadd.f32 0.0, %v2374
  %2376 = vmatprep.mubr.bf16.mxu0 0
  %2377 = vmatmul.mubr.bf16.gmra.mrb[0].mxu0 %v2153
  %v2378 = vpop.f32.mrb[0].mxu0
  %v2379 = vadd.f32 0.0, %v2378
  %v2380 = vpop.f32.mrb[0].mxu0
  %v2381 = vadd.f32 0.0, %v2380
  %v2382 = vpop.f32.mrb[0].mxu0
  %v2383 = vadd.f32 0.0, %v2382
  %v2384 = vpop.f32.mrb[0].mxu0
  %v2385 = vadd.f32 0.0, %v2384
  %2386 = vmatprep.mubr.bf16.mxu0 0
  %2387 = vmatmul.mubr.bf16.gmra.mrb[0].mxu0 %v2156
  %v2388 = vpop.f32.mrb[0].mxu0
  %v2389 = vadd.f32 0.0, %v2388
  %v2390 = vpop.f32.mrb[0].mxu0
  %v2391 = vadd.f32 0.0, %v2390
  %v2392 = vpop.f32.mrb[0].mxu0
  %v2393 = vadd.f32 0.0, %v2392
  %v2394 = vpop.f32.mrb[0].mxu0
  %v2395 = vadd.f32 0.0, %v2394
  %2396 = vmatprep.mubr.bf16.mxu0 0
  %2397 = vmatmul.mubr.bf16.gmra.mrb[0].mxu0 %v2159
  %v2398 = vpop.f32.mrb[0].mxu0
  %v2399 = vadd.f32 0.0, %v2398
  %v2400 = vpop.f32.mrb[0].mxu0
  %v2401 = vadd.f32 0.0, %v2400
  %v2402 = vpop.f32.mrb[0].mxu0
  %v2403 = vadd.f32 0.0, %v2402
  %v2404 = vpop.f32.mrb[0].mxu0
  %v2405 = vadd.f32 0.0, %v2404
  %2406 = vmatprep.mubr.bf16.mxu0 0
  %2407 = vmatmul.mubr.bf16.gmra.mrb[0].mxu0 %v2162
  %v2408 = vpop.f32.mrb[0].mxu0
  %v2409 = vadd.f32 0.0, %v2408
  %v2410 = vpop.f32.mrb[0].mxu0
  %v2411 = vadd.f32 0.0, %v2410
  %v2412 = vpop.f32.mrb[0].mxu0
  %v2413 = vpop.f32.mrb[0].mxu0
  %2414 = vdwg.mxu0
  %v2415 = vmul.f32 %v2199, %v513
  %v2416 = vmul.f32 %v2201, %v517
  %v2417 = vmul.f32 %v2203, %v513
  %v2418 = vmul.f32 %v2205, %v517
  %v2419 = vmul.f32 %v2209, %v513
  %v2420 = vmul.f32 %v2211, %v517
  %v2421 = vmul.f32 %v2213, %v513
  %v2422 = vmul.f32 %v2215, %v517
  %v2423 = vmul.f32 %v2219, %v513
  %v2424 = vmul.f32 %v2221, %v517
  %v2425 = vmul.f32 %v2223, %v513
  %v2426 = vmul.f32 %v2225, %v517
  %v2427 = vmul.f32 %v2229, %v513
  %v2428 = vmul.f32 %v2231, %v517
  %v2429 = vmul.f32 %v2233, %v513
  %v2430 = vmul.f32 %v2235, %v517
  %v2431 = vmul.f32 %v2239, %v513
  %v2432 = vmul.f32 %v2241, %v517
  %v2433 = vmul.f32 %v2243, %v513
  %v2434 = vmul.f32 %v2245, %v517
  %v2435 = vmul.f32 %v2249, %v513
  %v2436 = vmul.f32 %v2251, %v517
  %v2437 = vmul.f32 %v2253, %v513
  %v2438 = vmul.f32 %v2255, %v517
  %v2439 = vmul.f32 %v2259, %v513
  %v2440 = vmul.f32 %v2261, %v517
  %v2441 = vmul.f32 %v2263, %v513
  %v2442 = vmul.f32 %v2265, %v517
  %v2443 = vmul.f32 %v2269, %v513
  %v2444 = vmul.f32 %v2271, %v517
  %v2445 = vmul.f32 %v2273, %v513
  %v2446 = vmul.f32 %v2275, %v517
  %v2447 = vmul.f32 %v2279, %v513
  %v2448 = vmul.f32 %v2281, %v517
  %v2449 = vmul.f32 %v2283, %v513
  %v2450 = vmul.f32 %v2285, %v517
  %v2451 = vmul.f32 %v2289, %v513
  %v2452 = vmul.f32 %v2291, %v517
  %v2453 = vmul.f32 %v2293, %v513
  %v2454 = vmul.f32 %v2295, %v517
  %v2455 = vmul.f32 %v2299, %v513
  %v2456 = vmul.f32 %v2301, %v517
  %v2457 = vmul.f32 %v2303, %v513
  %v2458 = vmul.f32 %v2305, %v517
  %v2459 = vmul.f32 %v2309, %v513
  %v2460 = vmul.f32 %v2311, %v517
  %v2461 = vmul.f32 %v2313, %v513
  %v2462 = vmul.f32 %v2315, %v517
  %v2463 = vmul.f32 %v2319, %v513
  %v2464 = vmul.f32 %v2321, %v517
  %v2465 = vmul.f32 %v2323, %v513
  %v2466 = vmul.f32 %v2325, %v517
  %v2467 = vmul.f32 %v2329, %v513
  %v2468 = vmul.f32 %v2331, %v517
  %v2469 = vmul.f32 %v2333, %v513
  %v2470 = vmul.f32 %v2335, %v517
  %v2471 = vmul.f32 %v2339, %v513
  %v2472 = vmul.f32 %v2341, %v517
  %v2473 = vmul.f32 %v2343, %v513
  %v2474 = vmul.f32 %v2345, %v517
  %v2475 = vmul.f32 %v2349, %v513
  %v2476 = vmul.f32 %v2351, %v517
  %v2477 = vmul.f32 %v2353, %v513
  %v2478 = vmul.f32 %v2355, %v517
  %v2479 = vmul.f32 %v2359, %v513
  %v2480 = vmul.f32 %v2361, %v517
  %v2481 = vmul.f32 %v2363, %v513
  %v2482 = vmul.f32 %v2365, %v517
  %v2483 = vmul.f32 %v2369, %v513
  %v2484 = vmul.f32 %v2371, %v517
  %v2485 = vmul.f32 %v2373, %v513
  %v2486 = vmul.f32 %v2375, %v517
  %v2487 = vmul.f32 %v2379, %v513
  %v2488 = vmul.f32 %v2381, %v517
  %v2489 = vmul.f32 %v2383, %v513
  %v2490 = vmul.f32 %v2385, %v517
  %v2491 = vmul.f32 %v2389, %v513
  %v2492 = vmul.f32 %v2391, %v517
  %v2493 = vmul.f32 %v2393, %v513
  %v2494 = vmul.f32 %v2395, %v517
  %v2495 = vmul.f32 %v2399, %v513
  %v2496 = vmul.f32 %v2401, %v517
  %v2497 = vmul.f32 %v2403, %v513
  %v2498 = vmul.f32 %v2405, %v517
  %v2499 = vmul.f32 %v2409, %v513
  %v2500 = vmul.f32 %v2411, %v517
  %v2501 = vadd.f32 %v2415, %v610
  %v2502 = vadd.f32 %v2416, %v614
  %v2503 = vadd.f32 %v2417, %v610
  %v2504 = vadd.f32 %v2418, %v614
  %v2505 = vadd.f32 %v2419, %v610
  %v2506 = vadd.f32 %v2420, %v614
  %v2507 = vadd.f32 %v2421, %v610
  %v2508 = vadd.f32 %v2422, %v614
  %v2509 = vadd.f32 %v2423, %v610
  %v2510 = vadd.f32 %v2424, %v614
  %v2511 = vadd.f32 %v2425, %v610
  %v2512 = vadd.f32 %v2426, %v614
  %v2513 = vadd.f32 %v2427, %v610
  %v2514 = vadd.f32 %v2428, %v614
  %v2515 = vadd.f32 %v2429, %v610
  %v2516 = vadd.f32 %v2430, %v614
  %v2517 = vadd.f32 %v2431, %v610
  %v2518 = vadd.f32 %v2432, %v614
  %v2519 = vadd.f32 %v2433, %v610
  %v2520 = vadd.f32 %v2434, %v614
  %v2521 = vadd.f32 %v2435, %v610
  %v2522 = vadd.f32 %v2436, %v614
  %v2523 = vadd.f32 %v2437, %v610
  %v2524 = vadd.f32 %v2438, %v614
  %v2525 = vadd.f32 %v2439, %v610
  %v2526 = vadd.f32 %v2440, %v614
  %v2527 = vadd.f32 %v2441, %v610
  %v2528 = vadd.f32 %v2442, %v614
  %v2529 = vadd.f32 %v2443, %v610
  %v2530 = vadd.f32 %v2444, %v614
  %v2531 = vadd.f32 %v2445, %v610
  %v2532 = vadd.f32 %v2446, %v614
  %v2533 = vadd.f32 %v2447, %v610
  %v2534 = vadd.f32 %v2448, %v614
  %v2535 = vadd.f32 %v2449, %v610
  %v2536 = vadd.f32 %v2450, %v614
  %v2537 = vadd.f32 %v2451, %v610
  %v2538 = vadd.f32 %v2452, %v614
  %v2539 = vadd.f32 %v2453, %v610
  %v2540 = vadd.f32 %v2454, %v614
  %v2541 = vadd.f32 %v2455, %v610
  %v2542 = vadd.f32 %v2456, %v614
  %v2543 = vadd.f32 %v2457, %v610
  %v2544 = vadd.f32 %v2458, %v614
  %v2545 = vadd.f32 %v2459, %v610
  %v2546 = vadd.f32 %v2460, %v614
  %v2547 = vadd.f32 %v2461, %v610
  %v2548 = vadd.f32 %v2462, %v614
  %v2549 = vadd.f32 %v2463, %v610
  %v2550 = vadd.f32 %v2464, %v614
  %v2551 = vadd.f32 %v2465, %v610
  %v2552 = vadd.f32 %v2466, %v614
  %v2553 = vadd.f32 %v2467, %v610
  %v2554 = vadd.f32 %v2468, %v614
  %v2555 = vadd.f32 %v2469, %v610
  %v2556 = vadd.f32 %v2470, %v614
  %v2557 = vadd.f32 %v2471, %v610
  %v2558 = vadd.f32 %v2472, %v614
  %v2559 = vadd.f32 %v2473, %v610
  %v2560 = vadd.f32 %v2474, %v614
  %v2561 = vadd.f32 %v2475, %v610
  %v2562 = vadd.f32 %v2476, %v614
  %v2563 = vadd.f32 %v2477, %v610
  %v2564 = vadd.f32 %v2478, %v614
  %v2565 = vadd.f32 %v2479, %v610
  %v2566 = vadd.f32 %v2480, %v614
  %v2567 = vadd.f32 %v2481, %v610
  %v2568 = vadd.f32 %v2482, %v614
  %v2569 = vadd.f32 %v2483, %v610
  %v2570 = vadd.f32 %v2484, %v614
  %v2571 = vadd.f32 %v2485, %v610
  %v2572 = vadd.f32 %v2486, %v614
  %v2573 = vadd.f32 %v2487, %v610
  %v2574 = vadd.f32 %v2488, %v614
  %v2575 = vadd.f32 %v2489, %v610
  %v2576 = vadd.f32 %v2490, %v614
  %v2577 = vadd.f32 %v2491, %v610
  %v2578 = vadd.f32 %v2492, %v614
  %v2579 = vadd.f32 %v2493, %v610
  %v2580 = vadd.f32 %v2494, %v614
  %v2581 = vadd.f32 %v2495, %v610
  %v2582 = vadd.f32 %v2496, %v614
  %v2583 = vadd.f32 %v2497, %v610
  %v2584 = vadd.f32 %v2498, %v614
  %v2585 = vadd.f32 %v2499, %v610
  %v2586 = vadd.f32 %v2500, %v614
  %vm2587 = vcmp.gt.f32.partialorder %v2501, 0.0
  %vm2588 = vcmp.gt.f32.partialorder %v2502, 0.0
  %vm2589 = vcmp.gt.f32.partialorder %v2503, 0.0
  %vm2590 = vcmp.gt.f32.partialorder %v2504, 0.0
  %vm2591 = vcmp.gt.f32.partialorder %v2505, 0.0
  %vm2592 = vcmp.gt.f32.partialorder %v2506, 0.0
  %vm2593 = vcmp.gt.f32.partialorder %v2507, 0.0
  %vm2594 = vcmp.gt.f32.partialorder %v2508, 0.0
  %vm2595 = vcmp.gt.f32.partialorder %v2509, 0.0
  %vm2596 = vcmp.gt.f32.partialorder %v2510, 0.0
  %vm2597 = vcmp.gt.f32.partialorder %v2511, 0.0
  %vm2598 = vcmp.gt.f32.partialorder %v2512, 0.0
  %vm2599 = vcmp.gt.f32.partialorder %v2513, 0.0
  %vm2600 = vcmp.gt.f32.partialorder %v2514, 0.0
  %vm2601 = vcmp.gt.f32.partialorder %v2515, 0.0
  %vm2602 = vcmp.gt.f32.partialorder %v2516, 0.0
  %vm2603 = vcmp.gt.f32.partialorder %v2517, 0.0
  %vm2604 = vcmp.gt.f32.partialorder %v2518, 0.0
  %vm2605 = vcmp.gt.f32.partialorder %v2519, 0.0
  %vm2606 = vcmp.gt.f32.partialorder %v2520, 0.0
  %vm2607 = vcmp.gt.f32.partialorder %v2521, 0.0
  %vm2608 = vcmp.gt.f32.partialorder %v2522, 0.0
  %vm2609 = vcmp.gt.f32.partialorder %v2523, 0.0
  %vm2610 = vcmp.gt.f32.partialorder %v2524, 0.0
  %vm2611 = vcmp.gt.f32.partialorder %v2525, 0.0
  %vm2612 = vcmp.gt.f32.partialorder %v2526, 0.0
  %vm2613 = vcmp.gt.f32.partialorder %v2527, 0.0
  %vm2614 = vcmp.gt.f32.partialorder %v2528, 0.0
  %vm2615 = vcmp.gt.f32.partialorder %v2529, 0.0
  %vm2616 = vcmp.gt.f32.partialorder %v2530, 0.0
  %vm2617 = vcmp.gt.f32.partialorder %v2531, 0.0
  %vm2618 = vcmp.gt.f32.partialorder %v2532, 0.0
  %vm2619 = vcmp.gt.f32.partialorder %v2533, 0.0
  %vm2620 = vcmp.gt.f32.partialorder %v2534, 0.0
  %vm2621 = vcmp.gt.f32.partialorder %v2535, 0.0
  %vm2622 = vcmp.gt.f32.partialorder %v2536, 0.0
  %vm2623 = vcmp.gt.f32.partialorder %v2537, 0.0
  %vm2624 = vcmp.gt.f32.partialorder %v2538, 0.0
  %vm2625 = vcmp.gt.f32.partialorder %v2539, 0.0
  %vm2626 = vcmp.gt.f32.partialorder %v2540, 0.0
  %vm2627 = vcmp.gt.f32.partialorder %v2541, 0.0
  %vm2628 = vcmp.gt.f32.partialorder %v2542, 0.0
  %vm2629 = vcmp.gt.f32.partialorder %v2543, 0.0
  %vm2630 = vcmp.gt.f32.partialorder %v2544, 0.0
  %vm2631 = vcmp.gt.f32.partialorder %v2545, 0.0
  %vm2632 = vcmp.gt.f32.partialorder %v2546, 0.0
  %vm2633 = vcmp.gt.f32.partialorder %v2547, 0.0
  %vm2634 = vcmp.gt.f32.partialorder %v2548, 0.0
  %vm2635 = vcmp.gt.f32.partialorder %v2549, 0.0
  %vm2636 = vcmp.gt.f32.partialorder %v2550, 0.0
  %vm2637 = vcmp.gt.f32.partialorder %v2551, 0.0
  %vm2638 = vcmp.gt.f32.partialorder %v2552, 0.0
  %vm2639 = vcmp.gt.f32.partialorder %v2553, 0.0
  %vm2640 = vcmp.gt.f32.partialorder %v2554, 0.0
  %vm2641 = vcmp.gt.f32.partialorder %v2555, 0.0
  %vm2642 = vcmp.gt.f32.partialorder %v2556, 0.0
  %vm2643 = vcmp.gt.f32.partialorder %v2557, 0.0
  %vm2644 = vcmp.gt.f32.partialorder %v2558, 0.0
  %vm2645 = vcmp.gt.f32.partialorder %v2559, 0.0
  %vm2646 = vcmp.gt.f32.partialorder %v2560, 0.0
  %vm2647 = vcmp.gt.f32.partialorder %v2561, 0.0
  %vm2648 = vcmp.gt.f32.partialorder %v2562, 0.0
  %vm2649 = vcmp.gt.f32.partialorder %v2563, 0.0
  %vm2650 = vcmp.gt.f32.partialorder %v2564, 0.0
  %vm2651 = vcmp.gt.f32.partialorder %v2565, 0.0
  %vm2652 = vcmp.gt.f32.partialorder %v2566, 0.0
  %vm2653 = vcmp.gt.f32.partialorder %v2567, 0.0
  %vm2654 = vcmp.gt.f32.partialorder %v2568, 0.0
  %vm2655 = vcmp.gt.f32.partialorder %v2569, 0.0
  %vm2656 = vcmp.gt.f32.partialorder %v2570, 0.0
  %vm2657 = vcmp.gt.f32.partialorder %v2571, 0.0
  %vm2658 = vcmp.gt.f32.partialorder %v2572, 0.0
  %vm2659 = vcmp.gt.f32.partialorder %v2573, 0.0
  %vm2660 = vcmp.gt.f32.partialorder %v2574, 0.0
  %vm2661 = vcmp.gt.f32.partialorder %v2575, 0.0
  %vm2662 = vcmp.gt.f32.partialorder %v2576, 0.0
  %vm2663 = vcmp.gt.f32.partialorder %v2577, 0.0
  %vm2664 = vcmp.gt.f32.partialorder %v2578, 0.0
  %vm2665 = vcmp.gt.f32.partialorder %v2579, 0.0
  %vm2666 = vcmp.gt.f32.partialorder %v2580, 0.0
  %vm2667 = vcmp.gt.f32.partialorder %v2581, 0.0
  %vm2668 = vcmp.gt.f32.partialorder %v2582, 0.0
  %vm2669 = vcmp.gt.f32.partialorder %v2583, 0.0
  %vm2670 = vcmp.gt.f32.partialorder %v2584, 0.0
  %vm2671 = vcmp.gt.f32.partialorder %v2585, 0.0
  %vm2672 = vcmp.gt.f32.partialorder %v2586, 0.0
  %v2673 = vmul.f32 %v2501, 0.01
  %v2674 = vmul.f32 %v2502, 0.01
  %v2675 = vmul.f32 %v2503, 0.01
  %v2676 = vmul.f32 %v2504, 0.01
  %v2677 = vmul.f32 %v2505, 0.01
  %v2678 = vmul.f32 %v2506, 0.01
  %v2679 = vmul.f32 %v2507, 0.01
  %v2680 = vmul.f32 %v2508, 0.01
  %v2681 = vmul.f32 %v2509, 0.01
  %v2682 = vmul.f32 %v2510, 0.01
  %v2683 = vmul.f32 %v2511, 0.01
  %v2684 = vmul.f32 %v2512, 0.01
  %v2685 = vmul.f32 %v2513, 0.01
  %v2686 = vmul.f32 %v2514, 0.01
  %v2687 = vmul.f32 %v2515, 0.01
  %v2688 = vmul.f32 %v2516, 0.01
  %v2689 = vmul.f32 %v2517, 0.01
  %v2690 = vmul.f32 %v2518, 0.01
  %v2691 = vmul.f32 %v2519, 0.01
  %v2692 = vmul.f32 %v2520, 0.01
  %v2693 = vmul.f32 %v2521, 0.01
  %v2694 = vmul.f32 %v2522, 0.01
  %v2695 = vmul.f32 %v2523, 0.01
  %v2696 = vmul.f32 %v2524, 0.01
  %v2697 = vmul.f32 %v2525, 0.01
  %v2698 = vmul.f32 %v2526, 0.01
  %v2699 = vmul.f32 %v2527, 0.01
  %v2700 = vmul.f32 %v2528, 0.01
  %v2701 = vmul.f32 %v2529, 0.01
  %v2702 = vmul.f32 %v2530, 0.01
  %v2703 = vmul.f32 %v2531, 0.01
  %v2704 = vmul.f32 %v2532, 0.01
  %v2705 = vmul.f32 %v2533, 0.01
  %v2706 = vmul.f32 %v2534, 0.01
  %v2707 = vmul.f32 %v2535, 0.01
  %v2708 = vmul.f32 %v2536, 0.01
  %v2709 = vmul.f32 %v2537, 0.01
  %v2710 = vmul.f32 %v2538, 0.01
  %v2711 = vmul.f32 %v2539, 0.01
  %v2712 = vmul.f32 %v2540, 0.01
  %v2713 = vmul.f32 %v2541, 0.01
  %v2714 = vmul.f32 %v2542, 0.01
  %v2715 = vmul.f32 %v2543, 0.01
  %v2716 = vmul.f32 %v2544, 0.01
  %v2717 = vmul.f32 %v2545, 0.01
  %v2718 = vmul.f32 %v2546, 0.01
  %v2719 = vmul.f32 %v2547, 0.01
  %v2720 = vmul.f32 %v2548, 0.01
  %v2721 = vmul.f32 %v2549, 0.01
  %v2722 = vmul.f32 %v2550, 0.01
  %v2723 = vmul.f32 %v2551, 0.01
  %v2724 = vmul.f32 %v2552, 0.01
  %v2725 = vmul.f32 %v2553, 0.01
  %v2726 = vmul.f32 %v2554, 0.01
  %v2727 = vmul.f32 %v2555, 0.01
  %v2728 = vmul.f32 %v2556, 0.01
  %v2729 = vmul.f32 %v2557, 0.01
  %v2730 = vmul.f32 %v2558, 0.01
  %v2731 = vmul.f32 %v2559, 0.01
  %v2732 = vmul.f32 %v2560, 0.01
  %v2733 = vmul.f32 %v2561, 0.01
  %v2734 = vmul.f32 %v2562, 0.01
  %v2735 = vmul.f32 %v2563, 0.01
  %v2736 = vmul.f32 %v2564, 0.01
  %v2737 = vmul.f32 %v2565, 0.01
  %v2738 = vmul.f32 %v2566, 0.01
  %v2739 = vmul.f32 %v2567, 0.01
  %v2740 = vmul.f32 %v2568, 0.01
  %v2741 = vmul.f32 %v2569, 0.01
  %v2742 = vmul.f32 %v2570, 0.01
  %v2743 = vmul.f32 %v2571, 0.01
  %v2744 = vmul.f32 %v2572, 0.01
  %v2745 = vmul.f32 %v2573, 0.01
  %v2746 = vmul.f32 %v2574, 0.01
  %v2747 = vmul.f32 %v2575, 0.01
  %v2748 = vmul.f32 %v2576, 0.01
  %v2749 = vmul.f32 %v2577, 0.01
  %v2750 = vmul.f32 %v2578, 0.01
  %v2751 = vmul.f32 %v2579, 0.01
  %v2752 = vmul.f32 %v2580, 0.01
  %v2753 = vmul.f32 %v2581, 0.01
  %v2754 = vmul.f32 %v2582, 0.01
  %v2755 = vmul.f32 %v2583, 0.01
  %v2756 = vmul.f32 %v2584, 0.01
  %v2757 = vmul.f32 %v2585, 0.01
  %v2758 = vmul.f32 %v2586, 0.01
  %v2759 = vsel %vm2587, %v2501, %v2673
  %v2760 = vsel %vm2588, %v2502, %v2674
  %v2761 = vsel %vm2589, %v2503, %v2675
  %v2762 = vsel %vm2590, %v2504, %v2676
  %v2763 = vsel %vm2591, %v2505, %v2677
  %v2764 = vsel %vm2592, %v2506, %v2678
  %v2765 = vsel %vm2593, %v2507, %v2679
  %v2766 = vsel %vm2594, %v2508, %v2680
  %v2767 = vsel %vm2595, %v2509, %v2681
  %v2768 = vsel %vm2596, %v2510, %v2682
  %v2769 = vsel %vm2597, %v2511, %v2683
  %v2770 = vsel %vm2598, %v2512, %v2684
  %v2771 = vsel %vm2599, %v2513, %v2685
  %v2772 = vsel %vm2600, %v2514, %v2686
  %v2773 = vsel %vm2601, %v2515, %v2687
  %v2774 = vsel %vm2602, %v2516, %v2688
  %v2775 = vsel %vm2603, %v2517, %v2689
  %v2776 = vsel %vm2604, %v2518, %v2690
  %v2777 = vsel %vm2605, %v2519, %v2691
  %v2778 = vsel %vm2606, %v2520, %v2692
  %v2779 = vsel %vm2607, %v2521, %v2693
  %v2780 = vsel %vm2608, %v2522, %v2694
  %v2781 = vsel %vm2609, %v2523, %v2695
  %v2782 = vsel %vm2610, %v2524, %v2696
  %v2783 = vsel %vm2611, %v2525, %v2697
  %v2784 = vsel %vm2612, %v2526, %v2698
  %v2785 = vsel %vm2613, %v2527, %v2699
  %v2786 = vsel %vm2614, %v2528, %v2700
  %v2787 = vsel %vm2615, %v2529, %v2701
  %v2788 = vsel %vm2616, %v2530, %v2702
  %v2789 = vsel %vm2617, %v2531, %v2703
  %v2790 = vsel %vm2618, %v2532, %v2704
  %v2791 = vsel %vm2619, %v2533, %v2705
  %v2792 = vsel %vm2620, %v2534, %v2706
  %v2793 = vsel %vm2621, %v2535, %v2707
  %v2794 = vsel %vm2622, %v2536, %v2708
  %v2795 = vsel %vm2623, %v2537, %v2709
  %v2796 = vsel %vm2624, %v2538, %v2710
  %v2797 = vsel %vm2625, %v2539, %v2711
  %v2798 = vsel %vm2626, %v2540, %v2712
  %v2799 = vsel %vm2627, %v2541, %v2713
  %v2800 = vsel %vm2628, %v2542, %v2714
  %v2801 = vsel %vm2629, %v2543, %v2715
  %v2802 = vsel %vm2630, %v2544, %v2716
  %v2803 = vsel %vm2631, %v2545, %v2717
  %v2804 = vsel %vm2632, %v2546, %v2718
  %v2805 = vsel %vm2633, %v2547, %v2719
  %v2806 = vsel %vm2634, %v2548, %v2720
  %v2807 = vsel %vm2635, %v2549, %v2721
  %v2808 = vsel %vm2636, %v2550, %v2722
  %v2809 = vsel %vm2637, %v2551, %v2723
  %v2810 = vsel %vm2638, %v2552, %v2724
  %v2811 = vsel %vm2639, %v2553, %v2725
  %v2812 = vsel %vm2640, %v2554, %v2726
  %v2813 = vsel %vm2641, %v2555, %v2727
  %v2814 = vsel %vm2642, %v2556, %v2728
  %v2815 = vsel %vm2643, %v2557, %v2729
  %v2816 = vsel %vm2644, %v2558, %v2730
  %v2817 = vsel %vm2645, %v2559, %v2731
  %v2818 = vsel %vm2646, %v2560, %v2732
  %v2819 = vsel %vm2647, %v2561, %v2733
  %v2820 = vsel %vm2648, %v2562, %v2734
  %v2821 = vsel %vm2649, %v2563, %v2735
  %v2822 = vsel %vm2650, %v2564, %v2736
  %v2823 = vsel %vm2651, %v2565, %v2737
  %v2824 = vsel %vm2652, %v2566, %v2738
  %v2825 = vsel %vm2653, %v2567, %v2739
  %v2826 = vsel %vm2654, %v2568, %v2740
  %v2827 = vsel %vm2655, %v2569, %v2741
  %v2828 = vsel %vm2656, %v2570, %v2742
  %v2829 = vsel %vm2657, %v2571, %v2743
  %v2830 = vsel %vm2658, %v2572, %v2744
  %v2831 = vsel %vm2659, %v2573, %v2745
  %v2832 = vsel %vm2660, %v2574, %v2746
  %v2833 = vsel %vm2661, %v2575, %v2747
  %v2834 = vsel %vm2662, %v2576, %v2748
  %v2835 = vsel %vm2663, %v2577, %v2749
  %v2836 = vsel %vm2664, %v2578, %v2750
  %v2837 = vsel %vm2665, %v2579, %v2751
  %v2838 = vsel %vm2666, %v2580, %v2752
  %v2839 = vsel %vm2667, %v2581, %v2753
  %v2840 = vsel %vm2668, %v2582, %v2754
  %v2841 = vsel %vm2669, %v2583, %v2755
  %v2842 = vsel %vm2670, %v2584, %v2756
  %v2843 = vsel %vm2671, %v2585, %v2757
  %v2844 = vsel %vm2672, %v2586, %v2758
  %s2845 = scalar_lea.vmem %s0, 516
  %v2846 = vld [vmem:[%s2845] sm:$0xf]
  %v2847 = vld [vmem:[%s2845 + $0x4] sm:$0xf]
  %v2848 = vld [vmem:[%s2845 + $0x8] sm:$0xf]
  %v2849 = vld [vmem:[%s2845 + $0xc] sm:$0xf]
  %v2850 = vld [vmem:[%s2845 + $0x10] sm:$0xf]
  %v2851 = vld [vmem:[%s2845 + $0x14] sm:$0xf]
  %v2852 = vld [vmem:[%s2845 + $0x18] sm:$0xf]
  %v2853 = vld [vmem:[%s2845 + $0x1c] sm:$0xf]
  %v2854 = vld [vmem:[%s2845 + $0x20] sm:$0xf]
  %v2855 = vld [vmem:[%s2845 + $0x24] sm:$0xf]
  %v2856 = vld [vmem:[%s2845 + $0x28] sm:$0xf]
  %v2857 = vld [vmem:[%s2845 + $0x2c] sm:$0xf]
  %v2858 = vld [vmem:[%s2845 + $0x30] sm:$0xf]
  %v2859 = vld [vmem:[%s2845 + $0x34] sm:$0xf]
  %v2860 = vld [vmem:[%s2845 + $0x38] sm:$0xf]
  %v2861 = vld [vmem:[%s2845 + $0x3c] sm:$0xf]
  %v2862 = vld [vmem:[%s2845 + $0x40] sm:$0xf]
  %v2863 = vld [vmem:[%s2845 + $0x44] sm:$0xf]
  %v2864 = vld [vmem:[%s2845 + $0x48] sm:$0xf]
  %v2865 = vld [vmem:[%s2845 + $0x4c] sm:$0xf]
  %v2866 = vld [vmem:[%s2845 + $0x50] sm:$0xf]
  %v2867 = vld [vmem:[%s2845 + $0x54] sm:$0xf]
  %v2868 = vld [vmem:[%s2845 + $0x58] sm:$0xf]
  %v2869 = vld [vmem:[%s2845 + $0x5c] sm:$0xf]
  %v2870 = vld [vmem:[%s2845 + $0x60] sm:$0xf]
  %v2871 = vld [vmem:[%s2845 + $0x64] sm:$0xf]
  %v2872 = vld [vmem:[%s2845 + $0x68] sm:$0xf]
  %v2873 = vld [vmem:[%s2845 + $0x6c] sm:$0xf]
  %v2874 = vld [vmem:[%s2845 + $0x70] sm:$0xf]
  %v2875 = vld [vmem:[%s2845 + $0x74] sm:$0xf]
  %v2876 = vld [vmem:[%s2845 + $0x78] sm:$0xf]
  %v2877 = vld [vmem:[%s2845 + $0x7c] sm:$0xf]
  %v2878 = vld [vmem:[%s2845 + $0x80] sm:$0xf]
  %v2879 = vld [vmem:[%s2845 + $0x84] sm:$0xf]
  %v2880 = vld [vmem:[%s2845 + $0x88] sm:$0xf]
  %v2881 = vld [vmem:[%s2845 + $0x8c] sm:$0xf]
  %v2882 = vld [vmem:[%s2845 + $0x90] sm:$0xf]
  %v2883 = vld [vmem:[%s2845 + $0x94] sm:$0xf]
  %v2884 = vld [vmem:[%s2845 + $0x98] sm:$0xf]
  %v2885 = vld [vmem:[%s2845 + $0x9c] sm:$0xf]
  %v2886 = vld [vmem:[%s2845 + $0xa0] sm:$0xf]
  %v2887 = vld [vmem:[%s2845 + $0xa4] sm:$0xf]
  %v2888 = vld [vmem:[%s2845 + $0xa8] sm:$0x1]
  %v2932 = vunpack.c.l.b16 %v2846
  %v2933 = vunpack.c.l.b16 %v2847
  %v2934 = vunpack.c.l.b16 %v2848
  %v2935 = vunpack.c.l.b16 %v2849
  %v2936 = vunpack.c.l.b16 %v2850
  %v2937 = vunpack.c.l.b16 %v2851
  %v2938 = vunpack.c.l.b16 %v2852
  %v2939 = vunpack.c.l.b16 %v2853
  %v2940 = vunpack.c.l.b16 %v2854
  %v2941 = vunpack.c.l.b16 %v2855
  %v2942 = vunpack.c.l.b16 %v2856
  %v2943 = vunpack.c.l.b16 %v2857
  %v2944 = vunpack.c.l.b16 %v2858
  %v2945 = vunpack.c.l.b16 %v2859
  %v2946 = vunpack.c.l.b16 %v2860
  %v2947 = vunpack.c.l.b16 %v2861
  %v2948 = vunpack.c.l.b16 %v2862
  %v2949 = vunpack.c.l.b16 %v2863
  %v2950 = vunpack.c.l.b16 %v2864
  %v2951 = vunpack.c.l.b16 %v2865
  %v2952 = vunpack.c.l.b16 %v2866
  %v2953 = vunpack.c.l.b16 %v2867
  %v2954 = vunpack.c.l.b16 %v2868
  %v2955 = vunpack.c.l.b16 %v2869
  %v2956 = vunpack.c.l.b16 %v2870
  %v2957 = vunpack.c.l.b16 %v2871
  %v2958 = vunpack.c.l.b16 %v2872
  %v2959 = vunpack.c.l.b16 %v2873
  %v2960 = vunpack.c.l.b16 %v2874
  %v2961 = vunpack.c.l.b16 %v2875
  %v2962 = vunpack.c.l.b16 %v2876
  %v2963 = vunpack.c.l.b16 %v2877
  %v2964 = vunpack.c.l.b16 %v2878
  %v2965 = vunpack.c.l.b16 %v2879
  %v2966 = vunpack.c.l.b16 %v2880
  %v2967 = vunpack.c.l.b16 %v2881
  %v2968 = vunpack.c.l.b16 %v2882
  %v2969 = vunpack.c.l.b16 %v2883
  %v2970 = vunpack.c.l.b16 %v2884
  %v2971 = vunpack.c.l.b16 %v2885
  %v2972 = vunpack.c.l.b16 %v2886
  %v2973 = vunpack.c.l.b16 %v2887
  %v2974 = vunpack.c.l.b16 %v2888
  %v2975 = vpack.c.b16 %v2933, %v2932
  %v2976 = vpack.c.b16 %v2935, %v2934
  %v2977 = vpack.c.b16 %v2937, %v2936
  %v2978 = vpack.c.b16 %v2939, %v2938
  %v2979 = vpack.c.b16 %v2941, %v2940
  %v2980 = vpack.c.b16 %v2943, %v2942
  %v2981 = vpack.c.b16 %v2945, %v2944
  %v2982 = vpack.c.b16 %v2947, %v2946
  %v2983 = vpack.c.b16 %v2949, %v2948
  %v2984 = vpack.c.b16 %v2951, %v2950
  %v2985 = vpack.c.b16 %v2953, %v2952
  %v2986 = vpack.c.b16 %v2955, %v2954
  %v2987 = vpack.c.b16 %v2957, %v2956
  %v2988 = vpack.c.b16 %v2959, %v2958
  %v2989 = vpack.c.b16 %v2961, %v2960
  %v2990 = vpack.c.b16 %v2963, %v2962
  %v2991 = vpack.c.b16 %v2965, %v2964
  %v2992 = vpack.c.b16 %v2967, %v2966
  %v2993 = vpack.c.b16 %v2969, %v2968
  %v2994 = vpack.c.b16 %v2971, %v2970
  %v2995 = vpack.c.b16 %v2973, %v2972
  %v2996 = vpack.c.b16 %v2974, %v2974
  %v2998 = vsel %vm181, %v2975, 0
  %v3001 = vsel %vm181, %v2976, 0
  %v3004 = vsel %vm181, %v2977, 0
  %v3007 = vsel %vm181, %v2978, 0
  %v3010 = vsel %vm181, %v2979, 0
  %v3013 = vsel %vm181, %v2980, 0
  %v3016 = vsel %vm181, %v2981, 0
  %v3019 = vsel %vm181, %v2982, 0
  %v3022 = vsel %vm181, %v2983, 0
  %v3025 = vsel %vm181, %v2984, 0
  %v3028 = vsel %vm181, %v2985, 0
  %v3031 = vsel %vm181, %v2986, 0
  %v3034 = vsel %vm181, %v2987, 0
  %v3037 = vsel %vm181, %v2988, 0
  %v3040 = vsel %vm181, %v2989, 0
  %v3043 = vsel %vm181, %v2990, 0
  %v3046 = vsel %vm181, %v2991, 0
  %v3049 = vsel %vm181, %v2992, 0
  %v3052 = vsel %vm181, %v2993, 0
  %v3055 = vsel %vm181, %v2994, 0
  %v3058 = vsel %vm181, %v2995, 0
  %v3061 = vsel %vm181, %v2996, 0
  %3063 = vmatprep.subr.bf16.mxu0 %v256
  %3064 = vmatpush1.bf16.msra.mxu0 %v253
  %3065 = vmatprep.subr.bf16.mxu0 0
  %3066 = vmatpush1.bf16.msra.mxu0 0
  %3067 = vmatprep.subr.bf16.mxu0 0
  %3068 = vmatpush1.bf16.msra.mxu0 0
  %3069 = vmatprep.subr.bf16.mxu0 0
  %3070 = vmatpush1.bf16.msra.mxu0 0
  %3071 = vmatprep.subr.bf16.mxu0 0
  %3072 = vmatpush1.bf16.msra.mxu0 0
  %3073 = vmatprep.subr.bf16.mxu0 0
  %3074 = vmatpush1.bf16.msra.mxu0 0
  %3075 = vmatprep.subr.bf16.mxu0 0
  %3076 = vmatpush1.bf16.msra.mxu0 0
  %3077 = vmatprep.subr.bf16.mxu0 0
  %3078 = vmatpush1.bf16.msra.mxu0 0
  %3079 = vmatprep.subr.bf16.mxu0 0
  %3080 = vmatpush1.bf16.msra.mxu0 0
  %3081 = vmatprep.subr.bf16.mxu0 0
  %3082 = vmatpush1.bf16.msra.mxu0 0
  %3083 = vmatprep.subr.bf16.mxu0 0
  %3084 = vmatpush1.bf16.msra.mxu0 0
  %3085 = vmatprep.subr.bf16.mxu0 0
  %3086 = vmatpush1.bf16.msra.mxu0 0
  %3087 = vmatprep.subr.bf16.mxu0 0
  %3088 = vmatpush1.bf16.msra.mxu0 0
  %3089 = vmatprep.subr.bf16.mxu0 0
  %3090 = vmatpush1.bf16.msra.mxu0 0
  %3091 = vmatprep.subr.bf16.mxu0 0
  %3092 = vmatpush1.bf16.msra.mxu0 0
  %3093 = vmatprep.subr.bf16.mxu0 0
  %3094 = vmatpush1.bf16.msra.mxu0 0
  %3095 = vmatprep.mubr.bf16.mxu0 0
  %3096 = vmatmul.mubr.bf16.gmra.mrb[0].mxu0 %v2998
  %v3097 = vpop.f32.mrb[0].mxu0
  %v3098 = vadd.f32 0.0, %v3097
  %v3099 = vpop.f32.mrb[0].mxu0
  %v3100 = vadd.f32 0.0, %v3099
  %v3101 = vpop.f32.mrb[0].mxu0
  %v3102 = vadd.f32 0.0, %v3101
  %v3103 = vpop.f32.mrb[0].mxu0
  %v3104 = vadd.f32 0.0, %v3103
  %3105 = vmatprep.mubr.bf16.mxu0 0
  %3106 = vmatmul.mubr.bf16.gmra.mrb[0].mxu0 %v3001
  %v3107 = vpop.f32.mrb[0].mxu0
  %v3108 = vadd.f32 0.0, %v3107
  %v3109 = vpop.f32.mrb[0].mxu0
  %v3110 = vadd.f32 0.0, %v3109
  %v3111 = vpop.f32.mrb[0].mxu0
  %v3112 = vadd.f32 0.0, %v3111
  %v3113 = vpop.f32.mrb[0].mxu0
  %v3114 = vadd.f32 0.0, %v3113
  %3115 = vmatprep.mubr.bf16.mxu0 0
  %3116 = vmatmul.mubr.bf16.gmra.mrb[0].mxu0 %v3004
  %v3117 = vpop.f32.mrb[0].mxu0
  %v3118 = vadd.f32 0.0, %v3117
  %v3119 = vpop.f32.mrb[0].mxu0
  %v3120 = vadd.f32 0.0, %v3119
  %v3121 = vpop.f32.mrb[0].mxu0
  %v3122 = vadd.f32 0.0, %v3121
  %v3123 = vpop.f32.mrb[0].mxu0
  %v3124 = vadd.f32 0.0, %v3123
  %3125 = vmatprep.mubr.bf16.mxu0 0
  %3126 = vmatmul.mubr.bf16.gmra.mrb[0].mxu0 %v3007
  %v3127 = vpop.f32.mrb[0].mxu0
  %v3128 = vadd.f32 0.0, %v3127
  %v3129 = vpop.f32.mrb[0].mxu0
  %v3130 = vadd.f32 0.0, %v3129
  %v3131 = vpop.f32.mrb[0].mxu0
  %v3132 = vadd.f32 0.0, %v3131
  %v3133 = vpop.f32.mrb[0].mxu0
  %v3134 = vadd.f32 0.0, %v3133
  %3135 = vmatprep.mubr.bf16.mxu0 0
  %3136 = vmatmul.mubr.bf16.gmra.mrb[0].mxu0 %v3010
  %v3137 = vpop.f32.mrb[0].mxu0
  %v3138 = vadd.f32 0.0, %v3137
  %v3139 = vpop.f32.mrb[0].mxu0
  %v3140 = vadd.f32 0.0, %v3139
  %v3141 = vpop.f32.mrb[0].mxu0
  %v3142 = vadd.f32 0.0, %v3141
  %v3143 = vpop.f32.mrb[0].mxu0
  %v3144 = vadd.f32 0.0, %v3143
  %3145 = vmatprep.mubr.bf16.mxu0 0
  %3146 = vmatmul.mubr.bf16.gmra.mrb[0].mxu0 %v3013
  %v3147 = vpop.f32.mrb[0].mxu0
  %v3148 = vadd.f32 0.0, %v3147
  %v3149 = vpop.f32.mrb[0].mxu0
  %v3150 = vadd.f32 0.0, %v3149
  %v3151 = vpop.f32.mrb[0].mxu0
  %v3152 = vadd.f32 0.0, %v3151
  %v3153 = vpop.f32.mrb[0].mxu0
  %v3154 = vadd.f32 0.0, %v3153
  %3155 = vmatprep.mubr.bf16.mxu0 0
  %3156 = vmatmul.mubr.bf16.gmra.mrb[0].mxu0 %v3016
  %v3157 = vpop.f32.mrb[0].mxu0
  %v3158 = vadd.f32 0.0, %v3157
  %v3159 = vpop.f32.mrb[0].mxu0
  %v3160 = vadd.f32 0.0, %v3159
  %v3161 = vpop.f32.mrb[0].mxu0
  %v3162 = vadd.f32 0.0, %v3161
  %v3163 = vpop.f32.mrb[0].mxu0
  %v3164 = vadd.f32 0.0, %v3163
  %3165 = vmatprep.mubr.bf16.mxu0 0
  %3166 = vmatmul.mubr.bf16.gmra.mrb[0].mxu0 %v3019
  %v3167 = vpop.f32.mrb[0].mxu0
  %v3168 = vadd.f32 0.0, %v3167
  %v3169 = vpop.f32.mrb[0].mxu0
  %v3170 = vadd.f32 0.0, %v3169
  %v3171 = vpop.f32.mrb[0].mxu0
  %v3172 = vadd.f32 0.0, %v3171
  %v3173 = vpop.f32.mrb[0].mxu0
  %v3174 = vadd.f32 0.0, %v3173
  %3175 = vmatprep.mubr.bf16.mxu0 0
  %3176 = vmatmul.mubr.bf16.gmra.mrb[0].mxu0 %v3022
  %v3177 = vpop.f32.mrb[0].mxu0
  %v3178 = vadd.f32 0.0, %v3177
  %v3179 = vpop.f32.mrb[0].mxu0
  %v3180 = vadd.f32 0.0, %v3179
  %v3181 = vpop.f32.mrb[0].mxu0
  %v3182 = vadd.f32 0.0, %v3181
  %v3183 = vpop.f32.mrb[0].mxu0
  %v3184 = vadd.f32 0.0, %v3183
  %3185 = vmatprep.mubr.bf16.mxu0 0
  %3186 = vmatmul.mubr.bf16.gmra.mrb[0].mxu0 %v3025
  %v3187 = vpop.f32.mrb[0].mxu0
  %v3188 = vadd.f32 0.0, %v3187
  %v3189 = vpop.f32.mrb[0].mxu0
  %v3190 = vadd.f32 0.0, %v3189
  %v3191 = vpop.f32.mrb[0].mxu0
  %v3192 = vadd.f32 0.0, %v3191
  %v3193 = vpop.f32.mrb[0].mxu0
  %v3194 = vadd.f32 0.0, %v3193
  %3195 = vmatprep.mubr.bf16.mxu0 0
  %3196 = vmatmul.mubr.bf16.gmra.mrb[0].mxu0 %v3028
  %v3197 = vpop.f32.mrb[0].mxu0
  %v3198 = vadd.f32 0.0, %v3197
  %v3199 = vpop.f32.mrb[0].mxu0
  %v3200 = vadd.f32 0.0, %v3199
  %v3201 = vpop.f32.mrb[0].mxu0
  %v3202 = vadd.f32 0.0, %v3201
  %v3203 = vpop.f32.mrb[0].mxu0
  %v3204 = vadd.f32 0.0, %v3203
  %3205 = vmatprep.mubr.bf16.mxu0 0
  %3206 = vmatmul.mubr.bf16.gmra.mrb[0].mxu0 %v3031
  %v3207 = vpop.f32.mrb[0].mxu0
  %v3208 = vadd.f32 0.0, %v3207
  %v3209 = vpop.f32.mrb[0].mxu0
  %v3210 = vadd.f32 0.0, %v3209
  %v3211 = vpop.f32.mrb[0].mxu0
  %v3212 = vadd.f32 0.0, %v3211
  %v3213 = vpop.f32.mrb[0].mxu0
  %v3214 = vadd.f32 0.0, %v3213
  %3215 = vmatprep.mubr.bf16.mxu0 0
  %3216 = vmatmul.mubr.bf16.gmra.mrb[0].mxu0 %v3034
  %v3217 = vpop.f32.mrb[0].mxu0
  %v3218 = vadd.f32 0.0, %v3217
  %v3219 = vpop.f32.mrb[0].mxu0
  %v3220 = vadd.f32 0.0, %v3219
  %v3221 = vpop.f32.mrb[0].mxu0
  %v3222 = vadd.f32 0.0, %v3221
  %v3223 = vpop.f32.mrb[0].mxu0
  %v3224 = vadd.f32 0.0, %v3223
  %3225 = vmatprep.mubr.bf16.mxu0 0
  %3226 = vmatmul.mubr.bf16.gmra.mrb[0].mxu0 %v3037
  %v3227 = vpop.f32.mrb[0].mxu0
  %v3228 = vadd.f32 0.0, %v3227
  %v3229 = vpop.f32.mrb[0].mxu0
  %v3230 = vadd.f32 0.0, %v3229
  %v3231 = vpop.f32.mrb[0].mxu0
  %v3232 = vadd.f32 0.0, %v3231
  %v3233 = vpop.f32.mrb[0].mxu0
  %v3234 = vadd.f32 0.0, %v3233
  %3235 = vmatprep.mubr.bf16.mxu0 0
  %3236 = vmatmul.mubr.bf16.gmra.mrb[0].mxu0 %v3040
  %v3237 = vpop.f32.mrb[0].mxu0
  %v3238 = vadd.f32 0.0, %v3237
  %v3239 = vpop.f32.mrb[0].mxu0
  %v3240 = vadd.f32 0.0, %v3239
  %v3241 = vpop.f32.mrb[0].mxu0
  %v3242 = vadd.f32 0.0, %v3241
  %v3243 = vpop.f32.mrb[0].mxu0
  %v3244 = vadd.f32 0.0, %v3243
  %3245 = vmatprep.mubr.bf16.mxu0 0
  %3246 = vmatmul.mubr.bf16.gmra.mrb[0].mxu0 %v3043
  %v3247 = vpop.f32.mrb[0].mxu0
  %v3248 = vadd.f32 0.0, %v3247
  %v3249 = vpop.f32.mrb[0].mxu0
  %v3250 = vadd.f32 0.0, %v3249
  %v3251 = vpop.f32.mrb[0].mxu0
  %v3252 = vadd.f32 0.0, %v3251
  %v3253 = vpop.f32.mrb[0].mxu0
  %v3254 = vadd.f32 0.0, %v3253
  %3255 = vmatprep.mubr.bf16.mxu0 0
  %3256 = vmatmul.mubr.bf16.gmra.mrb[0].mxu0 %v3046
  %v3257 = vpop.f32.mrb[0].mxu0
  %v3258 = vadd.f32 0.0, %v3257
  %v3259 = vpop.f32.mrb[0].mxu0
  %v3260 = vadd.f32 0.0, %v3259
  %v3261 = vpop.f32.mrb[0].mxu0
  %v3262 = vadd.f32 0.0, %v3261
  %v3263 = vpop.f32.mrb[0].mxu0
  %v3264 = vadd.f32 0.0, %v3263
  %3265 = vmatprep.mubr.bf16.mxu0 0
  %3266 = vmatmul.mubr.bf16.gmra.mrb[0].mxu0 %v3049
  %v3267 = vpop.f32.mrb[0].mxu0
  %v3268 = vadd.f32 0.0, %v3267
  %v3269 = vpop.f32.mrb[0].mxu0
  %v3270 = vadd.f32 0.0, %v3269
  %v3271 = vpop.f32.mrb[0].mxu0
  %v3272 = vadd.f32 0.0, %v3271
  %v3273 = vpop.f32.mrb[0].mxu0
  %v3274 = vadd.f32 0.0, %v3273
  %3275 = vmatprep.mubr.bf16.mxu0 0
  %3276 = vmatmul.mubr.bf16.gmra.mrb[0].mxu0 %v3052
  %v3277 = vpop.f32.mrb[0].mxu0
  %v3278 = vadd.f32 0.0, %v3277
  %v3279 = vpop.f32.mrb[0].mxu0
  %v3280 = vadd.f32 0.0, %v3279
  %v3281 = vpop.f32.mrb[0].mxu0
  %v3282 = vadd.f32 0.0, %v3281
  %v3283 = vpop.f32.mrb[0].mxu0
  %v3284 = vadd.f32 0.0, %v3283
  %3285 = vmatprep.mubr.bf16.mxu0 0
  %3286 = vmatmul.mubr.bf16.gmra.mrb[0].mxu0 %v3055
  %v3287 = vpop.f32.mrb[0].mxu0
  %v3288 = vadd.f32 0.0, %v3287
  %v3289 = vpop.f32.mrb[0].mxu0
  %v3290 = vadd.f32 0.0, %v3289
  %v3291 = vpop.f32.mrb[0].mxu0
  %v3292 = vadd.f32 0.0, %v3291
  %v3293 = vpop.f32.mrb[0].mxu0
  %v3294 = vadd.f32 0.0, %v3293
  %3295 = vmatprep.mubr.bf16.mxu0 0
  %3296 = vmatmul.mubr.bf16.gmra.mrb[0].mxu0 %v3058
  %v3297 = vpop.f32.mrb[0].mxu0
  %v3298 = vadd.f32 0.0, %v3297
  %v3299 = vpop.f32.mrb[0].mxu0
  %v3300 = vadd.f32 0.0, %v3299
  %v3301 = vpop.f32.mrb[0].mxu0
  %v3302 = vadd.f32 0.0, %v3301
  %v3303 = vpop.f32.mrb[0].mxu0
  %v3304 = vadd.f32 0.0, %v3303
  %3305 = vmatprep.mubr.bf16.mxu0 0
  %3306 = vmatmul.mubr.bf16.gmra.mrb[0].mxu0 %v3061
  %v3307 = vpop.f32.mrb[0].mxu0
  %v3308 = vadd.f32 0.0, %v3307
  %v3309 = vpop.f32.mrb[0].mxu0
  %v3310 = vadd.f32 0.0, %v3309
  %v3311 = vpop.f32.mrb[0].mxu0
  %v3312 = vpop.f32.mrb[0].mxu0
  %3313 = vdwg.mxu0
  %v3314 = vmul.f32 %v3098, %v513
  %v3315 = vmul.f32 %v3100, %v517
  %v3316 = vmul.f32 %v3102, %v513
  %v3317 = vmul.f32 %v3104, %v517
  %v3318 = vmul.f32 %v3108, %v513
  %v3319 = vmul.f32 %v3110, %v517
  %v3320 = vmul.f32 %v3112, %v513
  %v3321 = vmul.f32 %v3114, %v517
  %v3322 = vmul.f32 %v3118, %v513
  %v3323 = vmul.f32 %v3120, %v517
  %v3324 = vmul.f32 %v3122, %v513
  %v3325 = vmul.f32 %v3124, %v517
  %v3326 = vmul.f32 %v3128, %v513
  %v3327 = vmul.f32 %v3130, %v517
  %v3328 = vmul.f32 %v3132, %v513
  %v3329 = vmul.f32 %v3134, %v517
  %v3330 = vmul.f32 %v3138, %v513
  %v3331 = vmul.f32 %v3140, %v517
  %v3332 = vmul.f32 %v3142, %v513
  %v3333 = vmul.f32 %v3144, %v517
  %v3334 = vmul.f32 %v3148, %v513
  %v3335 = vmul.f32 %v3150, %v517
  %v3336 = vmul.f32 %v3152, %v513
  %v3337 = vmul.f32 %v3154, %v517
  %v3338 = vmul.f32 %v3158, %v513
  %v3339 = vmul.f32 %v3160, %v517
  %v3340 = vmul.f32 %v3162, %v513
  %v3341 = vmul.f32 %v3164, %v517
  %v3342 = vmul.f32 %v3168, %v513
  %v3343 = vmul.f32 %v3170, %v517
  %v3344 = vmul.f32 %v3172, %v513
  %v3345 = vmul.f32 %v3174, %v517
  %v3346 = vmul.f32 %v3178, %v513
  %v3347 = vmul.f32 %v3180, %v517
  %v3348 = vmul.f32 %v3182, %v513
  %v3349 = vmul.f32 %v3184, %v517
  %v3350 = vmul.f32 %v3188, %v513
  %v3351 = vmul.f32 %v3190, %v517
  %v3352 = vmul.f32 %v3192, %v513
  %v3353 = vmul.f32 %v3194, %v517
  %v3354 = vmul.f32 %v3198, %v513
  %v3355 = vmul.f32 %v3200, %v517
  %v3356 = vmul.f32 %v3202, %v513
  %v3357 = vmul.f32 %v3204, %v517
  %v3358 = vmul.f32 %v3208, %v513
  %v3359 = vmul.f32 %v3210, %v517
  %v3360 = vmul.f32 %v3212, %v513
  %v3361 = vmul.f32 %v3214, %v517
  %v3362 = vmul.f32 %v3218, %v513
  %v3363 = vmul.f32 %v3220, %v517
  %v3364 = vmul.f32 %v3222, %v513
  %v3365 = vmul.f32 %v3224, %v517
  %v3366 = vmul.f32 %v3228, %v513
  %v3367 = vmul.f32 %v3230, %v517
  %v3368 = vmul.f32 %v3232, %v513
  %v3369 = vmul.f32 %v3234, %v517
  %v3370 = vmul.f32 %v3238, %v513
  %v3371 = vmul.f32 %v3240, %v517
  %v3372 = vmul.f32 %v3242, %v513
  %v3373 = vmul.f32 %v3244, %v517
  %v3374 = vmul.f32 %v3248, %v513
  %v3375 = vmul.f32 %v3250, %v517
  %v3376 = vmul.f32 %v3252, %v513
  %v3377 = vmul.f32 %v3254, %v517
  %v3378 = vmul.f32 %v3258, %v513
  %v3379 = vmul.f32 %v3260, %v517
  %v3380 = vmul.f32 %v3262, %v513
  %v3381 = vmul.f32 %v3264, %v517
  %v3382 = vmul.f32 %v3268, %v513
  %v3383 = vmul.f32 %v3270, %v517
  %v3384 = vmul.f32 %v3272, %v513
  %v3385 = vmul.f32 %v3274, %v517
  %v3386 = vmul.f32 %v3278, %v513
  %v3387 = vmul.f32 %v3280, %v517
  %v3388 = vmul.f32 %v3282, %v513
  %v3389 = vmul.f32 %v3284, %v517
  %v3390 = vmul.f32 %v3288, %v513
  %v3391 = vmul.f32 %v3290, %v517
  %v3392 = vmul.f32 %v3292, %v513
  %v3393 = vmul.f32 %v3294, %v517
  %v3394 = vmul.f32 %v3298, %v513
  %v3395 = vmul.f32 %v3300, %v517
  %v3396 = vmul.f32 %v3302, %v513
  %v3397 = vmul.f32 %v3304, %v517
  %v3398 = vmul.f32 %v3308, %v513
  %v3399 = vmul.f32 %v3310, %v517
  %v3400 = vadd.f32 %v3314, %v610
  %v3401 = vadd.f32 %v3315, %v614
  %v3402 = vadd.f32 %v3316, %v610
  %v3403 = vadd.f32 %v3317, %v614
  %v3404 = vadd.f32 %v3318, %v610
  %v3405 = vadd.f32 %v3319, %v614
  %v3406 = vadd.f32 %v3320, %v610
  %v3407 = vadd.f32 %v3321, %v614
  %v3408 = vadd.f32 %v3322, %v610
  %v3409 = vadd.f32 %v3323, %v614
  %v3410 = vadd.f32 %v3324, %v610
  %v3411 = vadd.f32 %v3325, %v614
  %v3412 = vadd.f32 %v3326, %v610
  %v3413 = vadd.f32 %v3327, %v614
  %v3414 = vadd.f32 %v3328, %v610
  %v3415 = vadd.f32 %v3329, %v614
  %v3416 = vadd.f32 %v3330, %v610
  %v3417 = vadd.f32 %v3331, %v614
  %v3418 = vadd.f32 %v3332, %v610
  %v3419 = vadd.f32 %v3333, %v614
  %v3420 = vadd.f32 %v3334, %v610
  %v3421 = vadd.f32 %v3335, %v614
  %v3422 = vadd.f32 %v3336, %v610
  %v3423 = vadd.f32 %v3337, %v614
  %v3424 = vadd.f32 %v3338, %v610
  %v3425 = vadd.f32 %v3339, %v614
  %v3426 = vadd.f32 %v3340, %v610
  %v3427 = vadd.f32 %v3341, %v614
  %v3428 = vadd.f32 %v3342, %v610
  %v3429 = vadd.f32 %v3343, %v614
  %v3430 = vadd.f32 %v3344, %v610
  %v3431 = vadd.f32 %v3345, %v614
  %v3432 = vadd.f32 %v3346, %v610
  %v3433 = vadd.f32 %v3347, %v614
  %v3434 = vadd.f32 %v3348, %v610
  %v3435 = vadd.f32 %v3349, %v614
  %v3436 = vadd.f32 %v3350, %v610
  %v3437 = vadd.f32 %v3351, %v614
  %v3438 = vadd.f32 %v3352, %v610
  %v3439 = vadd.f32 %v3353, %v614
  %v3440 = vadd.f32 %v3354, %v610
  %v3441 = vadd.f32 %v3355, %v614
  %v3442 = vadd.f32 %v3356, %v610
  %v3443 = vadd.f32 %v3357, %v614
  %v3444 = vadd.f32 %v3358, %v610
  %v3445 = vadd.f32 %v3359, %v614
  %v3446 = vadd.f32 %v3360, %v610
  %v3447 = vadd.f32 %v3361, %v614
  %v3448 = vadd.f32 %v3362, %v610
  %v3449 = vadd.f32 %v3363, %v614
  %v3450 = vadd.f32 %v3364, %v610
  %v3451 = vadd.f32 %v3365, %v614
  %v3452 = vadd.f32 %v3366, %v610
  %v3453 = vadd.f32 %v3367, %v614
  %v3454 = vadd.f32 %v3368, %v610
  %v3455 = vadd.f32 %v3369, %v614
  %v3456 = vadd.f32 %v3370, %v610
  %v3457 = vadd.f32 %v3371, %v614
  %v3458 = vadd.f32 %v3372, %v610
  %v3459 = vadd.f32 %v3373, %v614
  %v3460 = vadd.f32 %v3374, %v610
  %v3461 = vadd.f32 %v3375, %v614
  %v3462 = vadd.f32 %v3376, %v610
  %v3463 = vadd.f32 %v3377, %v614
  %v3464 = vadd.f32 %v3378, %v610
  %v3465 = vadd.f32 %v3379, %v614
  %v3466 = vadd.f32 %v3380, %v610
  %v3467 = vadd.f32 %v3381, %v614
  %v3468 = vadd.f32 %v3382, %v610
  %v3469 = vadd.f32 %v3383, %v614
  %v3470 = vadd.f32 %v3384, %v610
  %v3471 = vadd.f32 %v3385, %v614
  %v3472 = vadd.f32 %v3386, %v610
  %v3473 = vadd.f32 %v3387, %v614
  %v3474 = vadd.f32 %v3388, %v610
  %v3475 = vadd.f32 %v3389, %v614
  %v3476 = vadd.f32 %v3390, %v610
  %v3477 = vadd.f32 %v3391, %v614
  %v3478 = vadd.f32 %v3392, %v610
  %v3479 = vadd.f32 %v3393, %v614
  %v3480 = vadd.f32 %v3394, %v610
  %v3481 = vadd.f32 %v3395, %v614
  %v3482 = vadd.f32 %v3396, %v610
  %v3483 = vadd.f32 %v3397, %v614
  %v3484 = vadd.f32 %v3398, %v610
  %v3485 = vadd.f32 %v3399, %v614
  %vm3486 = vcmp.gt.f32.partialorder %v3400, 0.0
  %vm3487 = vcmp.gt.f32.partialorder %v3401, 0.0
  %vm3488 = vcmp.gt.f32.partialorder %v3402, 0.0
  %vm3489 = vcmp.gt.f32.partialorder %v3403, 0.0
  %vm3490 = vcmp.gt.f32.partialorder %v3404, 0.0
  %vm3491 = vcmp.gt.f32.partialorder %v3405, 0.0
  %vm3492 = vcmp.gt.f32.partialorder %v3406, 0.0
  %vm3493 = vcmp.gt.f32.partialorder %v3407, 0.0
  %vm3494 = vcmp.gt.f32.partialorder %v3408, 0.0
  %vm3495 = vcmp.gt.f32.partialorder %v3409, 0.0
  %vm3496 = vcmp.gt.f32.partialorder %v3410, 0.0
  %vm3497 = vcmp.gt.f32.partialorder %v3411, 0.0
  %vm3498 = vcmp.gt.f32.partialorder %v3412, 0.0
  %vm3499 = vcmp.gt.f32.partialorder %v3413, 0.0
  %vm3500 = vcmp.gt.f32.partialorder %v3414, 0.0
  %vm3501 = vcmp.gt.f32.partialorder %v3415, 0.0
  %vm3502 = vcmp.gt.f32.partialorder %v3416, 0.0
  %vm3503 = vcmp.gt.f32.partialorder %v3417, 0.0
  %vm3504 = vcmp.gt.f32.partialorder %v3418, 0.0
  %vm3505 = vcmp.gt.f32.partialorder %v3419, 0.0
  %vm3506 = vcmp.gt.f32.partialorder %v3420, 0.0
  %vm3507 = vcmp.gt.f32.partialorder %v3421, 0.0
  %vm3508 = vcmp.gt.f32.partialorder %v3422, 0.0
  %vm3509 = vcmp.gt.f32.partialorder %v3423, 0.0
  %vm3510 = vcmp.gt.f32.partialorder %v3424, 0.0
  %vm3511 = vcmp.gt.f32.partialorder %v3425, 0.0
  %vm3512 = vcmp.gt.f32.partialorder %v3426, 0.0
  %vm3513 = vcmp.gt.f32.partialorder %v3427, 0.0
  %vm3514 = vcmp.gt.f32.partialorder %v3428, 0.0
  %vm3515 = vcmp.gt.f32.partialorder %v3429, 0.0
  %vm3516 = vcmp.gt.f32.partialorder %v3430, 0.0
  %vm3517 = vcmp.gt.f32.partialorder %v3431, 0.0
  %vm3518 = vcmp.gt.f32.partialorder %v3432, 0.0
  %vm3519 = vcmp.gt.f32.partialorder %v3433, 0.0
  %vm3520 = vcmp.gt.f32.partialorder %v3434, 0.0
  %vm3521 = vcmp.gt.f32.partialorder %v3435, 0.0
  %vm3522 = vcmp.gt.f32.partialorder %v3436, 0.0
  %vm3523 = vcmp.gt.f32.partialorder %v3437, 0.0
  %vm3524 = vcmp.gt.f32.partialorder %v3438, 0.0
  %vm3525 = vcmp.gt.f32.partialorder %v3439, 0.0
  %vm3526 = vcmp.gt.f32.partialorder %v3440, 0.0
  %vm3527 = vcmp.gt.f32.partialorder %v3441, 0.0
  %vm3528 = vcmp.gt.f32.partialorder %v3442, 0.0
  %vm3529 = vcmp.gt.f32.partialorder %v3443, 0.0
  %vm3530 = vcmp.gt.f32.partialorder %v3444, 0.0
  %vm3531 = vcmp.gt.f32.partialorder %v3445, 0.0
  %vm3532 = vcmp.gt.f32.partialorder %v3446, 0.0
  %vm3533 = vcmp.gt.f32.partialorder %v3447, 0.0
  %vm3534 = vcmp.gt.f32.partialorder %v3448, 0.0
  %vm3535 = vcmp.gt.f32.partialorder %v3449, 0.0
  %vm3536 = vcmp.gt.f32.partialorder %v3450, 0.0
  %vm3537 = vcmp.gt.f32.partialorder %v3451, 0.0
  %vm3538 = vcmp.gt.f32.partialorder %v3452, 0.0
  %vm3539 = vcmp.gt.f32.partialorder %v3453, 0.0
  %vm3540 = vcmp.gt.f32.partialorder %v3454, 0.0
  %vm3541 = vcmp.gt.f32.partialorder %v3455, 0.0
  %vm3542 = vcmp.gt.f32.partialorder %v3456, 0.0
  %vm3543 = vcmp.gt.f32.partialorder %v3457, 0.0
  %vm3544 = vcmp.gt.f32.partialorder %v3458, 0.0
  %vm3545 = vcmp.gt.f32.partialorder %v3459, 0.0
  %vm3546 = vcmp.gt.f32.partialorder %v3460, 0.0
  %vm3547 = vcmp.gt.f32.partialorder %v3461, 0.0
  %vm3548 = vcmp.gt.f32.partialorder %v3462, 0.0
  %vm3549 = vcmp.gt.f32.partialorder %v3463, 0.0
  %vm3550 = vcmp.gt.f32.partialorder %v3464, 0.0
  %vm3551 = vcmp.gt.f32.partialorder %v3465, 0.0
  %vm3552 = vcmp.gt.f32.partialorder %v3466, 0.0
  %vm3553 = vcmp.gt.f32.partialorder %v3467, 0.0
  %vm3554 = vcmp.gt.f32.partialorder %v3468, 0.0
  %vm3555 = vcmp.gt.f32.partialorder %v3469, 0.0
  %vm3556 = vcmp.gt.f32.partialorder %v3470, 0.0
  %vm3557 = vcmp.gt.f32.partialorder %v3471, 0.0
  %vm3558 = vcmp.gt.f32.partialorder %v3472, 0.0
  %vm3559 = vcmp.gt.f32.partialorder %v3473, 0.0
  %vm3560 = vcmp.gt.f32.partialorder %v3474, 0.0
  %vm3561 = vcmp.gt.f32.partialorder %v3475, 0.0
  %vm3562 = vcmp.gt.f32.partialorder %v3476, 0.0
  %vm3563 = vcmp.gt.f32.partialorder %v3477, 0.0
  %vm3564 = vcmp.gt.f32.partialorder %v3478, 0.0
  %vm3565 = vcmp.gt.f32.partialorder %v3479, 0.0
  %vm3566 = vcmp.gt.f32.partialorder %v3480, 0.0
  %vm3567 = vcmp.gt.f32.partialorder %v3481, 0.0
  %vm3568 = vcmp.gt.f32.partialorder %v3482, 0.0
  %vm3569 = vcmp.gt.f32.partialorder %v3483, 0.0
  %vm3570 = vcmp.gt.f32.partialorder %v3484, 0.0
  %vm3571 = vcmp.gt.f32.partialorder %v3485, 0.0
  %v3572 = vmul.f32 %v3400, 0.01
  %v3573 = vmul.f32 %v3401, 0.01
  %v3574 = vmul.f32 %v3402, 0.01
  %v3575 = vmul.f32 %v3403, 0.01
  %v3576 = vmul.f32 %v3404, 0.01
  %v3577 = vmul.f32 %v3405, 0.01
  %v3578 = vmul.f32 %v3406, 0.01
  %v3579 = vmul.f32 %v3407, 0.01
  %v3580 = vmul.f32 %v3408, 0.01
  %v3581 = vmul.f32 %v3409, 0.01
  %v3582 = vmul.f32 %v3410, 0.01
  %v3583 = vmul.f32 %v3411, 0.01
  %v3584 = vmul.f32 %v3412, 0.01
  %v3585 = vmul.f32 %v3413, 0.01
  %v3586 = vmul.f32 %v3414, 0.01
  %v3587 = vmul.f32 %v3415, 0.01
  %v3588 = vmul.f32 %v3416, 0.01
  %v3589 = vmul.f32 %v3417, 0.01
  %v3590 = vmul.f32 %v3418, 0.01
  %v3591 = vmul.f32 %v3419, 0.01
  %v3592 = vmul.f32 %v3420, 0.01
  %v3593 = vmul.f32 %v3421, 0.01
  %v3594 = vmul.f32 %v3422, 0.01
  %v3595 = vmul.f32 %v3423, 0.01
  %v3596 = vmul.f32 %v3424, 0.01
  %v3597 = vmul.f32 %v3425, 0.01
  %v3598 = vmul.f32 %v3426, 0.01
  %v3599 = vmul.f32 %v3427, 0.01
  %v3600 = vmul.f32 %v3428, 0.01
  %v3601 = vmul.f32 %v3429, 0.01
  %v3602 = vmul.f32 %v3430, 0.01
  %v3603 = vmul.f32 %v3431, 0.01
  %v3604 = vmul.f32 %v3432, 0.01
  %v3605 = vmul.f32 %v3433, 0.01
  %v3606 = vmul.f32 %v3434, 0.01
  %v3607 = vmul.f32 %v3435, 0.01
  %v3608 = vmul.f32 %v3436, 0.01
  %v3609 = vmul.f32 %v3437, 0.01
  %v3610 = vmul.f32 %v3438, 0.01
  %v3611 = vmul.f32 %v3439, 0.01
  %v3612 = vmul.f32 %v3440, 0.01
  %v3613 = vmul.f32 %v3441, 0.01
  %v3614 = vmul.f32 %v3442, 0.01
  %v3615 = vmul.f32 %v3443, 0.01
  %v3616 = vmul.f32 %v3444, 0.01
  %v3617 = vmul.f32 %v3445, 0.01
  %v3618 = vmul.f32 %v3446, 0.01
  %v3619 = vmul.f32 %v3447, 0.01
  %v3620 = vmul.f32 %v3448, 0.01
  %v3621 = vmul.f32 %v3449, 0.01
  %v3622 = vmul.f32 %v3450, 0.01
  %v3623 = vmul.f32 %v3451, 0.01
  %v3624 = vmul.f32 %v3452, 0.01
  %v3625 = vmul.f32 %v3453, 0.01
  %v3626 = vmul.f32 %v3454, 0.01
  %v3627 = vmul.f32 %v3455, 0.01
  %v3628 = vmul.f32 %v3456, 0.01
  %v3629 = vmul.f32 %v3457, 0.01
  %v3630 = vmul.f32 %v3458, 0.01
  %v3631 = vmul.f32 %v3459, 0.01
  %v3632 = vmul.f32 %v3460, 0.01
  %v3633 = vmul.f32 %v3461, 0.01
  %v3634 = vmul.f32 %v3462, 0.01
  %v3635 = vmul.f32 %v3463, 0.01
  %v3636 = vmul.f32 %v3464, 0.01
  %v3637 = vmul.f32 %v3465, 0.01
  %v3638 = vmul.f32 %v3466, 0.01
  %v3639 = vmul.f32 %v3467, 0.01
  %v3640 = vmul.f32 %v3468, 0.01
  %v3641 = vmul.f32 %v3469, 0.01
  %v3642 = vmul.f32 %v3470, 0.01
  %v3643 = vmul.f32 %v3471, 0.01
  %v3644 = vmul.f32 %v3472, 0.01
  %v3645 = vmul.f32 %v3473, 0.01
  %v3646 = vmul.f32 %v3474, 0.01
  %v3647 = vmul.f32 %v3475, 0.01
  %v3648 = vmul.f32 %v3476, 0.01
  %v3649 = vmul.f32 %v3477, 0.01
  %v3650 = vmul.f32 %v3478, 0.01
  %v3651 = vmul.f32 %v3479, 0.01
  %v3652 = vmul.f32 %v3480, 0.01
  %v3653 = vmul.f32 %v3481, 0.01
  %v3654 = vmul.f32 %v3482, 0.01
  %v3655 = vmul.f32 %v3483, 0.01
  %v3656 = vmul.f32 %v3484, 0.01
  %v3657 = vmul.f32 %v3485, 0.01
  %v3658 = vsel %vm3486, %v3400, %v3572
  %v3659 = vsel %vm3487, %v3401, %v3573
  %v3660 = vsel %vm3488, %v3402, %v3574
  %v3661 = vsel %vm3489, %v3403, %v3575
  %v3662 = vsel %vm3490, %v3404, %v3576
  %v3663 = vsel %vm3491, %v3405, %v3577
  %v3664 = vsel %vm3492, %v3406, %v3578
  %v3665 = vsel %vm3493, %v3407, %v3579
  %v3666 = vsel %vm3494, %v3408, %v3580
  %v3667 = vsel %vm3495, %v3409, %v3581
  %v3668 = vsel %vm3496, %v3410, %v3582
  %v3669 = vsel %vm3497, %v3411, %v3583
  %v3670 = vsel %vm3498, %v3412, %v3584
  %v3671 = vsel %vm3499, %v3413, %v3585
  %v3672 = vsel %vm3500, %v3414, %v3586
  %v3673 = vsel %vm3501, %v3415, %v3587
  %v3674 = vsel %vm3502, %v3416, %v3588
  %v3675 = vsel %vm3503, %v3417, %v3589
  %v3676 = vsel %vm3504, %v3418, %v3590
  %v3677 = vsel %vm3505, %v3419, %v3591
  %v3678 = vsel %vm3506, %v3420, %v3592
  %v3679 = vsel %vm3507, %v3421, %v3593
  %v3680 = vsel %vm3508, %v3422, %v3594
  %v3681 = vsel %vm3509, %v3423, %v3595
  %v3682 = vsel %vm3510, %v3424, %v3596
  %v3683 = vsel %vm3511, %v3425, %v3597
  %v3684 = vsel %vm3512, %v3426, %v3598
  %v3685 = vsel %vm3513, %v3427, %v3599
  %v3686 = vsel %vm3514, %v3428, %v3600
  %v3687 = vsel %vm3515, %v3429, %v3601
  %v3688 = vsel %vm3516, %v3430, %v3602
  %v3689 = vsel %vm3517, %v3431, %v3603
  %v3690 = vsel %vm3518, %v3432, %v3604
  %v3691 = vsel %vm3519, %v3433, %v3605
  %v3692 = vsel %vm3520, %v3434, %v3606
  %v3693 = vsel %vm3521, %v3435, %v3607
  %v3694 = vsel %vm3522, %v3436, %v3608
  %v3695 = vsel %vm3523, %v3437, %v3609
  %v3696 = vsel %vm3524, %v3438, %v3610
  %v3697 = vsel %vm3525, %v3439, %v3611
  %v3698 = vsel %vm3526, %v3440, %v3612
  %v3699 = vsel %vm3527, %v3441, %v3613
  %v3700 = vsel %vm3528, %v3442, %v3614
  %v3701 = vsel %vm3529, %v3443, %v3615
  %v3702 = vsel %vm3530, %v3444, %v3616
  %v3703 = vsel %vm3531, %v3445, %v3617
  %v3704 = vsel %vm3532, %v3446, %v3618
  %v3705 = vsel %vm3533, %v3447, %v3619
  %v3706 = vsel %vm3534, %v3448, %v3620
  %v3707 = vsel %vm3535, %v3449, %v3621
  %v3708 = vsel %vm3536, %v3450, %v3622
  %v3709 = vsel %vm3537, %v3451, %v3623
  %v3710 = vsel %vm3538, %v3452, %v3624
  %v3711 = vsel %vm3539, %v3453, %v3625
  %v3712 = vsel %vm3540, %v3454, %v3626
  %v3713 = vsel %vm3541, %v3455, %v3627
  %v3714 = vsel %vm3542, %v3456, %v3628
  %v3715 = vsel %vm3543, %v3457, %v3629
  %v3716 = vsel %vm3544, %v3458, %v3630
  %v3717 = vsel %vm3545, %v3459, %v3631
  %v3718 = vsel %vm3546, %v3460, %v3632
  %v3719 = vsel %vm3547, %v3461, %v3633
  %v3720 = vsel %vm3548, %v3462, %v3634
  %v3721 = vsel %vm3549, %v3463, %v3635
  %v3722 = vsel %vm3550, %v3464, %v3636
  %v3723 = vsel %vm3551, %v3465, %v3637
  %v3724 = vsel %vm3552, %v3466, %v3638
  %v3725 = vsel %vm3553, %v3467, %v3639
  %v3726 = vsel %vm3554, %v3468, %v3640
  %v3727 = vsel %vm3555, %v3469, %v3641
  %v3728 = vsel %vm3556, %v3470, %v3642
  %v3729 = vsel %vm3557, %v3471, %v3643
  %v3730 = vsel %vm3558, %v3472, %v3644
  %v3731 = vsel %vm3559, %v3473, %v3645
  %v3732 = vsel %vm3560, %v3474, %v3646
  %v3733 = vsel %vm3561, %v3475, %v3647
  %v3734 = vsel %vm3562, %v3476, %v3648
  %v3735 = vsel %vm3563, %v3477, %v3649
  %v3736 = vsel %vm3564, %v3478, %v3650
  %v3737 = vsel %vm3565, %v3479, %v3651
  %v3738 = vsel %vm3566, %v3480, %v3652
  %v3739 = vsel %vm3567, %v3481, %v3653
  %v3740 = vsel %vm3568, %v3482, %v3654
  %v3741 = vsel %vm3569, %v3483, %v3655
  %v3742 = vsel %vm3570, %v3484, %v3656
  %v3743 = vsel %vm3571, %v3485, %v3657
  %v3744 = vmax.f32 %v2759, %v3658
  %v3745 = vmax.f32 %v2760, %v3659
  %v3746 = vmax.f32 %v2761, %v3660
  %v3747 = vmax.f32 %v2762, %v3661
  %v3748 = vmax.f32 %v2763, %v3662
  %v3749 = vmax.f32 %v2764, %v3663
  %v3750 = vmax.f32 %v2765, %v3664
  %v3751 = vmax.f32 %v2766, %v3665
  %v3752 = vmax.f32 %v2767, %v3666
  %v3753 = vmax.f32 %v2768, %v3667
  %v3754 = vmax.f32 %v2769, %v3668
  %v3755 = vmax.f32 %v2770, %v3669
  %v3756 = vmax.f32 %v2771, %v3670
  %v3757 = vmax.f32 %v2772, %v3671
  %v3758 = vmax.f32 %v2773, %v3672
  %v3759 = vmax.f32 %v2774, %v3673
  %v3760 = vmax.f32 %v2775, %v3674
  %v3761 = vmax.f32 %v2776, %v3675
  %v3762 = vmax.f32 %v2777, %v3676
  %v3763 = vmax.f32 %v2778, %v3677
  %v3764 = vmax.f32 %v2779, %v3678
  %v3765 = vmax.f32 %v2780, %v3679
  %v3766 = vmax.f32 %v2781, %v3680
  %v3767 = vmax.f32 %v2782, %v3681
  %v3768 = vmax.f32 %v2783, %v3682
  %v3769 = vmax.f32 %v2784, %v3683
  %v3770 = vmax.f32 %v2785, %v3684
  %v3771 = vmax.f32 %v2786, %v3685
  %v3772 = vmax.f32 %v2787, %v3686
  %v3773 = vmax.f32 %v2788, %v3687
  %v3774 = vmax.f32 %v2789, %v3688
  %v3775 = vmax.f32 %v2790, %v3689
  %v3776 = vmax.f32 %v2791, %v3690
  %v3777 = vmax.f32 %v2792, %v3691
  %v3778 = vmax.f32 %v2793, %v3692
  %v3779 = vmax.f32 %v2794, %v3693
  %v3780 = vmax.f32 %v2795, %v3694
  %v3781 = vmax.f32 %v2796, %v3695
  %v3782 = vmax.f32 %v2797, %v3696
  %v3783 = vmax.f32 %v2798, %v3697
  %v3784 = vmax.f32 %v2799, %v3698
  %v3785 = vmax.f32 %v2800, %v3699
  %v3786 = vmax.f32 %v2801, %v3700
  %v3787 = vmax.f32 %v2802, %v3701
  %v3788 = vmax.f32 %v2803, %v3702
  %v3789 = vmax.f32 %v2804, %v3703
  %v3790 = vmax.f32 %v2805, %v3704
  %v3791 = vmax.f32 %v2806, %v3705
  %v3792 = vmax.f32 %v2807, %v3706
  %v3793 = vmax.f32 %v2808, %v3707
  %v3794 = vmax.f32 %v2809, %v3708
  %v3795 = vmax.f32 %v2810, %v3709
  %v3796 = vmax.f32 %v2811, %v3710
  %v3797 = vmax.f32 %v2812, %v3711
  %v3798 = vmax.f32 %v2813, %v3712
  %v3799 = vmax.f32 %v2814, %v3713
  %v3800 = vmax.f32 %v2815, %v3714
  %v3801 = vmax.f32 %v2816, %v3715
  %v3802 = vmax.f32 %v2817, %v3716
  %v3803 = vmax.f32 %v2818, %v3717
  %v3804 = vmax.f32 %v2819, %v3718
  %v3805 = vmax.f32 %v2820, %v3719
  %v3806 = vmax.f32 %v2821, %v3720
  %v3807 = vmax.f32 %v2822, %v3721
  %v3808 = vmax.f32 %v2823, %v3722
  %v3809 = vmax.f32 %v2824, %v3723
  %v3810 = vmax.f32 %v2825, %v3724
  %v3811 = vmax.f32 %v2826, %v3725
  %v3812 = vmax.f32 %v2827, %v3726
  %v3813 = vmax.f32 %v2828, %v3727
  %v3814 = vmax.f32 %v2829, %v3728
  %v3815 = vmax.f32 %v2830, %v3729
  %v3816 = vmax.f32 %v2831, %v3730
  %v3817 = vmax.f32 %v2832, %v3731
  %v3818 = vmax.f32 %v2833, %v3732
  %v3819 = vmax.f32 %v2834, %v3733
  %v3820 = vmax.f32 %v2835, %v3734
  %v3821 = vmax.f32 %v2836, %v3735
  %v3822 = vmax.f32 %v2837, %v3736
  %v3823 = vmax.f32 %v2838, %v3737
  %v3824 = vmax.f32 %v2839, %v3738
  %v3825 = vmax.f32 %v2840, %v3739
  %v3826 = vmax.f32 %v2841, %v3740
  %v3827 = vmax.f32 %v2842, %v3741
  %v3828 = vmax.f32 %v2843, %v3742
  %v3829 = vmax.f32 %v2844, %v3743
  %v3830 = vmax.f32 %v1860, %v3744
  %v3831 = vmax.f32 %v1861, %v3745
  %v3832 = vmax.f32 %v1862, %v3746
  %v3833 = vmax.f32 %v1863, %v3747
  %v3834 = vmax.f32 %v1864, %v3748
  %v3835 = vmax.f32 %v1865, %v3749
  %v3836 = vmax.f32 %v1866, %v3750
  %v3837 = vmax.f32 %v1867, %v3751
  %v3838 = vmax.f32 %v1868, %v3752
  %v3839 = vmax.f32 %v1869, %v3753
  %v3840 = vmax.f32 %v1870, %v3754
  %v3841 = vmax.f32 %v1871, %v3755
  %v3842 = vmax.f32 %v1872, %v3756
  %v3843 = vmax.f32 %v1873, %v3757
  %v3844 = vmax.f32 %v1874, %v3758
  %v3845 = vmax.f32 %v1875, %v3759
  %v3846 = vmax.f32 %v1876, %v3760
  %v3847 = vmax.f32 %v1877, %v3761
  %v3848 = vmax.f32 %v1878, %v3762
  %v3849 = vmax.f32 %v1879, %v3763
  %v3850 = vmax.f32 %v1880, %v3764
  %v3851 = vmax.f32 %v1881, %v3765
  %v3852 = vmax.f32 %v1882, %v3766
  %v3853 = vmax.f32 %v1883, %v3767
  %v3854 = vmax.f32 %v1884, %v3768
  %v3855 = vmax.f32 %v1885, %v3769
  %v3856 = vmax.f32 %v1886, %v3770
  %v3857 = vmax.f32 %v1887, %v3771
  %v3858 = vmax.f32 %v1888, %v3772
  %v3859 = vmax.f32 %v1889, %v3773
  %v3860 = vmax.f32 %v1890, %v3774
  %v3861 = vmax.f32 %v1891, %v3775
  %v3862 = vmax.f32 %v1892, %v3776
  %v3863 = vmax.f32 %v1893, %v3777
  %v3864 = vmax.f32 %v1894, %v3778
  %v3865 = vmax.f32 %v1895, %v3779
  %v3866 = vmax.f32 %v1896, %v3780
  %v3867 = vmax.f32 %v1897, %v3781
  %v3868 = vmax.f32 %v1898, %v3782
  %v3869 = vmax.f32 %v1899, %v3783
  %v3870 = vmax.f32 %v1900, %v3784
  %v3871 = vmax.f32 %v1901, %v3785
  %v3872 = vmax.f32 %v1902, %v3786
  %v3873 = vmax.f32 %v1903, %v3787
  %v3874 = vmax.f32 %v1904, %v3788
  %v3875 = vmax.f32 %v1905, %v3789
  %v3876 = vmax.f32 %v1906, %v3790
  %v3877 = vmax.f32 %v1907, %v3791
  %v3878 = vmax.f32 %v1908, %v3792
  %v3879 = vmax.f32 %v1909, %v3793
  %v3880 = vmax.f32 %v1910, %v3794
  %v3881 = vmax.f32 %v1911, %v3795
  %v3882 = vmax.f32 %v1912, %v3796
  %v3883 = vmax.f32 %v1913, %v3797
  %v3884 = vmax.f32 %v1914, %v3798
  %v3885 = vmax.f32 %v1915, %v3799
  %v3886 = vmax.f32 %v1916, %v3800
  %v3887 = vmax.f32 %v1917, %v3801
  %v3888 = vmax.f32 %v1918, %v3802
  %v3889 = vmax.f32 %v1919, %v3803
  %v3890 = vmax.f32 %v1920, %v3804
  %v3891 = vmax.f32 %v1921, %v3805
  %v3892 = vmax.f32 %v1922, %v3806
  %v3893 = vmax.f32 %v1923, %v3807
  %v3894 = vmax.f32 %v1924, %v3808
  %v3895 = vmax.f32 %v1925, %v3809
  %v3896 = vmax.f32 %v1926, %v3810
  %v3897 = vmax.f32 %v1927, %v3811
  %v3898 = vmax.f32 %v1928, %v3812
  %v3899 = vmax.f32 %v1929, %v3813
  %v3900 = vmax.f32 %v1930, %v3814
  %v3901 = vmax.f32 %v1931, %v3815
  %v3902 = vmax.f32 %v1932, %v3816
  %v3903 = vmax.f32 %v1933, %v3817
  %v3904 = vmax.f32 %v1934, %v3818
  %v3905 = vmax.f32 %v1935, %v3819
  %v3906 = vmax.f32 %v1936, %v3820
  %v3907 = vmax.f32 %v1937, %v3821
  %v3908 = vmax.f32 %v1938, %v3822
  %v3909 = vmax.f32 %v1939, %v3823
  %v3910 = vmax.f32 %v1940, %v3824
  %v3911 = vmax.f32 %v1941, %v3825
  %v3912 = vmax.f32 %v1942, %v3826
  %v3913 = vmax.f32 %v1943, %v3827
  %v3914 = vmax.f32 %v1944, %v3828
  %v3915 = vmax.f32 %v1945, %v3829
  %v3916 = vpack.c.bf16 %v3832, %v3830
  %v3917 = vpack.c.bf16 %v3833, %v3831
  %v3918 = vpack.c.bf16 %v3836, %v3834
  %v3919 = vpack.c.bf16 %v3837, %v3835
  %v3920 = vpack.c.bf16 %v3840, %v3838
  %v3921 = vpack.c.bf16 %v3841, %v3839
  %v3922 = vpack.c.bf16 %v3844, %v3842
  %v3923 = vpack.c.bf16 %v3845, %v3843
  %v3924 = vpack.c.bf16 %v3848, %v3846
  %v3925 = vpack.c.bf16 %v3849, %v3847
  %v3926 = vpack.c.bf16 %v3852, %v3850
  %v3927 = vpack.c.bf16 %v3853, %v3851
  %v3928 = vpack.c.bf16 %v3856, %v3854
  %v3929 = vpack.c.bf16 %v3857, %v3855
  %v3930 = vpack.c.bf16 %v3860, %v3858
  %v3931 = vpack.c.bf16 %v3861, %v3859
  %v3932 = vpack.c.bf16 %v3864, %v3862
  %v3933 = vpack.c.bf16 %v3865, %v3863
  %v3934 = vpack.c.bf16 %v3868, %v3866
  %v3935 = vpack.c.bf16 %v3869, %v3867
  %v3936 = vpack.c.bf16 %v3872, %v3870
  %v3937 = vpack.c.bf16 %v3873, %v3871
  %v3938 = vpack.c.bf16 %v3876, %v3874
  %v3939 = vpack.c.bf16 %v3877, %v3875
  %v3940 = vpack.c.bf16 %v3880, %v3878
  %v3941 = vpack.c.bf16 %v3881, %v3879
  %v3942 = vpack.c.bf16 %v3884, %v3882
  %v3943 = vpack.c.bf16 %v3885, %v3883
  %v3944 = vpack.c.bf16 %v3888, %v3886
  %v3945 = vpack.c.bf16 %v3889, %v3887
  %v3946 = vpack.c.bf16 %v3892, %v3890
  %v3947 = vpack.c.bf16 %v3893, %v3891
  %v3948 = vpack.c.bf16 %v3896, %v3894
  %v3949 = vpack.c.bf16 %v3897, %v3895
  %v3950 = vpack.c.bf16 %v3900, %v3898
  %v3951 = vpack.c.bf16 %v3901, %v3899
  %v3952 = vpack.c.bf16 %v3904, %v3902
  %v3953 = vpack.c.bf16 %v3905, %v3903
  %v3954 = vpack.c.bf16 %v3908, %v3906
  %v3955 = vpack.c.bf16 %v3909, %v3907
  %v3956 = vpack.c.bf16 %v3912, %v3910
  %v3957 = vpack.c.bf16 %v3913, %v3911
  %v3958 = vpack.c.bf16 %v3914, %v3914
  %v3959 = vpack.c.bf16 %v3915, %v3915
  %v4004 = vunpack.c.l.b16 %v3916
  %v4005 = vunpack.c.l.b16 %v3917
  %v4006 = vunpack.c.h.b16 %v3916
  %v4007 = vunpack.c.h.b16 %v3917
  %v4008 = vunpack.c.l.b16 %v3918
  %v4009 = vunpack.c.l.b16 %v3919
  %v4010 = vunpack.c.h.b16 %v3918
  %v4011 = vunpack.c.h.b16 %v3919
  %v4012 = vunpack.c.l.b16 %v3920
  %v4013 = vunpack.c.l.b16 %v3921
  %v4014 = vunpack.c.h.b16 %v3920
  %v4015 = vunpack.c.h.b16 %v3921
  %v4016 = vunpack.c.l.b16 %v3922
  %v4017 = vunpack.c.l.b16 %v3923
  %v4018 = vunpack.c.h.b16 %v3922
  %v4019 = vunpack.c.h.b16 %v3923
  %v4020 = vunpack.c.l.b16 %v3924
  %v4021 = vunpack.c.l.b16 %v3925
  %v4022 = vunpack.c.h.b16 %v3924
  %v4023 = vunpack.c.h.b16 %v3925
  %v4024 = vunpack.c.l.b16 %v3926
  %v4025 = vunpack.c.l.b16 %v3927
  %v4026 = vunpack.c.h.b16 %v3926
  %v4027 = vunpack.c.h.b16 %v3927
  %v4028 = vunpack.c.l.b16 %v3928
  %v4029 = vunpack.c.l.b16 %v3929
  %v4030 = vunpack.c.h.b16 %v3928
  %v4031 = vunpack.c.h.b16 %v3929
  %v4032 = vunpack.c.l.b16 %v3930
  %v4033 = vunpack.c.l.b16 %v3931
  %v4034 = vunpack.c.h.b16 %v3930
  %v4035 = vunpack.c.h.b16 %v3931
  %v4036 = vunpack.c.l.b16 %v3932
  %v4037 = vunpack.c.l.b16 %v3933
  %v4038 = vunpack.c.h.b16 %v3932
  %v4039 = vunpack.c.h.b16 %v3933
  %v4040 = vunpack.c.l.b16 %v3934
  %v4041 = vunpack.c.l.b16 %v3935
  %v4042 = vunpack.c.h.b16 %v3934
  %v4043 = vunpack.c.h.b16 %v3935
  %v4044 = vunpack.c.l.b16 %v3936
  %v4045 = vunpack.c.l.b16 %v3937
  %v4046 = vunpack.c.h.b16 %v3936
  %v4047 = vunpack.c.h.b16 %v3937
  %v4048 = vunpack.c.l.b16 %v3938
  %v4049 = vunpack.c.l.b16 %v3939
  %v4050 = vunpack.c.h.b16 %v3938
  %v4051 = vunpack.c.h.b16 %v3939
  %v4052 = vunpack.c.l.b16 %v3940
  %v4053 = vunpack.c.l.b16 %v3941
  %v4054 = vunpack.c.h.b16 %v3940
  %v4055 = vunpack.c.h.b16 %v3941
  %v4056 = vunpack.c.l.b16 %v3942
  %v4057 = vunpack.c.l.b16 %v3943
  %v4058 = vunpack.c.h.b16 %v3942
  %v4059 = vunpack.c.h.b16 %v3943
  %v4060 = vunpack.c.l.b16 %v3944
  %v4061 = vunpack.c.l.b16 %v3945
  %v4062 = vunpack.c.h.b16 %v3944
  %v4063 = vunpack.c.h.b16 %v3945
  %v4064 = vunpack.c.l.b16 %v3946
  %v4065 = vunpack.c.l.b16 %v3947
  %v4066 = vunpack.c.h.b16 %v3946
  %v4067 = vunpack.c.h.b16 %v3947
  %v4068 = vunpack.c.l.b16 %v3948
  %v4069 = vunpack.c.l.b16 %v3949
  %v4070 = vunpack.c.h.b16 %v3948
  %v4071 = vunpack.c.h.b16 %v3949
  %v4072 = vunpack.c.l.b16 %v3950
  %v4073 = vunpack.c.l.b16 %v3951
  %v4074 = vunpack.c.h.b16 %v3950
  %v4075 = vunpack.c.h.b16 %v3951
  %v4076 = vunpack.c.l.b16 %v3952
  %v4077 = vunpack.c.l.b16 %v3953
  %v4078 = vunpack.c.h.b16 %v3952
  %v4079 = vunpack.c.h.b16 %v3953
  %v4080 = vunpack.c.l.b16 %v3954
  %v4081 = vunpack.c.l.b16 %v3955
  %v4082 = vunpack.c.h.b16 %v3954
  %v4083 = vunpack.c.h.b16 %v3955
  %v4084 = vunpack.c.l.b16 %v3956
  %v4085 = vunpack.c.l.b16 %v3957
  %v4086 = vunpack.c.h.b16 %v3956
  %v4087 = vunpack.c.h.b16 %v3957
  %v4088 = vunpack.c.l.b16 %v3958
  %v4089 = vunpack.c.l.b16 %v3959
  %v4090 = vpack.c.b16 %v4005, %v4004
  %v4091 = vpack.c.b16 %v4007, %v4006
  %v4092 = vpack.c.b16 %v4009, %v4008
  %v4093 = vpack.c.b16 %v4011, %v4010
  %v4094 = vpack.c.b16 %v4013, %v4012
  %v4095 = vpack.c.b16 %v4015, %v4014
  %v4096 = vpack.c.b16 %v4017, %v4016
  %v4097 = vpack.c.b16 %v4019, %v4018
  %v4098 = vpack.c.b16 %v4021, %v4020
  %v4099 = vpack.c.b16 %v4023, %v4022
  %v4100 = vpack.c.b16 %v4025, %v4024
  %v4101 = vpack.c.b16 %v4027, %v4026
  %v4102 = vpack.c.b16 %v4029, %v4028
  %v4103 = vpack.c.b16 %v4031, %v4030
  %v4104 = vpack.c.b16 %v4033, %v4032
  %v4105 = vpack.c.b16 %v4035, %v4034
  %v4106 = vpack.c.b16 %v4037, %v4036
  %v4107 = vpack.c.b16 %v4039, %v4038
  %v4108 = vpack.c.b16 %v4041, %v4040
  %v4109 = vpack.c.b16 %v4043, %v4042
  %v4110 = vpack.c.b16 %v4045, %v4044
  %v4111 = vpack.c.b16 %v4047, %v4046
  %v4112 = vpack.c.b16 %v4049, %v4048
  %v4113 = vpack.c.b16 %v4051, %v4050
  %v4114 = vpack.c.b16 %v4053, %v4052
  %v4115 = vpack.c.b16 %v4055, %v4054
  %v4116 = vpack.c.b16 %v4057, %v4056
  %v4117 = vpack.c.b16 %v4059, %v4058
  %v4118 = vpack.c.b16 %v4061, %v4060
  %v4119 = vpack.c.b16 %v4063, %v4062
  %v4120 = vpack.c.b16 %v4065, %v4064
  %v4121 = vpack.c.b16 %v4067, %v4066
  %v4122 = vpack.c.b16 %v4069, %v4068
  %v4123 = vpack.c.b16 %v4071, %v4070
  %v4124 = vpack.c.b16 %v4073, %v4072
  %v4125 = vpack.c.b16 %v4075, %v4074
  %v4126 = vpack.c.b16 %v4077, %v4076
  %v4127 = vpack.c.b16 %v4079, %v4078
  %v4128 = vpack.c.b16 %v4081, %v4080
  %v4129 = vpack.c.b16 %v4083, %v4082
  %v4130 = vpack.c.b16 %v4085, %v4084
  %v4131 = vpack.c.b16 %v4087, %v4086
  %v4132 = vpack.c.b16 %v4089, %v4088
  %4176 = vst [vmem:[%s4] sm:$0xff] %v4090
  %4177 = vst [vmem:[%s4 + $0x8] sm:$0xff] %v4091
  %4178 = vst [vmem:[%s4 + $0x10] sm:$0xff] %v4092
  %4179 = vst [vmem:[%s4 + $0x18] sm:$0xff] %v4093
  %4180 = vst [vmem:[%s4 + $0x20] sm:$0xff] %v4094
  %4181 = vst [vmem:[%s4 + $0x28] sm:$0xff] %v4095
  %4182 = vst [vmem:[%s4 + $0x30] sm:$0xff] %v4096
  %4183 = vst [vmem:[%s4 + $0x38] sm:$0xff] %v4097
  %4184 = vst [vmem:[%s4 + $0x40] sm:$0xff] %v4098
  %4185 = vst [vmem:[%s4 + $0x48] sm:$0xff] %v4099
  %4186 = vst [vmem:[%s4 + $0x50] sm:$0xff] %v4100
  %4187 = vst [vmem:[%s4 + $0x58] sm:$0xff] %v4101
  %4188 = vst [vmem:[%s4 + $0x60] sm:$0xff] %v4102
  %4189 = vst [vmem:[%s4 + $0x68] sm:$0xff] %v4103
  %4190 = vst [vmem:[%s4 + $0x70] sm:$0xff] %v4104
  %4191 = vst [vmem:[%s4 + $0x78] sm:$0xff] %v4105
  %4192 = vst [vmem:[%s4 + $0x80] sm:$0xff] %v4106
  %4193 = vst [vmem:[%s4 + $0x88] sm:$0xff] %v4107
  %4194 = vst [vmem:[%s4 + $0x90] sm:$0xff] %v4108
  %4195 = vst [vmem:[%s4 + $0x98] sm:$0xff] %v4109
  %4196 = vst [vmem:[%s4 + $0xa0] sm:$0xff] %v4110
  %4197 = vst [vmem:[%s4 + $0xa8] sm:$0xff] %v4111
  %4198 = vst [vmem:[%s4 + $0xb0] sm:$0xff] %v4112
  %4199 = vst [vmem:[%s4 + $0xb8] sm:$0xff] %v4113
  %4200 = vst [vmem:[%s4 + $0xc0] sm:$0xff] %v4114
  %4201 = vst [vmem:[%s4 + $0xc8] sm:$0xff] %v4115
  %4202 = vst [vmem:[%s4 + $0xd0] sm:$0xff] %v4116
  %4203 = vst [vmem:[%s4 + $0xd8] sm:$0xff] %v4117
  %4204 = vst [vmem:[%s4 + $0xe0] sm:$0xff] %v4118
  %4205 = vst [vmem:[%s4 + $0xe8] sm:$0xff] %v4119
  %4206 = vst [vmem:[%s4 + $0xf0] sm:$0xff] %v4120
  %4207 = vst [vmem:[%s4 + $0xf8] sm:$0xff] %v4121
  %4208 = vst [vmem:[%s4 + $0x100] sm:$0xff] %v4122
  %4209 = vst [vmem:[%s4 + $0x108] sm:$0xff] %v4123
  %4210 = vst [vmem:[%s4 + $0x110] sm:$0xff] %v4124
  %4211 = vst [vmem:[%s4 + $0x118] sm:$0xff] %v4125
  %4212 = vst [vmem:[%s4 + $0x120] sm:$0xff] %v4126
  %4213 = vst [vmem:[%s4 + $0x128] sm:$0xff] %v4127
  %4214 = vst [vmem:[%s4 + $0x130] sm:$0xff] %v4128
  %4215 = vst [vmem:[%s4 + $0x138] sm:$0xff] %v4129
  %4216 = vst [vmem:[%s4 + $0x140] sm:$0xff] %v4130
  %4217 = vst [vmem:[%s4 + $0x148] sm:$0xff] %v4131
  %4218 = vst [vmem:[%s4 + $0x150] sm:$0x11] %v4132
  // Predicated region
  $region18: #{cnn_forward.4} parent=0 // pred_check
    _
  $region19: #{cnn_forward.4} parent=0 // pred_check_branch
    %4220 = sbr.rel (0) target = $region21
  $region20: #{cnn_forward.4} parent=0 // pred_region
    _
  $region21: #{cnn_forward.4} parent=0 // pred_fallthru
    _
  // Predicated region
  $region22: #{cnn_forward.4} parent=0 // pred_check
    _
  $region23: #{cnn_forward.4} parent=0 // pred_check_branch
    %4222 = sbr.rel (0) target = $region25
  $region24: #{cnn_forward.4} parent=0 // pred_region
    _
  $region25: #{cnn_forward.4} parent=0 // pred_fallthru
    _

</llo_original>
